<compile_context>
chip_gen: v7x
topology: tpu7x:2x2x1
jax: 0.10.0
libtpu: 0.0.40
codegen_flags: <defaults>
</compile_context>

<pallas_src>
import numpy as np
import jax
import jax.numpy as jnp
from jax.experimental import pallas as pl
from jax.experimental.pallas import tpu as pltpu

NEG = -1e30   # finite "-inf" used in the masked running max


# ----------------------------------------------------------------------------
# Fused Pallas kernel: both LSTM path encoders + MLP matching head
# ----------------------------------------------------------------------------
def fused_match_kernel(emb_ref,     # (2, L*Bp, Din)  time-major flattened path embeddings
                       am_ref,      # (2, L*Bp, H)    additive mask: 0 (t < len_b) / -1e30
                       acc0_ref,    # (2, Bp, H)      max init: 0 if row has zero padding else -1e30
                       direct_ref,  # (Bp, 3*Din)     concat([hu, hv, qf])
                       wc_ref,      # (2, Din, H)     control linear (no bias), transposed
                       wih_ref,     # (2, Din, 4H)    LSTM input weights, [i,f,o,g] column order
                       whh_ref,     # (2, H, 4H)      LSTM recurrent weights, [i,f,o,g]
                       b_ref,       # (2, 1, 4H)      b_ih + b_hh, [i,f,o,g]
                       h0_ref,      # (2, Bp, H)
                       c0_ref,      # (2, Bp, H)
                       w1d_ref,     # (3*Din, HM)     MLP W1 rows for [hu, hv, qf]
                       w1p_ref,     # (2, H, HM)      MLP W1 rows for [hpu, hpv]
                       b1_ref,      # (1, HM)
                       w2_ref,      # (HM, 1)
                       b2_ref,      # (1, 1)
                       o_ref):      # (Bp, 1)
    Bp, H = h0_ref.shape[1], h0_ref.shape[2]
    L = emb_ref.shape[1] // Bp

    # MLP hidden pre-activation from the "direct" embedding features.
    h1 = (jnp.dot(direct_ref[...], w1d_ref[...], preferred_element_type=jnp.float32)
          + b1_ref[...])                                              # (Bp, HM)

    for br in range(2):                 # 0 = parent path, 1 = child path (static unroll)
        emb_br = emb_ref[br]                                          # (L*Bp, Din)
        am_br = am_ref[br]                                            # (L*Bp, H)
        wih, whh = wih_ref[br], whh_ref[br]
        bias, wc = b_ref[br], wc_ref[br]

        # control vector from token 0:  ctrl = ReLU(x_0 @ Wc)
        ctrl = jnp.maximum(
            jnp.dot(emb_br[0:Bp, :], wc, preferred_element_type=jnp.float32), 0.0)

        # Hoisted input projection for all timesteps at once: (L*Bp, 4H)
        gates_x = jnp.dot(emb_br, wih, preferred_element_type=jnp.float32) + bias

        h = h0_ref[br]
        c = c0_ref[br]
        acc = acc0_ref[br]
        for t in range(L):              # static unroll of the recurrence
            g_all = (gates_x[t * Bp:(t + 1) * Bp, :]
                     + jnp.dot(h, whh, preferred_element_type=jnp.float32))   # (Bp, 4H)
            sig = jax.nn.sigmoid(g_all[:, :3 * H])     # gates [i, f, o] in one wide call
            g_new = jnp.tanh(g_all[:, 3 * H:])
            i_g = sig[:, 0 * H:1 * H]
            f_g = sig[:, 1 * H:2 * H]
            o_g = sig[:, 2 * H:3 * H]
            c = f_g * c + i_g * g_new
            h = o_g * jnp.tanh(c)
            # masked running max; pad_packed zero rows are folded into acc0.
            acc = jnp.maximum(acc, h + am_br[t * Bp:(t + 1) * Bp, :])

        # ctrl >= 0, so the scaling commutes with the max and is applied once here.
        h1 = h1 + jnp.dot(ctrl * acc, w1p_ref[br], preferred_element_type=jnp.float32)

    h1 = jnp.maximum(h1, 0.0)
    o_ref[...] = (jnp.dot(h1, w2_ref[...], preferred_element_type=jnp.float32)
                  + b2_ref[...])


def _vmem_specs(n):
    return [pl.BlockSpec(memory_space=pltpu.MemorySpace.VMEM) for _ in range(n)]


# ----------------------------------------------------------------------------
# Parameter preparation: raw (PyTorch-layout) params -> fused-kernel layout
# ----------------------------------------------------------------------------
def prepare_params(params, hidden_pad=128):
    """Gate columns reordered [i,f,g,o] -> [i,f,o,g], parent/child stacked on a
    leading axis, MLP hidden padded to 128 lanes, W1 split into row blocks."""
    emb = params["embedding"]
    Din = emb.shape[1]
    H = params["parent"]["whh_t"].shape[0]

    def reorder(w):   # last-axis gate blocks [i, f, g, o] -> [i, f, o, g]
        return jnp.concatenate(
            [w[..., :2 * H], w[..., 3 * H:4 * H], w[..., 2 * H:3 * H]], axis=-1)

    def stack(key, transform=lambda x: x):
        return jnp.stack([transform(params["parent"][key]),
                          transform(params["child"][key])])

    m = params["match"]
    w1 = m["w1"]                          # rows: [hu | hpu | hv | hpv | qf]
    hu_r = w1[0:Din]
    hpu_r = w1[Din:Din + H]
    hv_r = w1[Din + H:2 * Din + H]
    hpv_r = w1[2 * Din + H:2 * Din + 2 * H]
    qf_r = w1[2 * Din + 2 * H:]
    pad_h = hidden_pad - w1.shape[1]
    w1d = jnp.pad(jnp.concatenate([hu_r, hv_r, qf_r], axis=0), ((0, 0), (0, pad_h)))
    w1p = jnp.pad(jnp.stack([hpu_r, hpv_r]), ((0, 0), (0, 0), (0, pad_h)))
    b1 = jnp.pad(m["b1"], ((0, 0), (0, pad_h)))
    w2 = jnp.pad(m["w2"], ((0, pad_h), (0, 0)))

    return dict(
        embedding=emb,
        wc=stack("wc_t"),
        wih=stack("wih_t", reorder),
        whh=stack("whh_t", reorder),
        bias=stack("bias", reorder),
        h0=stack("h0"),
        c0=stack("c0"),
        w1d=w1d, w1p=w1p, b1=b1, w2=w2, b2=m["b2"],
    )


# ----------------------------------------------------------------------------
# Forward wrapper (embedding gathers, padding, mask construction -> one kernel)
# ----------------------------------------------------------------------------
def match_model_forward(prep, q, u, v, pu, pv, lens):
    emb = prep["embedding"]
    B, L = pu.shape
    Din = emb.shape[1]
    H = prep["wc"].shape[-1]
    Bp = ((B + 7) // 8) * 8               # pad batch to full sublanes

    def pad_rows(x):
        return jnp.pad(x, ((0, Bp - B),) + ((0, 0),) * (x.ndim - 1))

    qf = jnp.take(emb, q, axis=0)
    hu = jnp.take(emb, u, axis=0)
    hv = jnp.take(emb, v, axis=0)
    direct = pad_rows(jnp.concatenate([hu, hv, qf], axis=-1))         # (Bp, 3*Din)

    t_idx = jnp.arange(L, dtype=jnp.int32)

    def prep_path(tokens, lens_col):
        pe = pad_rows(jnp.take(emb, tokens, axis=0))                  # (Bp, L, Din)
        pe = jnp.transpose(pe, (1, 0, 2)).reshape(L * Bp, Din)        # time-major flat
        lens_p = jnp.concatenate(
            [lens_col, jnp.ones((Bp - B,), lens_col.dtype)])          # pad rows: len 1
        tmax = jnp.max(lens_col)                                      # real rows only
        # additive mask: 0 where t < len_b, -1e30 otherwise (excluded from the max)
        am = jnp.where(t_idx[:, None] < lens_p[None, :], 0.0, NEG)    # (L, Bp)
        am = jnp.broadcast_to(am.reshape(L * Bp, 1), (L * Bp, H))
        # pad_packed_sequence zero rows (len_b <= t < tmax) contribute 0 to the max;
        # fold that single 0 into the accumulator init.
        a0 = jnp.where(lens_p < tmax, 0.0, NEG)                       # (Bp,)
        a0 = jnp.broadcast_to(a0[:, None], (Bp, H))
        return pe, am, a0

    pe_u, am_u, a0_u = prep_path(pu, lens[:, 0])
    pe_v, am_v, a0_v = prep_path(pv, lens[:, 1])

    emb_stk = jnp.stack([pe_u, pe_v]).astype(jnp.float32)             # (2, L*Bp, Din)
    am_stk = jnp.stack([am_u, am_v]).astype(jnp.float32)              # (2, L*Bp, H)
    a0_stk = jnp.stack([a0_u, a0_v]).astype(jnp.float32)              # (2, Bp, H)

    h0 = jnp.pad(prep["h0"], ((0, 0), (0, Bp - B), (0, 0)))           # (2, Bp, H)
    c0 = jnp.pad(prep["c0"], ((0, 0), (0, Bp - B), (0, 0)))

    out = pl.pallas_call(
        fused_match_kernel,
        out_shape=jax.ShapeDtypeStruct((Bp, 1), jnp.float32),
        in_specs=_vmem_specs(15),
        out_specs=pl.BlockSpec(memory_space=pltpu.MemorySpace.VMEM),
    )(emb_stk, am_stk, a0_stk, direct,
      prep["wc"], prep["wih"], prep["whh"], prep["bias"], h0, c0,
      prep["w1d"], prep["w1p"], prep["b1"], prep["w2"], prep["b2"])
    return out[:B]


# ----------------------------------------------------------------------------
# Pure-JAX reference (original PyTorch semantics, raw params) for correctness
# ----------------------------------------------------------------------------
def _ref_path_encode(emb_seq, lens, branch):
    B, L, _ = emb_seq.shape
    H = branch["whh_t"].shape[0]
    ctrl = jnp.maximum(emb_seq[:, 0, :] @ branch["wc_t"], 0.0)
    h, c = branch["h0"], branch["c0"]
    acc = jnp.full((B, H), -jnp.inf, dtype=jnp.float32)
    t_max = jnp.max(lens)
    for t in range(L):
        gates = emb_seq[:, t, :] @ branch["wih_t"] + h @ branch["whh_t"] + branch["bias"]
        i_g = jax.nn.sigmoid(gates[:, :H]); f_g = jax.nn.sigmoid(gates[:, H:2*H])
        g_g = jnp.tanh(gates[:, 2*H:3*H]);  o_g = jax.nn.sigmoid(gates[:, 3*H:])
        c = f_g * c + i_g * g_g
        h = o_g * jnp.tanh(c)
        m_out = (t < lens).astype(jnp.float32)[:, None]
        val = ctrl * (h * m_out)
        val = jnp.where(t < t_max, val, -jnp.inf)
        acc = jnp.maximum(acc, val)
    return acc


def _ref_forward(params, q, u, v, pu, pv, lens):
    emb = params["embedding"]
    qf, hu, hv = jnp.take(emb, q, 0), jnp.take(emb, u, 0), jnp.take(emb, v, 0)
    hpu = _ref_path_encode(jnp.take(emb, pu, 0), lens[:, 0], params["parent"])
    hpv = _ref_path_encode(jnp.take(emb, pv, 0), lens[:, 1], params["child"])
    x = jnp.concatenate([hu, hpu, hv, hpv, qf], axis=-1)
    mp = params["match"]
    return jnp.maximum(x @ mp["w1"] + mp["b1"], 0.0) @ mp["w2"] + mp["b2"]


# ----------------------------------------------------------------------------
# Deterministic parameter / input construction (raw, PyTorch-equivalent layout)
# ----------------------------------------------------------------------------
def _randn(key, shape, scale=0.1):
    return scale * jax.random.normal(key, shape, dtype=jnp.float32)


def make_params(key, vocab, in_dim, out_dim, batch, hidden_mlp=100):
    H = out_dim
    ks = jax.random.split(key, 16)
    def branch(k0, k1, k2, k3, k4, k5):
        return dict(
            wc_t=_randn(k0, (in_dim, H)),
            wih_t=_randn(k1, (in_dim, 4 * H)),     # gate order [i, f, g, o] (PyTorch)
            whh_t=_randn(k2, (H, 4 * H)),
            bias=_randn(k3, (1, 4 * H)),           # b_ih + b_hh combined
            h0=_randn(k4, (batch, H), 1.0),        # init_hidden: torch.randn
            c0=_randn(k5, (batch, H), 1.0),
        )
    l_dim = in_dim + out_dim                        # mode 'rp'
    r_dim = in_dim
    match_in = 2 * l_dim + r_dim
    return dict(
        embedding=_randn(ks[0], (vocab, in_dim), 0.5),
        parent=branch(*ks[1:7]),
        child=branch(*ks[7:13]),
        match=dict(
            w1=_randn(ks[13], (match_in, hidden_mlp)),
            b1=_randn(ks[14], (1, hidden_mlp)),
            w2=_randn(ks[15], (hidden_mlp, 1)),
            b2=jnp.zeros((1, 1), jnp.float32),
        ),
    )


if __name__ == "__main__":
    V, Din, H, B, L = 50, 32, 32, 4, 8   # in_dim=32, out_dim=32, batch=4, path len=8

    key = jax.random.PRNGKey(0)
    pkey, dkey = jax.random.split(key)
    params = make_params(pkey, V, Din, H, B)
    prep = prepare_params(params)

    dks = jax.random.split(dkey, 5)
    q = jax.random.randint(dks[0], (B,), 0, V, dtype=jnp.int32)
    u = jax.random.randint(dks[1], (B,), 0, V, dtype=jnp.int32)
    v = jax.random.randint(dks[2], (B,), 0, V, dtype=jnp.int32)
    pu = jax.random.randint(dks[3], (B, L), 0, V, dtype=jnp.int32)
    pv = jax.random.randint(dks[4], (B, L), 0, V, dtype=jnp.int32)
    lens = jnp.array([[8, 8], [5, 6], [3, 2], [8, 4]], dtype=jnp.int32)  # (B, 2)

    scores = jax.jit(match_model_forward)(prep, q, u, v, pu, pv, lens)
    scores = jax.block_until_ready(scores)
    assert scores.shape == (B, 1) and scores.dtype == jnp.float32

    ref = _ref_forward(params, q, u, v, pu, pv, lens)
    np.testing.assert_allclose(np.asarray(scores), np.asarray(ref),
                               rtol=2e-3, atol=2e-3)
    print("KERNEL_OK")
</pallas_src>

<mosaic_0001>
module attributes {stable_mosaic.version = 11 : i64} {
  func.func @fused_match_kernel(%arg0: memref<2x64x32xf32, #tpu.memory_space<vmem>>, %arg1: memref<2x64x32xf32, #tpu.memory_space<vmem>>, %arg2: memref<2x8x32xf32, #tpu.memory_space<vmem>>, %arg3: memref<8x96xf32, #tpu.memory_space<vmem>>, %arg4: memref<2x32x32xf32, #tpu.memory_space<vmem>>, %arg5: memref<2x32x128xf32, #tpu.memory_space<vmem>>, %arg6: memref<2x32x128xf32, #tpu.memory_space<vmem>>, %arg7: memref<2x1x128xf32, #tpu.memory_space<vmem>>, %arg8: memref<2x8x32xf32, #tpu.memory_space<vmem>>, %arg9: memref<2x8x32xf32, #tpu.memory_space<vmem>>, %arg10: memref<96x128xf32, #tpu.memory_space<vmem>>, %arg11: memref<2x32x128xf32, #tpu.memory_space<vmem>>, %arg12: memref<1x128xf32, #tpu.memory_space<vmem>>, %arg13: memref<128x1xf32, #tpu.memory_space<vmem>>, %arg14: memref<1x1xf32, #tpu.memory_space<vmem>>, %arg15: memref<8x1xf32, #tpu.memory_space<vmem>>) attributes {dimension_semantics = [], scalar_prefetch = 0 : i64, scratch_operands = 0 : i64, tpu.core_type = #tpu.core_type<tc>} {
    %c0 = arith.constant 0 : index
    %c0_0 = arith.constant 0 : index
    %0 = vector.load %arg3[%c0, %c0_0] : memref<8x96xf32, #tpu.memory_space<vmem>>, vector<8x96xf32>
    %c0_1 = arith.constant 0 : index
    %c0_2 = arith.constant 0 : index
    %1 = vector.load %arg10[%c0_1, %c0_2] : memref<96x128xf32, #tpu.memory_space<vmem>>, vector<96x128xf32>
    %cst = arith.constant dense<0.000000e+00> : vector<8x128xf32>
    %2 = tpu.matmul %0, %1, %cst {dimension_numbers = #tpu.dot_dimension_numbers<[1], [0], [0], [1], [0, 0, 1, 1], [], []>} : vector<8x96xf32>, vector<96x128xf32>, vector<8x128xf32> -> vector<8x128xf32>
    %c0_3 = arith.constant 0 : index
    %c0_4 = arith.constant 0 : index
    %3 = vector.load %arg12[%c0_3, %c0_4] : memref<1x128xf32, #tpu.memory_space<vmem>>, vector<1x128xf32>
    %4 = vector.broadcast %3 : vector<1x128xf32> to vector<8x128xf32>
    %5 = arith.addf %2, %4 : vector<8x128xf32>
    %c0_5 = arith.constant 0 : index
    %c0_6 = arith.constant 0 : index
    %c0_7 = arith.constant 0 : index
    %6 = vector.load %arg0[%c0_5, %c0_6, %c0_7] : memref<2x64x32xf32, #tpu.memory_space<vmem>>, vector<1x64x32xf32>
    %7 = vector.shape_cast %6 : vector<1x64x32xf32> to vector<64x32xf32>
    %c0_8 = arith.constant 0 : index
    %c0_9 = arith.constant 0 : index
    %c0_10 = arith.constant 0 : index
    %8 = vector.load %arg1[%c0_8, %c0_9, %c0_10] : memref<2x64x32xf32, #tpu.memory_space<vmem>>, vector<1x64x32xf32>
    %9 = vector.shape_cast %8 : vector<1x64x32xf32> to vector<64x32xf32>
    %c0_11 = arith.constant 0 : index
    %c0_12 = arith.constant 0 : index
    %c0_13 = arith.constant 0 : index
    %10 = vector.load %arg5[%c0_11, %c0_12, %c0_13] : memref<2x32x128xf32, #tpu.memory_space<vmem>>, vector<1x32x128xf32>
    %11 = vector.shape_cast %10 : vector<1x32x128xf32> to vector<32x128xf32>
    %c0_14 = arith.constant 0 : index
    %c0_15 = arith.constant 0 : index
    %c0_16 = arith.constant 0 : index
    %12 = vector.load %arg6[%c0_14, %c0_15, %c0_16] : memref<2x32x128xf32, #tpu.memory_space<vmem>>, vector<1x32x128xf32>
    %13 = vector.shape_cast %12 : vector<1x32x128xf32> to vector<32x128xf32>
    %c0_17 = arith.constant 0 : index
    %c0_18 = arith.constant 0 : index
    %c0_19 = arith.constant 0 : index
    %14 = vector.load %arg7[%c0_17, %c0_18, %c0_19] : memref<2x1x128xf32, #tpu.memory_space<vmem>>, vector<1x1x128xf32>
    %15 = vector.shape_cast %14 : vector<1x1x128xf32> to vector<1x128xf32>
    %c0_20 = arith.constant 0 : index
    %c0_21 = arith.constant 0 : index
    %c0_22 = arith.constant 0 : index
    %16 = vector.load %arg4[%c0_20, %c0_21, %c0_22] : memref<2x32x32xf32, #tpu.memory_space<vmem>>, vector<1x32x32xf32>
    %17 = vector.shape_cast %16 : vector<1x32x32xf32> to vector<32x32xf32>
    %18 = vector.extract_strided_slice %7 {offsets = [0, 0], sizes = [8, 32], strides = [1, 1]} : vector<64x32xf32> to vector<8x32xf32>
    %cst_23 = arith.constant dense<0.000000e+00> : vector<8x32xf32>
    %19 = tpu.matmul %18, %17, %cst_23 {dimension_numbers = #tpu.dot_dimension_numbers<[1], [0], [0], [1], [0, 0, 1, 1], [], []>} : vector<8x32xf32>, vector<32x32xf32>, vector<8x32xf32> -> vector<8x32xf32>
    %cst_24 = arith.constant 0.000000e+00 : f32
    %20 = vector.broadcast %cst_24 : f32 to vector<8x32xf32>
    %21 = arith.maximumf %19, %20 : vector<8x32xf32>
    %cst_25 = arith.constant dense<0.000000e+00> : vector<64x128xf32>
    %22 = tpu.matmul %7, %11, %cst_25 {dimension_numbers = #tpu.dot_dimension_numbers<[1], [0], [0], [1], [0, 0, 1, 1], [], []>} : vector<64x32xf32>, vector<32x128xf32>, vector<64x128xf32> -> vector<64x128xf32>
    %23 = vector.broadcast %15 : vector<1x128xf32> to vector<64x128xf32>
    %24 = arith.addf %22, %23 : vector<64x128xf32>
    %c0_26 = arith.constant 0 : index
    %c0_27 = arith.constant 0 : index
    %c0_28 = arith.constant 0 : index
    %25 = vector.load %arg8[%c0_26, %c0_27, %c0_28] : memref<2x8x32xf32, #tpu.memory_space<vmem>>, vector<1x8x32xf32>
    %26 = vector.shape_cast %25 : vector<1x8x32xf32> to vector<8x32xf32>
    %c0_29 = arith.constant 0 : index
    %c0_30 = arith.constant 0 : index
    %c0_31 = arith.constant 0 : index
    %27 = vector.load %arg9[%c0_29, %c0_30, %c0_31] : memref<2x8x32xf32, #tpu.memory_space<vmem>>, vector<1x8x32xf32>
    %28 = vector.shape_cast %27 : vector<1x8x32xf32> to vector<8x32xf32>
    %c0_32 = arith.constant 0 : index
    %c0_33 = arith.constant 0 : index
    %c0_34 = arith.constant 0 : index
    %29 = vector.load %arg2[%c0_32, %c0_33, %c0_34] : memref<2x8x32xf32, #tpu.memory_space<vmem>>, vector<1x8x32xf32>
    %30 = vector.shape_cast %29 : vector<1x8x32xf32> to vector<8x32xf32>
    %31 = vector.extract_strided_slice %24 {offsets = [0, 0], sizes = [8, 128], strides = [1, 1]} : vector<64x128xf32> to vector<8x128xf32>
    %cst_35 = arith.constant dense<0.000000e+00> : vector<8x128xf32>
    %32 = tpu.matmul %26, %13, %cst_35 {dimension_numbers = #tpu.dot_dimension_numbers<[1], [0], [0], [1], [0, 0, 1, 1], [], []>} : vector<8x32xf32>, vector<32x128xf32>, vector<8x128xf32> -> vector<8x128xf32>
    %33 = arith.addf %31, %32 : vector<8x128xf32>
    %34 = vector.extract_strided_slice %33 {offsets = [0, 0], sizes = [8, 96], strides = [1, 1]} : vector<8x128xf32> to vector<8x96xf32>
    %35 = arith.negf %34 : vector<8x96xf32>
    %36 = math.exp %35 : vector<8x96xf32>
    %cst_36 = arith.constant 1.000000e+00 : f32
    %37 = vector.broadcast %cst_36 : f32 to vector<8x96xf32>
    %38 = arith.addf %37, %36 : vector<8x96xf32>
    %39 = arith.divf %37, %38 : vector<8x96xf32>
    %40 = vector.extract_strided_slice %33 {offsets = [0, 96], sizes = [8, 32], strides = [1, 1]} : vector<8x128xf32> to vector<8x32xf32>
    %41 = math.tanh %40 : vector<8x32xf32>
    %42 = vector.extract_strided_slice %39 {offsets = [0, 0], sizes = [8, 32], strides = [1, 1]} : vector<8x96xf32> to vector<8x32xf32>
    %43 = vector.extract_strided_slice %39 {offsets = [0, 32], sizes = [8, 32], strides = [1, 1]} : vector<8x96xf32> to vector<8x32xf32>
    %44 = vector.extract_strided_slice %39 {offsets = [0, 64], sizes = [8, 32], strides = [1, 1]} : vector<8x96xf32> to vector<8x32xf32>
    %45 = arith.mulf %43, %28 : vector<8x32xf32>
    %46 = arith.mulf %42, %41 : vector<8x32xf32>
    %47 = arith.addf %45, %46 : vector<8x32xf32>
    %48 = math.tanh %47 : vector<8x32xf32>
    %49 = arith.mulf %44, %48 : vector<8x32xf32>
    %50 = vector.extract_strided_slice %9 {offsets = [0, 0], sizes = [8, 32], strides = [1, 1]} : vector<64x32xf32> to vector<8x32xf32>
    %51 = arith.addf %49, %50 : vector<8x32xf32>
    %52 = arith.maximumf %30, %51 : vector<8x32xf32>
    %53 = vector.extract_strided_slice %24 {offsets = [8, 0], sizes = [8, 128], strides = [1, 1]} : vector<64x128xf32> to vector<8x128xf32>
    %cst_37 = arith.constant dense<0.000000e+00> : vector<8x128xf32>
    %54 = tpu.matmul %49, %13, %cst_37 {dimension_numbers = #tpu.dot_dimension_numbers<[1], [0], [0], [1], [0, 0, 1, 1], [], []>} : vector<8x32xf32>, vector<32x128xf32>, vector<8x128xf32> -> vector<8x128xf32>
    %55 = arith.addf %53, %54 : vector<8x128xf32>
    %56 = vector.extract_strided_slice %55 {offsets = [0, 0], sizes = [8, 96], strides = [1, 1]} : vector<8x128xf32> to vector<8x96xf32>
    %57 = arith.negf %56 : vector<8x96xf32>
    %58 = math.exp %57 : vector<8x96xf32>
    %cst_38 = arith.constant 1.000000e+00 : f32
    %59 = vector.broadcast %cst_38 : f32 to vector<8x96xf32>
    %60 = arith.addf %59, %58 : vector<8x96xf32>
    %61 = arith.divf %59, %60 : vector<8x96xf32>
    %62 = vector.extract_strided_slice %55 {offsets = [0, 96], sizes = [8, 32], strides = [1, 1]} : vector<8x128xf32> to vector<8x32xf32>
    %63 = math.tanh %62 : vector<8x32xf32>
    %64 = vector.extract_strided_slice %61 {offsets = [0, 0], sizes = [8, 32], strides = [1, 1]} : vector<8x96xf32> to vector<8x32xf32>
    %65 = vector.extract_strided_slice %61 {offsets = [0, 32], sizes = [8, 32], strides = [1, 1]} : vector<8x96xf32> to vector<8x32xf32>
    %66 = vector.extract_strided_slice %61 {offsets = [0, 64], sizes = [8, 32], strides = [1, 1]} : vector<8x96xf32> to vector<8x32xf32>
    %67 = arith.mulf %65, %47 : vector<8x32xf32>
    %68 = arith.mulf %64, %63 : vector<8x32xf32>
    %69 = arith.addf %67, %68 : vector<8x32xf32>
    %70 = math.tanh %69 : vector<8x32xf32>
    %71 = arith.mulf %66, %70 : vector<8x32xf32>
    %72 = vector.extract_strided_slice %9 {offsets = [8, 0], sizes = [8, 32], strides = [1, 1]} : vector<64x32xf32> to vector<8x32xf32>
    %73 = arith.addf %71, %72 : vector<8x32xf32>
    %74 = arith.maximumf %52, %73 : vector<8x32xf32>
    %75 = vector.extract_strided_slice %24 {offsets = [16, 0], sizes = [8, 128], strides = [1, 1]} : vector<64x128xf32> to vector<8x128xf32>
    %cst_39 = arith.constant dense<0.000000e+00> : vector<8x128xf32>
    %76 = tpu.matmul %71, %13, %cst_39 {dimension_numbers = #tpu.dot_dimension_numbers<[1], [0], [0], [1], [0, 0, 1, 1], [], []>} : vector<8x32xf32>, vector<32x128xf32>, vector<8x128xf32> -> vector<8x128xf32>
    %77 = arith.addf %75, %76 : vector<8x128xf32>
    %78 = vector.extract_strided_slice %77 {offsets = [0, 0], sizes = [8, 96], strides = [1, 1]} : vector<8x128xf32> to vector<8x96xf32>
    %79 = arith.negf %78 : vector<8x96xf32>
    %80 = math.exp %79 : vector<8x96xf32>
    %cst_40 = arith.constant 1.000000e+00 : f32
    %81 = vector.broadcast %cst_40 : f32 to vector<8x96xf32>
    %82 = arith.addf %81, %80 : vector<8x96xf32>
    %83 = arith.divf %81, %82 : vector<8x96xf32>
    %84 = vector.extract_strided_slice %77 {offsets = [0, 96], sizes = [8, 32], strides = [1, 1]} : vector<8x128xf32> to vector<8x32xf32>
    %85 = math.tanh %84 : vector<8x32xf32>
    %86 = vector.extract_strided_slice %83 {offsets = [0, 0], sizes = [8, 32], strides = [1, 1]} : vector<8x96xf32> to vector<8x32xf32>
    %87 = vector.extract_strided_slice %83 {offsets = [0, 32], sizes = [8, 32], strides = [1, 1]} : vector<8x96xf32> to vector<8x32xf32>
    %88 = vector.extract_strided_slice %83 {offsets = [0, 64], sizes = [8, 32], strides = [1, 1]} : vector<8x96xf32> to vector<8x32xf32>
    %89 = arith.mulf %87, %69 : vector<8x32xf32>
    %90 = arith.mulf %86, %85 : vector<8x32xf32>
    %91 = arith.addf %89, %90 : vector<8x32xf32>
    %92 = math.tanh %91 : vector<8x32xf32>
    %93 = arith.mulf %88, %92 : vector<8x32xf32>
    %94 = vector.extract_strided_slice %9 {offsets = [16, 0], sizes = [8, 32], strides = [1, 1]} : vector<64x32xf32> to vector<8x32xf32>
    %95 = arith.addf %93, %94 : vector<8x32xf32>
    %96 = arith.maximumf %74, %95 : vector<8x32xf32>
    %97 = vector.extract_strided_slice %24 {offsets = [24, 0], sizes = [8, 128], strides = [1, 1]} : vector<64x128xf32> to vector<8x128xf32>
    %cst_41 = arith.constant dense<0.000000e+00> : vector<8x128xf32>
    %98 = tpu.matmul %93, %13, %cst_41 {dimension_numbers = #tpu.dot_dimension_numbers<[1], [0], [0], [1], [0, 0, 1, 1], [], []>} : vector<8x32xf32>, vector<32x128xf32>, vector<8x128xf32> -> vector<8x128xf32>
    %99 = arith.addf %97, %98 : vector<8x128xf32>
    %100 = vector.extract_strided_slice %99 {offsets = [0, 0], sizes = [8, 96], strides = [1, 1]} : vector<8x128xf32> to vector<8x96xf32>
    %101 = arith.negf %100 : vector<8x96xf32>
    %102 = math.exp %101 : vector<8x96xf32>
    %cst_42 = arith.constant 1.000000e+00 : f32
    %103 = vector.broadcast %cst_42 : f32 to vector<8x96xf32>
    %104 = arith.addf %103, %102 : vector<8x96xf32>
    %105 = arith.divf %103, %104 : vector<8x96xf32>
    %106 = vector.extract_strided_slice %99 {offsets = [0, 96], sizes = [8, 32], strides = [1, 1]} : vector<8x128xf32> to vector<8x32xf32>
    %107 = math.tanh %106 : vector<8x32xf32>
    %108 = vector.extract_strided_slice %105 {offsets = [0, 0], sizes = [8, 32], strides = [1, 1]} : vector<8x96xf32> to vector<8x32xf32>
    %109 = vector.extract_strided_slice %105 {offsets = [0, 32], sizes = [8, 32], strides = [1, 1]} : vector<8x96xf32> to vector<8x32xf32>
    %110 = vector.extract_strided_slice %105 {offsets = [0, 64], sizes = [8, 32], strides = [1, 1]} : vector<8x96xf32> to vector<8x32xf32>
    %111 = arith.mulf %109, %91 : vector<8x32xf32>
    %112 = arith.mulf %108, %107 : vector<8x32xf32>
    %113 = arith.addf %111, %112 : vector<8x32xf32>
    %114 = math.tanh %113 : vector<8x32xf32>
    %115 = arith.mulf %110, %114 : vector<8x32xf32>
    %116 = vector.extract_strided_slice %9 {offsets = [24, 0], sizes = [8, 32], strides = [1, 1]} : vector<64x32xf32> to vector<8x32xf32>
    %117 = arith.addf %115, %116 : vector<8x32xf32>
    %118 = arith.maximumf %96, %117 : vector<8x32xf32>
    %119 = vector.extract_strided_slice %24 {offsets = [32, 0], sizes = [8, 128], strides = [1, 1]} : vector<64x128xf32> to vector<8x128xf32>
    %cst_43 = arith.constant dense<0.000000e+00> : vector<8x128xf32>
    %120 = tpu.matmul %115, %13, %cst_43 {dimension_numbers = #tpu.dot_dimension_numbers<[1], [0], [0], [1], [0, 0, 1, 1], [], []>} : vector<8x32xf32>, vector<32x128xf32>, vector<8x128xf32> -> vector<8x128xf32>
    %121 = arith.addf %119, %120 : vector<8x128xf32>
    %122 = vector.extract_strided_slice %121 {offsets = [0, 0], sizes = [8, 96], strides = [1, 1]} : vector<8x128xf32> to vector<8x96xf32>
    %123 = arith.negf %122 : vector<8x96xf32>
    %124 = math.exp %123 : vector<8x96xf32>
    %cst_44 = arith.constant 1.000000e+00 : f32
    %125 = vector.broadcast %cst_44 : f32 to vector<8x96xf32>
    %126 = arith.addf %125, %124 : vector<8x96xf32>
    %127 = arith.divf %125, %126 : vector<8x96xf32>
    %128 = vector.extract_strided_slice %121 {offsets = [0, 96], sizes = [8, 32], strides = [1, 1]} : vector<8x128xf32> to vector<8x32xf32>
    %129 = math.tanh %128 : vector<8x32xf32>
    %130 = vector.extract_strided_slice %127 {offsets = [0, 0], sizes = [8, 32], strides = [1, 1]} : vector<8x96xf32> to vector<8x32xf32>
    %131 = vector.extract_strided_slice %127 {offsets = [0, 32], sizes = [8, 32], strides = [1, 1]} : vector<8x96xf32> to vector<8x32xf32>
    %132 = vector.extract_strided_slice %127 {offsets = [0, 64], sizes = [8, 32], strides = [1, 1]} : vector<8x96xf32> to vector<8x32xf32>
    %133 = arith.mulf %131, %113 : vector<8x32xf32>
    %134 = arith.mulf %130, %129 : vector<8x32xf32>
    %135 = arith.addf %133, %134 : vector<8x32xf32>
    %136 = math.tanh %135 : vector<8x32xf32>
    %137 = arith.mulf %132, %136 : vector<8x32xf32>
    %138 = vector.extract_strided_slice %9 {offsets = [32, 0], sizes = [8, 32], strides = [1, 1]} : vector<64x32xf32> to vector<8x32xf32>
    %139 = arith.addf %137, %138 : vector<8x32xf32>
    %140 = arith.maximumf %118, %139 : vector<8x32xf32>
    %141 = vector.extract_strided_slice %24 {offsets = [40, 0], sizes = [8, 128], strides = [1, 1]} : vector<64x128xf32> to vector<8x128xf32>
    %cst_45 = arith.constant dense<0.000000e+00> : vector<8x128xf32>
    %142 = tpu.matmul %137, %13, %cst_45 {dimension_numbers = #tpu.dot_dimension_numbers<[1], [0], [0], [1], [0, 0, 1, 1], [], []>} : vector<8x32xf32>, vector<32x128xf32>, vector<8x128xf32> -> vector<8x128xf32>
    %143 = arith.addf %141, %142 : vector<8x128xf32>
    %144 = vector.extract_strided_slice %143 {offsets = [0, 0], sizes = [8, 96], strides = [1, 1]} : vector<8x128xf32> to vector<8x96xf32>
    %145 = arith.negf %144 : vector<8x96xf32>
    %146 = math.exp %145 : vector<8x96xf32>
    %cst_46 = arith.constant 1.000000e+00 : f32
    %147 = vector.broadcast %cst_46 : f32 to vector<8x96xf32>
    %148 = arith.addf %147, %146 : vector<8x96xf32>
    %149 = arith.divf %147, %148 : vector<8x96xf32>
    %150 = vector.extract_strided_slice %143 {offsets = [0, 96], sizes = [8, 32], strides = [1, 1]} : vector<8x128xf32> to vector<8x32xf32>
    %151 = math.tanh %150 : vector<8x32xf32>
    %152 = vector.extract_strided_slice %149 {offsets = [0, 0], sizes = [8, 32], strides = [1, 1]} : vector<8x96xf32> to vector<8x32xf32>
    %153 = vector.extract_strided_slice %149 {offsets = [0, 32], sizes = [8, 32], strides = [1, 1]} : vector<8x96xf32> to vector<8x32xf32>
    %154 = vector.extract_strided_slice %149 {offsets = [0, 64], sizes = [8, 32], strides = [1, 1]} : vector<8x96xf32> to vector<8x32xf32>
    %155 = arith.mulf %153, %135 : vector<8x32xf32>
    %156 = arith.mulf %152, %151 : vector<8x32xf32>
    %157 = arith.addf %155, %156 : vector<8x32xf32>
    %158 = math.tanh %157 : vector<8x32xf32>
    %159 = arith.mulf %154, %158 : vector<8x32xf32>
    %160 = vector.extract_strided_slice %9 {offsets = [40, 0], sizes = [8, 32], strides = [1, 1]} : vector<64x32xf32> to vector<8x32xf32>
    %161 = arith.addf %159, %160 : vector<8x32xf32>
    %162 = arith.maximumf %140, %161 : vector<8x32xf32>
    %163 = vector.extract_strided_slice %24 {offsets = [48, 0], sizes = [8, 128], strides = [1, 1]} : vector<64x128xf32> to vector<8x128xf32>
    %cst_47 = arith.constant dense<0.000000e+00> : vector<8x128xf32>
    %164 = tpu.matmul %159, %13, %cst_47 {dimension_numbers = #tpu.dot_dimension_numbers<[1], [0], [0], [1], [0, 0, 1, 1], [], []>} : vector<8x32xf32>, vector<32x128xf32>, vector<8x128xf32> -> vector<8x128xf32>
    %165 = arith.addf %163, %164 : vector<8x128xf32>
    %166 = vector.extract_strided_slice %165 {offsets = [0, 0], sizes = [8, 96], strides = [1, 1]} : vector<8x128xf32> to vector<8x96xf32>
    %167 = arith.negf %166 : vector<8x96xf32>
    %168 = math.exp %167 : vector<8x96xf32>
    %cst_48 = arith.constant 1.000000e+00 : f32
    %169 = vector.broadcast %cst_48 : f32 to vector<8x96xf32>
    %170 = arith.addf %169, %168 : vector<8x96xf32>
    %171 = arith.divf %169, %170 : vector<8x96xf32>
    %172 = vector.extract_strided_slice %165 {offsets = [0, 96], sizes = [8, 32], strides = [1, 1]} : vector<8x128xf32> to vector<8x32xf32>
    %173 = math.tanh %172 : vector<8x32xf32>
    %174 = vector.extract_strided_slice %171 {offsets = [0, 0], sizes = [8, 32], strides = [1, 1]} : vector<8x96xf32> to vector<8x32xf32>
    %175 = vector.extract_strided_slice %171 {offsets = [0, 32], sizes = [8, 32], strides = [1, 1]} : vector<8x96xf32> to vector<8x32xf32>
    %176 = vector.extract_strided_slice %171 {offsets = [0, 64], sizes = [8, 32], strides = [1, 1]} : vector<8x96xf32> to vector<8x32xf32>
    %177 = arith.mulf %175, %157 : vector<8x32xf32>
    %178 = arith.mulf %174, %173 : vector<8x32xf32>
    %179 = arith.addf %177, %178 : vector<8x32xf32>
    %180 = math.tanh %179 : vector<8x32xf32>
    %181 = arith.mulf %176, %180 : vector<8x32xf32>
    %182 = vector.extract_strided_slice %9 {offsets = [48, 0], sizes = [8, 32], strides = [1, 1]} : vector<64x32xf32> to vector<8x32xf32>
    %183 = arith.addf %181, %182 : vector<8x32xf32>
    %184 = arith.maximumf %162, %183 : vector<8x32xf32>
    %185 = vector.extract_strided_slice %24 {offsets = [56, 0], sizes = [8, 128], strides = [1, 1]} : vector<64x128xf32> to vector<8x128xf32>
    %cst_49 = arith.constant dense<0.000000e+00> : vector<8x128xf32>
    %186 = tpu.matmul %181, %13, %cst_49 {dimension_numbers = #tpu.dot_dimension_numbers<[1], [0], [0], [1], [0, 0, 1, 1], [], []>} : vector<8x32xf32>, vector<32x128xf32>, vector<8x128xf32> -> vector<8x128xf32>
    %187 = arith.addf %185, %186 : vector<8x128xf32>
    %188 = vector.extract_strided_slice %187 {offsets = [0, 0], sizes = [8, 96], strides = [1, 1]} : vector<8x128xf32> to vector<8x96xf32>
    %189 = arith.negf %188 : vector<8x96xf32>
    %190 = math.exp %189 : vector<8x96xf32>
    %cst_50 = arith.constant 1.000000e+00 : f32
    %191 = vector.broadcast %cst_50 : f32 to vector<8x96xf32>
    %192 = arith.addf %191, %190 : vector<8x96xf32>
    %193 = arith.divf %191, %192 : vector<8x96xf32>
    %194 = vector.extract_strided_slice %187 {offsets = [0, 96], sizes = [8, 32], strides = [1, 1]} : vector<8x128xf32> to vector<8x32xf32>
    %195 = math.tanh %194 : vector<8x32xf32>
    %196 = vector.extract_strided_slice %193 {offsets = [0, 0], sizes = [8, 32], strides = [1, 1]} : vector<8x96xf32> to vector<8x32xf32>
    %197 = vector.extract_strided_slice %193 {offsets = [0, 32], sizes = [8, 32], strides = [1, 1]} : vector<8x96xf32> to vector<8x32xf32>
    %198 = vector.extract_strided_slice %193 {offsets = [0, 64], sizes = [8, 32], strides = [1, 1]} : vector<8x96xf32> to vector<8x32xf32>
    %199 = arith.mulf %197, %179 : vector<8x32xf32>
    %200 = arith.mulf %196, %195 : vector<8x32xf32>
    %201 = arith.addf %199, %200 : vector<8x32xf32>
    %202 = math.tanh %201 : vector<8x32xf32>
    %203 = arith.mulf %198, %202 : vector<8x32xf32>
    %204 = vector.extract_strided_slice %9 {offsets = [56, 0], sizes = [8, 32], strides = [1, 1]} : vector<64x32xf32> to vector<8x32xf32>
    %205 = arith.addf %203, %204 : vector<8x32xf32>
    %206 = arith.maximumf %184, %205 : vector<8x32xf32>
    %207 = arith.mulf %21, %206 : vector<8x32xf32>
    %c0_51 = arith.constant 0 : index
    %c0_52 = arith.constant 0 : index
    %c0_53 = arith.constant 0 : index
    %208 = vector.load %arg11[%c0_51, %c0_52, %c0_53] : memref<2x32x128xf32, #tpu.memory_space<vmem>>, vector<1x32x128xf32>
    %209 = vector.shape_cast %208 : vector<1x32x128xf32> to vector<32x128xf32>
    %cst_54 = arith.constant dense<0.000000e+00> : vector<8x128xf32>
    %210 = tpu.matmul %207, %209, %cst_54 {dimension_numbers = #tpu.dot_dimension_numbers<[1], [0], [0], [1], [0, 0, 1, 1], [], []>} : vector<8x32xf32>, vector<32x128xf32>, vector<8x128xf32> -> vector<8x128xf32>
    %211 = arith.addf %5, %210 : vector<8x128xf32>
    %c1 = arith.constant 1 : index
    %c0_55 = arith.constant 0 : index
    %c0_56 = arith.constant 0 : index
    %212 = vector.load %arg0[%c1, %c0_55, %c0_56] : memref<2x64x32xf32, #tpu.memory_space<vmem>>, vector<1x64x32xf32>
    %213 = vector.shape_cast %212 : vector<1x64x32xf32> to vector<64x32xf32>
    %c1_57 = arith.constant 1 : index
    %c0_58 = arith.constant 0 : index
    %c0_59 = arith.constant 0 : index
    %214 = vector.load %arg1[%c1_57, %c0_58, %c0_59] : memref<2x64x32xf32, #tpu.memory_space<vmem>>, vector<1x64x32xf32>
    %215 = vector.shape_cast %214 : vector<1x64x32xf32> to vector<64x32xf32>
    %c1_60 = arith.constant 1 : index
    %c0_61 = arith.constant 0 : index
    %c0_62 = arith.constant 0 : index
    %216 = vector.load %arg5[%c1_60, %c0_61, %c0_62] : memref<2x32x128xf32, #tpu.memory_space<vmem>>, vector<1x32x128xf32>
    %217 = vector.shape_cast %216 : vector<1x32x128xf32> to vector<32x128xf32>
    %c1_63 = arith.constant 1 : index
    %c0_64 = arith.constant 0 : index
    %c0_65 = arith.constant 0 : index
    %218 = vector.load %arg6[%c1_63, %c0_64, %c0_65] : memref<2x32x128xf32, #tpu.memory_space<vmem>>, vector<1x32x128xf32>
    %219 = vector.shape_cast %218 : vector<1x32x128xf32> to vector<32x128xf32>
    %c1_66 = arith.constant 1 : index
    %c0_67 = arith.constant 0 : index
    %c0_68 = arith.constant 0 : index
    %220 = vector.load %arg7[%c1_66, %c0_67, %c0_68] : memref<2x1x128xf32, #tpu.memory_space<vmem>>, vector<1x1x128xf32>
    %221 = vector.shape_cast %220 : vector<1x1x128xf32> to vector<1x128xf32>
    %c1_69 = arith.constant 1 : index
    %c0_70 = arith.constant 0 : index
    %c0_71 = arith.constant 0 : index
    %222 = vector.load %arg4[%c1_69, %c0_70, %c0_71] : memref<2x32x32xf32, #tpu.memory_space<vmem>>, vector<1x32x32xf32>
    %223 = vector.shape_cast %222 : vector<1x32x32xf32> to vector<32x32xf32>
    %224 = vector.extract_strided_slice %213 {offsets = [0, 0], sizes = [8, 32], strides = [1, 1]} : vector<64x32xf32> to vector<8x32xf32>
    %cst_72 = arith.constant dense<0.000000e+00> : vector<8x32xf32>
    %225 = tpu.matmul %224, %223, %cst_72 {dimension_numbers = #tpu.dot_dimension_numbers<[1], [0], [0], [1], [0, 0, 1, 1], [], []>} : vector<8x32xf32>, vector<32x32xf32>, vector<8x32xf32> -> vector<8x32xf32>
    %cst_73 = arith.constant 0.000000e+00 : f32
    %226 = vector.broadcast %cst_73 : f32 to vector<8x32xf32>
    %227 = arith.maximumf %225, %226 : vector<8x32xf32>
    %cst_74 = arith.constant dense<0.000000e+00> : vector<64x128xf32>
    %228 = tpu.matmul %213, %217, %cst_74 {dimension_numbers = #tpu.dot_dimension_numbers<[1], [0], [0], [1], [0, 0, 1, 1], [], []>} : vector<64x32xf32>, vector<32x128xf32>, vector<64x128xf32> -> vector<64x128xf32>
    %229 = vector.broadcast %221 : vector<1x128xf32> to vector<64x128xf32>
    %230 = arith.addf %228, %229 : vector<64x128xf32>
    %c1_75 = arith.constant 1 : index
    %c0_76 = arith.constant 0 : index
    %c0_77 = arith.constant 0 : index
    %231 = vector.load %arg8[%c1_75, %c0_76, %c0_77] : memref<2x8x32xf32, #tpu.memory_space<vmem>>, vector<1x8x32xf32>
    %232 = vector.shape_cast %231 : vector<1x8x32xf32> to vector<8x32xf32>
    %c1_78 = arith.constant 1 : index
    %c0_79 = arith.constant 0 : index
    %c0_80 = arith.constant 0 : index
    %233 = vector.load %arg9[%c1_78, %c0_79, %c0_80] : memref<2x8x32xf32, #tpu.memory_space<vmem>>, vector<1x8x32xf32>
    %234 = vector.shape_cast %233 : vector<1x8x32xf32> to vector<8x32xf32>
    %c1_81 = arith.constant 1 : index
    %c0_82 = arith.constant 0 : index
    %c0_83 = arith.constant 0 : index
    %235 = vector.load %arg2[%c1_81, %c0_82, %c0_83] : memref<2x8x32xf32, #tpu.memory_space<vmem>>, vector<1x8x32xf32>
    %236 = vector.shape_cast %235 : vector<1x8x32xf32> to vector<8x32xf32>
    %237 = vector.extract_strided_slice %230 {offsets = [0, 0], sizes = [8, 128], strides = [1, 1]} : vector<64x128xf32> to vector<8x128xf32>
    %cst_84 = arith.constant dense<0.000000e+00> : vector<8x128xf32>
    %238 = tpu.matmul %232, %219, %cst_84 {dimension_numbers = #tpu.dot_dimension_numbers<[1], [0], [0], [1], [0, 0, 1, 1], [], []>} : vector<8x32xf32>, vector<32x128xf32>, vector<8x128xf32> -> vector<8x128xf32>
    %239 = arith.addf %237, %238 : vector<8x128xf32>
    %240 = vector.extract_strided_slice %239 {offsets = [0, 0], sizes = [8, 96], strides = [1, 1]} : vector<8x128xf32> to vector<8x96xf32>
    %241 = arith.negf %240 : vector<8x96xf32>
    %242 = math.exp %241 : vector<8x96xf32>
    %cst_85 = arith.constant 1.000000e+00 : f32
    %243 = vector.broadcast %cst_85 : f32 to vector<8x96xf32>
    %244 = arith.addf %243, %242 : vector<8x96xf32>
    %245 = arith.divf %243, %244 : vector<8x96xf32>
    %246 = vector.extract_strided_slice %239 {offsets = [0, 96], sizes = [8, 32], strides = [1, 1]} : vector<8x128xf32> to vector<8x32xf32>
    %247 = math.tanh %246 : vector<8x32xf32>
    %248 = vector.extract_strided_slice %245 {offsets = [0, 0], sizes = [8, 32], strides = [1, 1]} : vector<8x96xf32> to vector<8x32xf32>
    %249 = vector.extract_strided_slice %245 {offsets = [0, 32], sizes = [8, 32], strides = [1, 1]} : vector<8x96xf32> to vector<8x32xf32>
    %250 = vector.extract_strided_slice %245 {offsets = [0, 64], sizes = [8, 32], strides = [1, 1]} : vector<8x96xf32> to vector<8x32xf32>
    %251 = arith.mulf %249, %234 : vector<8x32xf32>
    %252 = arith.mulf %248, %247 : vector<8x32xf32>
    %253 = arith.addf %251, %252 : vector<8x32xf32>
    %254 = math.tanh %253 : vector<8x32xf32>
    %255 = arith.mulf %250, %254 : vector<8x32xf32>
    %256 = vector.extract_strided_slice %215 {offsets = [0, 0], sizes = [8, 32], strides = [1, 1]} : vector<64x32xf32> to vector<8x32xf32>
    %257 = arith.addf %255, %256 : vector<8x32xf32>
    %258 = arith.maximumf %236, %257 : vector<8x32xf32>
    %259 = vector.extract_strided_slice %230 {offsets = [8, 0], sizes = [8, 128], strides = [1, 1]} : vector<64x128xf32> to vector<8x128xf32>
    %cst_86 = arith.constant dense<0.000000e+00> : vector<8x128xf32>
    %260 = tpu.matmul %255, %219, %cst_86 {dimension_numbers = #tpu.dot_dimension_numbers<[1], [0], [0], [1], [0, 0, 1, 1], [], []>} : vector<8x32xf32>, vector<32x128xf32>, vector<8x128xf32> -> vector<8x128xf32>
    %261 = arith.addf %259, %260 : vector<8x128xf32>
    %262 = vector.extract_strided_slice %261 {offsets = [0, 0], sizes = [8, 96], strides = [1, 1]} : vector<8x128xf32> to vector<8x96xf32>
    %263 = arith.negf %262 : vector<8x96xf32>
    %264 = math.exp %263 : vector<8x96xf32>
    %cst_87 = arith.constant 1.000000e+00 : f32
    %265 = vector.broadcast %cst_87 : f32 to vector<8x96xf32>
    %266 = arith.addf %265, %264 : vector<8x96xf32>
    %267 = arith.divf %265, %266 : vector<8x96xf32>
    %268 = vector.extract_strided_slice %261 {offsets = [0, 96], sizes = [8, 32], strides = [1, 1]} : vector<8x128xf32> to vector<8x32xf32>
    %269 = math.tanh %268 : vector<8x32xf32>
    %270 = vector.extract_strided_slice %267 {offsets = [0, 0], sizes = [8, 32], strides = [1, 1]} : vector<8x96xf32> to vector<8x32xf32>
    %271 = vector.extract_strided_slice %267 {offsets = [0, 32], sizes = [8, 32], strides = [1, 1]} : vector<8x96xf32> to vector<8x32xf32>
    %272 = vector.extract_strided_slice %267 {offsets = [0, 64], sizes = [8, 32], strides = [1, 1]} : vector<8x96xf32> to vector<8x32xf32>
    %273 = arith.mulf %271, %253 : vector<8x32xf32>
    %274 = arith.mulf %270, %269 : vector<8x32xf32>
    %275 = arith.addf %273, %274 : vector<8x32xf32>
    %276 = math.tanh %275 : vector<8x32xf32>
    %277 = arith.mulf %272, %276 : vector<8x32xf32>
    %278 = vector.extract_strided_slice %215 {offsets = [8, 0], sizes = [8, 32], strides = [1, 1]} : vector<64x32xf32> to vector<8x32xf32>
    %279 = arith.addf %277, %278 : vector<8x32xf32>
    %280 = arith.maximumf %258, %279 : vector<8x32xf32>
    %281 = vector.extract_strided_slice %230 {offsets = [16, 0], sizes = [8, 128], strides = [1, 1]} : vector<64x128xf32> to vector<8x128xf32>
    %cst_88 = arith.constant dense<0.000000e+00> : vector<8x128xf32>
    %282 = tpu.matmul %277, %219, %cst_88 {dimension_numbers = #tpu.dot_dimension_numbers<[1], [0], [0], [1], [0, 0, 1, 1], [], []>} : vector<8x32xf32>, vector<32x128xf32>, vector<8x128xf32> -> vector<8x128xf32>
    %283 = arith.addf %281, %282 : vector<8x128xf32>
    %284 = vector.extract_strided_slice %283 {offsets = [0, 0], sizes = [8, 96], strides = [1, 1]} : vector<8x128xf32> to vector<8x96xf32>
    %285 = arith.negf %284 : vector<8x96xf32>
    %286 = math.exp %285 : vector<8x96xf32>
    %cst_89 = arith.constant 1.000000e+00 : f32
    %287 = vector.broadcast %cst_89 : f32 to vector<8x96xf32>
    %288 = arith.addf %287, %286 : vector<8x96xf32>
    %289 = arith.divf %287, %288 : vector<8x96xf32>
    %290 = vector.extract_strided_slice %283 {offsets = [0, 96], sizes = [8, 32], strides = [1, 1]} : vector<8x128xf32> to vector<8x32xf32>
    %291 = math.tanh %290 : vector<8x32xf32>
    %292 = vector.extract_strided_slice %289 {offsets = [0, 0], sizes = [8, 32], strides = [1, 1]} : vector<8x96xf32> to vector<8x32xf32>
    %293 = vector.extract_strided_slice %289 {offsets = [0, 32], sizes = [8, 32], strides = [1, 1]} : vector<8x96xf32> to vector<8x32xf32>
    %294 = vector.extract_strided_slice %289 {offsets = [0, 64], sizes = [8, 32], strides = [1, 1]} : vector<8x96xf32> to vector<8x32xf32>
    %295 = arith.mulf %293, %275 : vector<8x32xf32>
    %296 = arith.mulf %292, %291 : vector<8x32xf32>
    %297 = arith.addf %295, %296 : vector<8x32xf32>
    %298 = math.tanh %297 : vector<8x32xf32>
    %299 = arith.mulf %294, %298 : vector<8x32xf32>
    %300 = vector.extract_strided_slice %215 {offsets = [16, 0], sizes = [8, 32], strides = [1, 1]} : vector<64x32xf32> to vector<8x32xf32>
    %301 = arith.addf %299, %300 : vector<8x32xf32>
    %302 = arith.maximumf %280, %301 : vector<8x32xf32>
    %303 = vector.extract_strided_slice %230 {offsets = [24, 0], sizes = [8, 128], strides = [1, 1]} : vector<64x128xf32> to vector<8x128xf32>
    %cst_90 = arith.constant dense<0.000000e+00> : vector<8x128xf32>
    %304 = tpu.matmul %299, %219, %cst_90 {dimension_numbers = #tpu.dot_dimension_numbers<[1], [0], [0], [1], [0, 0, 1, 1], [], []>} : vector<8x32xf32>, vector<32x128xf32>, vector<8x128xf32> -> vector<8x128xf32>
    %305 = arith.addf %303, %304 : vector<8x128xf32>
    %306 = vector.extract_strided_slice %305 {offsets = [0, 0], sizes = [8, 96], strides = [1, 1]} : vector<8x128xf32> to vector<8x96xf32>
    %307 = arith.negf %306 : vector<8x96xf32>
    %308 = math.exp %307 : vector<8x96xf32>
    %cst_91 = arith.constant 1.000000e+00 : f32
    %309 = vector.broadcast %cst_91 : f32 to vector<8x96xf32>
    %310 = arith.addf %309, %308 : vector<8x96xf32>
    %311 = arith.divf %309, %310 : vector<8x96xf32>
    %312 = vector.extract_strided_slice %305 {offsets = [0, 96], sizes = [8, 32], strides = [1, 1]} : vector<8x128xf32> to vector<8x32xf32>
    %313 = math.tanh %312 : vector<8x32xf32>
    %314 = vector.extract_strided_slice %311 {offsets = [0, 0], sizes = [8, 32], strides = [1, 1]} : vector<8x96xf32> to vector<8x32xf32>
    %315 = vector.extract_strided_slice %311 {offsets = [0, 32], sizes = [8, 32], strides = [1, 1]} : vector<8x96xf32> to vector<8x32xf32>
    %316 = vector.extract_strided_slice %311 {offsets = [0, 64], sizes = [8, 32], strides = [1, 1]} : vector<8x96xf32> to vector<8x32xf32>
    %317 = arith.mulf %315, %297 : vector<8x32xf32>
    %318 = arith.mulf %314, %313 : vector<8x32xf32>
    %319 = arith.addf %317, %318 : vector<8x32xf32>
    %320 = math.tanh %319 : vector<8x32xf32>
    %321 = arith.mulf %316, %320 : vector<8x32xf32>
    %322 = vector.extract_strided_slice %215 {offsets = [24, 0], sizes = [8, 32], strides = [1, 1]} : vector<64x32xf32> to vector<8x32xf32>
    %323 = arith.addf %321, %322 : vector<8x32xf32>
    %324 = arith.maximumf %302, %323 : vector<8x32xf32>
    %325 = vector.extract_strided_slice %230 {offsets = [32, 0], sizes = [8, 128], strides = [1, 1]} : vector<64x128xf32> to vector<8x128xf32>
    %cst_92 = arith.constant dense<0.000000e+00> : vector<8x128xf32>
    %326 = tpu.matmul %321, %219, %cst_92 {dimension_numbers = #tpu.dot_dimension_numbers<[1], [0], [0], [1], [0, 0, 1, 1], [], []>} : vector<8x32xf32>, vector<32x128xf32>, vector<8x128xf32> -> vector<8x128xf32>
    %327 = arith.addf %325, %326 : vector<8x128xf32>
    %328 = vector.extract_strided_slice %327 {offsets = [0, 0], sizes = [8, 96], strides = [1, 1]} : vector<8x128xf32> to vector<8x96xf32>
    %329 = arith.negf %328 : vector<8x96xf32>
    %330 = math.exp %329 : vector<8x96xf32>
    %cst_93 = arith.constant 1.000000e+00 : f32
    %331 = vector.broadcast %cst_93 : f32 to vector<8x96xf32>
    %332 = arith.addf %331, %330 : vector<8x96xf32>
    %333 = arith.divf %331, %332 : vector<8x96xf32>
    %334 = vector.extract_strided_slice %327 {offsets = [0, 96], sizes = [8, 32], strides = [1, 1]} : vector<8x128xf32> to vector<8x32xf32>
    %335 = math.tanh %334 : vector<8x32xf32>
    %336 = vector.extract_strided_slice %333 {offsets = [0, 0], sizes = [8, 32], strides = [1, 1]} : vector<8x96xf32> to vector<8x32xf32>
    %337 = vector.extract_strided_slice %333 {offsets = [0, 32], sizes = [8, 32], strides = [1, 1]} : vector<8x96xf32> to vector<8x32xf32>
    %338 = vector.extract_strided_slice %333 {offsets = [0, 64], sizes = [8, 32], strides = [1, 1]} : vector<8x96xf32> to vector<8x32xf32>
    %339 = arith.mulf %337, %319 : vector<8x32xf32>
    %340 = arith.mulf %336, %335 : vector<8x32xf32>
    %341 = arith.addf %339, %340 : vector<8x32xf32>
    %342 = math.tanh %341 : vector<8x32xf32>
    %343 = arith.mulf %338, %342 : vector<8x32xf32>
    %344 = vector.extract_strided_slice %215 {offsets = [32, 0], sizes = [8, 32], strides = [1, 1]} : vector<64x32xf32> to vector<8x32xf32>
    %345 = arith.addf %343, %344 : vector<8x32xf32>
    %346 = arith.maximumf %324, %345 : vector<8x32xf32>
    %347 = vector.extract_strided_slice %230 {offsets = [40, 0], sizes = [8, 128], strides = [1, 1]} : vector<64x128xf32> to vector<8x128xf32>
    %cst_94 = arith.constant dense<0.000000e+00> : vector<8x128xf32>
    %348 = tpu.matmul %343, %219, %cst_94 {dimension_numbers = #tpu.dot_dimension_numbers<[1], [0], [0], [1], [0, 0, 1, 1], [], []>} : vector<8x32xf32>, vector<32x128xf32>, vector<8x128xf32> -> vector<8x128xf32>
    %349 = arith.addf %347, %348 : vector<8x128xf32>
    %350 = vector.extract_strided_slice %349 {offsets = [0, 0], sizes = [8, 96], strides = [1, 1]} : vector<8x128xf32> to vector<8x96xf32>
    %351 = arith.negf %350 : vector<8x96xf32>
    %352 = math.exp %351 : vector<8x96xf32>
    %cst_95 = arith.constant 1.000000e+00 : f32
    %353 = vector.broadcast %cst_95 : f32 to vector<8x96xf32>
    %354 = arith.addf %353, %352 : vector<8x96xf32>
    %355 = arith.divf %353, %354 : vector<8x96xf32>
    %356 = vector.extract_strided_slice %349 {offsets = [0, 96], sizes = [8, 32], strides = [1, 1]} : vector<8x128xf32> to vector<8x32xf32>
    %357 = math.tanh %356 : vector<8x32xf32>
    %358 = vector.extract_strided_slice %355 {offsets = [0, 0], sizes = [8, 32], strides = [1, 1]} : vector<8x96xf32> to vector<8x32xf32>
    %359 = vector.extract_strided_slice %355 {offsets = [0, 32], sizes = [8, 32], strides = [1, 1]} : vector<8x96xf32> to vector<8x32xf32>
    %360 = vector.extract_strided_slice %355 {offsets = [0, 64], sizes = [8, 32], strides = [1, 1]} : vector<8x96xf32> to vector<8x32xf32>
    %361 = arith.mulf %359, %341 : vector<8x32xf32>
    %362 = arith.mulf %358, %357 : vector<8x32xf32>
    %363 = arith.addf %361, %362 : vector<8x32xf32>
    %364 = math.tanh %363 : vector<8x32xf32>
    %365 = arith.mulf %360, %364 : vector<8x32xf32>
    %366 = vector.extract_strided_slice %215 {offsets = [40, 0], sizes = [8, 32], strides = [1, 1]} : vector<64x32xf32> to vector<8x32xf32>
    %367 = arith.addf %365, %366 : vector<8x32xf32>
    %368 = arith.maximumf %346, %367 : vector<8x32xf32>
    %369 = vector.extract_strided_slice %230 {offsets = [48, 0], sizes = [8, 128], strides = [1, 1]} : vector<64x128xf32> to vector<8x128xf32>
    %cst_96 = arith.constant dense<0.000000e+00> : vector<8x128xf32>
    %370 = tpu.matmul %365, %219, %cst_96 {dimension_numbers = #tpu.dot_dimension_numbers<[1], [0], [0], [1], [0, 0, 1, 1], [], []>} : vector<8x32xf32>, vector<32x128xf32>, vector<8x128xf32> -> vector<8x128xf32>
    %371 = arith.addf %369, %370 : vector<8x128xf32>
    %372 = vector.extract_strided_slice %371 {offsets = [0, 0], sizes = [8, 96], strides = [1, 1]} : vector<8x128xf32> to vector<8x96xf32>
    %373 = arith.negf %372 : vector<8x96xf32>
    %374 = math.exp %373 : vector<8x96xf32>
    %cst_97 = arith.constant 1.000000e+00 : f32
    %375 = vector.broadcast %cst_97 : f32 to vector<8x96xf32>
    %376 = arith.addf %375, %374 : vector<8x96xf32>
    %377 = arith.divf %375, %376 : vector<8x96xf32>
    %378 = vector.extract_strided_slice %371 {offsets = [0, 96], sizes = [8, 32], strides = [1, 1]} : vector<8x128xf32> to vector<8x32xf32>
    %379 = math.tanh %378 : vector<8x32xf32>
    %380 = vector.extract_strided_slice %377 {offsets = [0, 0], sizes = [8, 32], strides = [1, 1]} : vector<8x96xf32> to vector<8x32xf32>
    %381 = vector.extract_strided_slice %377 {offsets = [0, 32], sizes = [8, 32], strides = [1, 1]} : vector<8x96xf32> to vector<8x32xf32>
    %382 = vector.extract_strided_slice %377 {offsets = [0, 64], sizes = [8, 32], strides = [1, 1]} : vector<8x96xf32> to vector<8x32xf32>
    %383 = arith.mulf %381, %363 : vector<8x32xf32>
    %384 = arith.mulf %380, %379 : vector<8x32xf32>
    %385 = arith.addf %383, %384 : vector<8x32xf32>
    %386 = math.tanh %385 : vector<8x32xf32>
    %387 = arith.mulf %382, %386 : vector<8x32xf32>
    %388 = vector.extract_strided_slice %215 {offsets = [48, 0], sizes = [8, 32], strides = [1, 1]} : vector<64x32xf32> to vector<8x32xf32>
    %389 = arith.addf %387, %388 : vector<8x32xf32>
    %390 = arith.maximumf %368, %389 : vector<8x32xf32>
    %391 = vector.extract_strided_slice %230 {offsets = [56, 0], sizes = [8, 128], strides = [1, 1]} : vector<64x128xf32> to vector<8x128xf32>
    %cst_98 = arith.constant dense<0.000000e+00> : vector<8x128xf32>
    %392 = tpu.matmul %387, %219, %cst_98 {dimension_numbers = #tpu.dot_dimension_numbers<[1], [0], [0], [1], [0, 0, 1, 1], [], []>} : vector<8x32xf32>, vector<32x128xf32>, vector<8x128xf32> -> vector<8x128xf32>
    %393 = arith.addf %391, %392 : vector<8x128xf32>
    %394 = vector.extract_strided_slice %393 {offsets = [0, 0], sizes = [8, 96], strides = [1, 1]} : vector<8x128xf32> to vector<8x96xf32>
    %395 = arith.negf %394 : vector<8x96xf32>
    %396 = math.exp %395 : vector<8x96xf32>
    %cst_99 = arith.constant 1.000000e+00 : f32
    %397 = vector.broadcast %cst_99 : f32 to vector<8x96xf32>
    %398 = arith.addf %397, %396 : vector<8x96xf32>
    %399 = arith.divf %397, %398 : vector<8x96xf32>
    %400 = vector.extract_strided_slice %393 {offsets = [0, 96], sizes = [8, 32], strides = [1, 1]} : vector<8x128xf32> to vector<8x32xf32>
    %401 = math.tanh %400 : vector<8x32xf32>
    %402 = vector.extract_strided_slice %399 {offsets = [0, 0], sizes = [8, 32], strides = [1, 1]} : vector<8x96xf32> to vector<8x32xf32>
    %403 = vector.extract_strided_slice %399 {offsets = [0, 32], sizes = [8, 32], strides = [1, 1]} : vector<8x96xf32> to vector<8x32xf32>
    %404 = vector.extract_strided_slice %399 {offsets = [0, 64], sizes = [8, 32], strides = [1, 1]} : vector<8x96xf32> to vector<8x32xf32>
    %405 = arith.mulf %403, %385 : vector<8x32xf32>
    %406 = arith.mulf %402, %401 : vector<8x32xf32>
    %407 = arith.addf %405, %406 : vector<8x32xf32>
    %408 = math.tanh %407 : vector<8x32xf32>
    %409 = arith.mulf %404, %408 : vector<8x32xf32>
    %410 = vector.extract_strided_slice %215 {offsets = [56, 0], sizes = [8, 32], strides = [1, 1]} : vector<64x32xf32> to vector<8x32xf32>
    %411 = arith.addf %409, %410 : vector<8x32xf32>
    %412 = arith.maximumf %390, %411 : vector<8x32xf32>
    %413 = arith.mulf %227, %412 : vector<8x32xf32>
    %c1_100 = arith.constant 1 : index
    %c0_101 = arith.constant 0 : index
    %c0_102 = arith.constant 0 : index
    %414 = vector.load %arg11[%c1_100, %c0_101, %c0_102] : memref<2x32x128xf32, #tpu.memory_space<vmem>>, vector<1x32x128xf32>
    %415 = vector.shape_cast %414 : vector<1x32x128xf32> to vector<32x128xf32>
    %cst_103 = arith.constant dense<0.000000e+00> : vector<8x128xf32>
    %416 = tpu.matmul %413, %415, %cst_103 {dimension_numbers = #tpu.dot_dimension_numbers<[1], [0], [0], [1], [0, 0, 1, 1], [], []>} : vector<8x32xf32>, vector<32x128xf32>, vector<8x128xf32> -> vector<8x128xf32>
    %417 = arith.addf %211, %416 : vector<8x128xf32>
    %cst_104 = arith.constant 0.000000e+00 : f32
    %418 = vector.broadcast %cst_104 : f32 to vector<8x128xf32>
    %419 = arith.maximumf %417, %418 : vector<8x128xf32>
    %c0_105 = arith.constant 0 : index
    %c0_106 = arith.constant 0 : index
    %420 = vector.load %arg13[%c0_105, %c0_106] : memref<128x1xf32, #tpu.memory_space<vmem>>, vector<128x1xf32>
    %cst_107 = arith.constant dense<0.000000e+00> : vector<8x1xf32>
    %421 = tpu.matmul %419, %420, %cst_107 {dimension_numbers = #tpu.dot_dimension_numbers<[1], [0], [0], [1], [0, 0, 1, 1], [], []>} : vector<8x128xf32>, vector<128x1xf32>, vector<8x1xf32> -> vector<8x1xf32>
    %c0_108 = arith.constant 0 : index
    %c0_109 = arith.constant 0 : index
    %422 = vector.load %arg14[%c0_108, %c0_109] : memref<1x1xf32, #tpu.memory_space<vmem>>, vector<1x1xf32>
    %423 = vector.broadcast %422 : vector<1x1xf32> to vector<8x1xf32>
    %424 = arith.addf %421, %423 : vector<8x1xf32>
    %c0_110 = arith.constant 0 : index
    %c0_111 = arith.constant 0 : index
    %425 = vector.load %arg15[%c0_110, %c0_111] : memref<8x1xf32, #tpu.memory_space<vmem>>, vector<8x1xf32>
    tpu.vector_store %arg15[%c0_110, %c0_111], %424 {strides = array<i32>} : memref<8x1xf32, #tpu.memory_space<vmem>>, vector<8x1xf32>,
    return
  }
}

</mosaic_0001>

<llo_original>
// kernel: match_model_forward.1
$region0: #{match_model_forward.1}
  #allocation0 [shape = 'u32[]', space=smem, size = 0x4, offset = 0x4, fixed_abs, tag = 'smem constant byte address 0x4 - core index']
  #allocation1 [shape = 'u32[144,128]{1,0:T(1,128)}', space=vmem, size = 0x12000, scoped, tag = 'internal scratch']
  #allocation2 [shape = 'f32[1,1]{1,0:T(1,128)S(1)}', space=vmem, size = 0x200, scoped, tag = 'scoped memory for match_model_forward.1']
  %s0 = inlined_call_operand.vmem [shape: f32[2,64,32], index: 0, kind: input, shape index: {}]
  %s1 = inlined_call_operand.vmem [shape: f32[2,64,32], index: 1, kind: input, shape index: {}]
  %s2 = inlined_call_operand.vmem [shape: f32[2,8,32], index: 2, kind: input, shape index: {}]
  %s3 = inlined_call_operand.vmem [shape: f32[8,96], index: 3, kind: input, shape index: {}]
  %s4 = inlined_call_operand.vmem [shape: f32[2,32,32], index: 4, kind: input, shape index: {}]
  %s5 = inlined_call_operand.vmem [shape: f32[2,32,128], index: 5, kind: input, shape index: {}]
  %s6 = inlined_call_operand.vmem [shape: f32[2,32,128], index: 6, kind: input, shape index: {}]
  %s7 = inlined_call_operand.vmem [shape: f32[2,1,128], index: 7, kind: input, shape index: {}]
  %s8 = inlined_call_operand.vmem [shape: f32[2,8,32], index: 8, kind: input, shape index: {}]
  %s9 = inlined_call_operand.vmem [shape: f32[2,8,32], index: 9, kind: input, shape index: {}]
  %s10 = inlined_call_operand.vmem [shape: f32[96,128], index: 10, kind: input, shape index: {}]
  %s11 = inlined_call_operand.vmem [shape: f32[2,32,128], index: 11, kind: input, shape index: {}]
  %s12 = inlined_call_operand.vmem [shape: f32[1,128], index: 12, kind: input, shape index: {}]
  %s13 = inlined_call_operand.vmem [shape: f32[128,1], index: 13, kind: input, shape index: {}]
  %s14 = inlined_call_operand.<no memory space> [shape: f32[1,1], index: 14, kind: input, shape index: {}]
  %s15 = inlined_call_operand.vmem [shape: f32[8,1], index: 15, kind: output, shape index: {}]
  %s16 = sld [smem:[#allocation0]]
  $region70: #{match_model_forward.1} parent=0
    _
  %s18 = ssub.s32 1, %s16
  %s19 = scalar_select 0, %s18, %s16
  %v20 = vstv %s14
  %21 = vst [vmem:[#allocation2] sm:$0x1] %v20
  // Predicated region
  $region2: #{match_model_forward.1} parent=0 // pred_check
    _
  $region3: #{match_model_forward.1} parent=0 // pred_check_branch
    %23 = sbr.rel (0) target = $region5
  $region4: #{match_model_forward.1} parent=0 // pred_region
    _
  $region5: #{match_model_forward.1} parent=0 // pred_fallthru
    _
  // Predicated region
  $region6: #{match_model_forward.1} parent=0 // pred_check
    _
  $region7: #{match_model_forward.1} parent=0 // pred_check_branch
    %25 = sbr.rel (0) target = $region9
  $region8: #{match_model_forward.1} parent=0 // pred_region
    _
  $region9: #{match_model_forward.1} parent=0 // pred_fallthru
    _
  // Predicated region
  $region10: #{match_model_forward.1} parent=0 // pred_check
    _
  $region11: #{match_model_forward.1} parent=0 // pred_check_branch
    %27 = sbr.rel (0) target = $region13
  $region12: #{match_model_forward.1} parent=0 // pred_region
    _
  $region13: #{match_model_forward.1} parent=0 // pred_fallthru
    _
  // Predicated region
  $region14: #{match_model_forward.1} parent=0 // pred_check
    _
  $region15: #{match_model_forward.1} parent=0 // pred_check_branch
    %29 = sbr.rel (0) target = $region17
  $region16: #{match_model_forward.1} parent=0 // pred_region
    _
  $region17: #{match_model_forward.1} parent=0 // pred_fallthru
    _
  // Predicated region
  $region18: #{match_model_forward.1} parent=0 // pred_check
    _
  $region19: #{match_model_forward.1} parent=0 // pred_check_branch
    %31 = sbr.rel (0) target = $region21
  $region20: #{match_model_forward.1} parent=0 // pred_region
    _
  $region21: #{match_model_forward.1} parent=0 // pred_fallthru
    _
  // Predicated region
  $region22: #{match_model_forward.1} parent=0 // pred_check
    _
  $region23: #{match_model_forward.1} parent=0 // pred_check_branch
    %33 = sbr.rel (0) target = $region25
  $region24: #{match_model_forward.1} parent=0 // pred_region
    _
  $region25: #{match_model_forward.1} parent=0 // pred_fallthru
    _
  // Predicated region
  $region26: #{match_model_forward.1} parent=0 // pred_check
    _
  $region27: #{match_model_forward.1} parent=0 // pred_check_branch
    %35 = sbr.rel (0) target = $region29
  $region28: #{match_model_forward.1} parent=0 // pred_region
    _
  $region29: #{match_model_forward.1} parent=0 // pred_fallthru
    _
  // Predicated region
  $region30: #{match_model_forward.1} parent=0 // pred_check
    _
  $region31: #{match_model_forward.1} parent=0 // pred_check_branch
    %37 = sbr.rel (0) target = $region33
  $region32: #{match_model_forward.1} parent=0 // pred_region
    _
  $region33: #{match_model_forward.1} parent=0 // pred_fallthru
    _
  // Predicated region
  $region34: #{match_model_forward.1} parent=0 // pred_check
    _
  $region35: #{match_model_forward.1} parent=0 // pred_check_branch
    %39 = sbr.rel (0) target = $region37
  $region36: #{match_model_forward.1} parent=0 // pred_region
    _
  $region37: #{match_model_forward.1} parent=0 // pred_fallthru
    _
  // Predicated region
  $region38: #{match_model_forward.1} parent=0 // pred_check
    _
  $region39: #{match_model_forward.1} parent=0 // pred_check_branch
    %41 = sbr.rel (0) target = $region41
  $region40: #{match_model_forward.1} parent=0 // pred_region
    _
  $region41: #{match_model_forward.1} parent=0 // pred_fallthru
    _
  // Predicated region
  $region42: #{match_model_forward.1} parent=0 // pred_check
    _
  $region43: #{match_model_forward.1} parent=0 // pred_check_branch
    %43 = sbr.rel (0) target = $region45
  $region44: #{match_model_forward.1} parent=0 // pred_region
    _
  $region45: #{match_model_forward.1} parent=0 // pred_fallthru
    _
  // Predicated region
  $region46: #{match_model_forward.1} parent=0 // pred_check
    _
  $region47: #{match_model_forward.1} parent=0 // pred_check_branch
    %45 = sbr.rel (0) target = $region49
  $region48: #{match_model_forward.1} parent=0 // pred_region
    _
  $region49: #{match_model_forward.1} parent=0 // pred_fallthru
    _
  // Predicated region
  $region50: #{match_model_forward.1} parent=0 // pred_check
    _
  $region51: #{match_model_forward.1} parent=0 // pred_check_branch
    %47 = sbr.rel (0) target = $region53
  $region52: #{match_model_forward.1} parent=0 // pred_region
    _
  $region53: #{match_model_forward.1} parent=0 // pred_fallthru
    _
  // Predicated region
  $region54: #{match_model_forward.1} parent=0 // pred_check
    _
  $region55: #{match_model_forward.1} parent=0 // pred_check_branch
    %49 = sbr.rel (0) target = $region57
  $region56: #{match_model_forward.1} parent=0 // pred_region
    _
  $region57: #{match_model_forward.1} parent=0 // pred_fallthru
    _
  // Predicated region
  $region58: #{match_model_forward.1} parent=0 // pred_check
    _
  $region59: #{match_model_forward.1} parent=0 // pred_check_branch
    %51 = sbr.rel (0) target = $region61
  $region60: #{match_model_forward.1} parent=0 // pred_region
    _
  $region61: #{match_model_forward.1} parent=0 // pred_fallthru
    _
  %v52 = vld [vmem:[%s3] sm:$0xff]
  %v53 = vld [vmem:[%s10] sm:$0xff]
  %v54 = vld [vmem:[%s10 + $0x8] sm:$0xff]
  %v55 = vld [vmem:[%s10 + $0x10] sm:$0xff]
  %v56 = vld [vmem:[%s10 + $0x18] sm:$0xff]
  %v57 = vld [vmem:[%s10 + $0x20] sm:$0xff]
  %v58 = vld [vmem:[%s10 + $0x28] sm:$0xff]
  %v59 = vld [vmem:[%s10 + $0x30] sm:$0xff]
  %v60 = vld [vmem:[%s10 + $0x38] sm:$0xff]
  %v61 = vld [vmem:[%s10 + $0x40] sm:$0xff]
  %v62 = vld [vmem:[%s10 + $0x48] sm:$0xff]
  %v63 = vld [vmem:[%s10 + $0x50] sm:$0xff]
  %v64 = vld [vmem:[%s10 + $0x58] sm:$0xff]
  %v65 = vld [vmem:[%s12] sm:$0x1]
  %v67 = vlaneseq
  %v68 = vshrl.u32 %v67, 7
  %v69 = vsub.s32 0, %v68
  %v70 = vrot.slane %v65, %v69
  %vm72 = vcmask 785408
  %v74 = vsel %vm72, %v52, 0
  %76 = vmatprep.subr.mxu0 0.0
  %77 = vmatpush1.msra.mxu0 %v53
  %78 = vmatprep.subr.mxu0 0.0
  %79 = vmatpush1.msra.mxu0 %v54
  %80 = vmatprep.subr.mxu0 0.0
  %81 = vmatpush1.msra.mxu0 %v55
  %82 = vmatprep.subr.mxu0 0.0
  %83 = vmatpush1.msra.mxu0 %v56
  %84 = vmatprep.subr.mxu0 0.0
  %85 = vmatpush1.msra.mxu0 %v57
  %86 = vmatprep.subr.mxu0 0.0
  %87 = vmatpush1.msra.mxu0 %v58
  %88 = vmatprep.subr.mxu0 0.0
  %89 = vmatpush1.msra.mxu0 %v59
  %90 = vmatprep.subr.mxu0 0.0
  %91 = vmatpush1.msra.mxu0 %v60
  %92 = vmatprep.subr.mxu0 0.0
  %93 = vmatpush1.msra.mxu0 %v61
  %94 = vmatprep.subr.mxu0 0.0
  %95 = vmatpush1.msra.mxu0 %v62
  %96 = vmatprep.subr.mxu0 0.0
  %97 = vmatpush1.msra.mxu0 %v63
  %98 = vmatprep.subr.mxu0 0.0
  %99 = vmatpush1.msra.mxu0 %v64
  %100 = vmatprep.subr.mxu0 0.0
  %101 = vmatpush1.msra.mxu0 0.0
  %102 = vmatprep.subr.mxu0 0.0
  %103 = vmatpush1.msra.mxu0 0.0
  %104 = vmatprep.subr.mxu0 0.0
  %105 = vmatpush1.msra.mxu0 0.0
  %106 = vmatprep.subr.mxu0 0.0
  %107 = vmatpush1.msra.mxu0 0.0
  %108 = vmatprep.subr.mxu0 0.0
  %109 = vmatpush1.msra.mxu0 0.0
  %110 = vmatprep.subr.mxu0 0.0
  %111 = vmatpush1.msra.mxu0 0.0
  %112 = vmatprep.subr.mxu0 0.0
  %113 = vmatpush1.msra.mxu0 0.0
  %114 = vmatprep.subr.mxu0 0.0
  %115 = vmatpush1.msra.mxu0 0.0
  %116 = vmatprep.subr.mxu0 0.0
  %117 = vmatpush1.msra.mxu0 0.0
  %118 = vmatprep.subr.mxu0 0.0
  %119 = vmatpush1.msra.mxu0 0.0
  %120 = vmatprep.subr.mxu0 0.0
  %121 = vmatpush1.msra.mxu0 0.0
  %122 = vmatprep.subr.mxu0 0.0
  %123 = vmatpush1.msra.mxu0 0.0
  %124 = vmatprep.subr.mxu0 0.0
  %125 = vmatpush1.msra.mxu0 0.0
  %126 = vmatprep.subr.mxu0 0.0
  %127 = vmatpush1.msra.mxu0 0.0
  %128 = vmatprep.subr.mxu0 0.0
  %129 = vmatpush1.msra.mxu0 0.0
  %130 = vmatprep.subr.mxu0 0.0
  %131 = vmatpush1.msra.mxu0 0.0
  %132 = vmatprep.subr.mxu0 0.0
  %133 = vmatpush1.msra.mxu0 0.0
  %134 = vmatprep.subr.mxu0 0.0
  %135 = vmatpush1.msra.mxu0 0.0
  %136 = vmatprep.subr.mxu0 0.0
  %137 = vmatpush1.msra.mxu0 0.0
  %138 = vmatprep.subr.mxu0 0.0
  %139 = vmatpush1.msra.mxu0 0.0
  %140 = vmatprep.mubr.f32.mxu0 0.0
  %141 = vmatmul.mubr.f32.gmra.mrb[0].mxu0 %v74
  %v142 = vpop.f32.mrb[0].mxu0
  %v143 = vadd.f32 %v70, %v142
  %v144 = vpop.f32.mrb[0].mxu0
  %145 = vdwg.mxu0
  %v146 = vld [vmem:[%s0] sm:$0xff]
  %v147 = vld [vmem:[%s0 + $0x8] sm:$0xff]
  %v148 = vld [vmem:[%s0 + $0x10] sm:$0xff]
  %v149 = vld [vmem:[%s0 + $0x18] sm:$0xff]
  %v150 = vld [vmem:[%s0 + $0x20] sm:$0xff]
  %v151 = vld [vmem:[%s0 + $0x28] sm:$0xff]
  %v152 = vld [vmem:[%s0 + $0x30] sm:$0xff]
  %v153 = vld [vmem:[%s0 + $0x38] sm:$0xff]
  %v154 = vld [vmem:[%s1] sm:$0xff]
  %v155 = vld [vmem:[%s1 + $0x8] sm:$0xff]
  %v156 = vld [vmem:[%s1 + $0x10] sm:$0xff]
  %v157 = vld [vmem:[%s1 + $0x18] sm:$0xff]
  %v158 = vld [vmem:[%s1 + $0x20] sm:$0xff]
  %v159 = vld [vmem:[%s1 + $0x28] sm:$0xff]
  %v160 = vld [vmem:[%s1 + $0x30] sm:$0xff]
  %v161 = vld [vmem:[%s1 + $0x38] sm:$0xff]
  %v162 = vld [vmem:[%s5] sm:$0xff]
  %v163 = vld [vmem:[%s5 + $0x8] sm:$0xff]
  %v164 = vld [vmem:[%s5 + $0x10] sm:$0xff]
  %v165 = vld [vmem:[%s5 + $0x18] sm:$0xff]
  %v166 = vld [vmem:[%s6] sm:$0xff]
  %v167 = vld [vmem:[%s6 + $0x8] sm:$0xff]
  %v168 = vld [vmem:[%s6 + $0x10] sm:$0xff]
  %v169 = vld [vmem:[%s6 + $0x18] sm:$0xff]
  %v170 = vld [vmem:[%s7] sm:$0x1]
  %v171 = vld [vmem:[%s4] sm:$0xff]
  %v172 = vld [vmem:[%s4 + $0x8] sm:$0xff]
  %v173 = vld [vmem:[%s4 + $0x10] sm:$0xff]
  %v174 = vld [vmem:[%s4 + $0x18] sm:$0xff]
  %vm175 = vcmask 261120
  %v177 = vsel %vm175, %v146, 0
  %179 = vmatprep.subr.mxu0 0.0
  %180 = vmatpush1.msra.mxu0 %v171
  %181 = vmatprep.subr.mxu0 0.0
  %182 = vmatpush1.msra.mxu0 %v172
  %183 = vmatprep.subr.mxu0 0.0
  %184 = vmatpush1.msra.mxu0 %v173
  %185 = vmatprep.subr.mxu0 0.0
  %186 = vmatpush1.msra.mxu0 %v174
  %187 = vmatprep.subr.mxu0 0.0
  %188 = vmatpush1.msra.mxu0 0.0
  %189 = vmatprep.subr.mxu0 0.0
  %190 = vmatpush1.msra.mxu0 0.0
  %191 = vmatprep.subr.mxu0 0.0
  %192 = vmatpush1.msra.mxu0 0.0
  %193 = vmatprep.subr.mxu0 0.0
  %194 = vmatpush1.msra.mxu0 0.0
  %195 = vmatprep.subr.mxu0 0.0
  %196 = vmatpush1.msra.mxu0 0.0
  %197 = vmatprep.subr.mxu0 0.0
  %198 = vmatpush1.msra.mxu0 0.0
  %199 = vmatprep.subr.mxu0 0.0
  %200 = vmatpush1.msra.mxu0 0.0
  %201 = vmatprep.subr.mxu0 0.0
  %202 = vmatpush1.msra.mxu0 0.0
  %203 = vmatprep.subr.mxu0 0.0
  %204 = vmatpush1.msra.mxu0 0.0
  %205 = vmatprep.subr.mxu0 0.0
  %206 = vmatpush1.msra.mxu0 0.0
  %207 = vmatprep.subr.mxu0 0.0
  %208 = vmatpush1.msra.mxu0 0.0
  %209 = vmatprep.subr.mxu0 0.0
  %210 = vmatpush1.msra.mxu0 0.0
  %211 = vmatprep.subr.mxu0 0.0
  %212 = vmatpush1.msra.mxu0 0.0
  %213 = vmatprep.subr.mxu0 0.0
  %214 = vmatpush1.msra.mxu0 0.0
  %215 = vmatprep.subr.mxu0 0.0
  %216 = vmatpush1.msra.mxu0 0.0
  %217 = vmatprep.subr.mxu0 0.0
  %218 = vmatpush1.msra.mxu0 0.0
  %219 = vmatprep.subr.mxu0 0.0
  %220 = vmatpush1.msra.mxu0 0.0
  %221 = vmatprep.subr.mxu0 0.0
  %222 = vmatpush1.msra.mxu0 0.0
  %223 = vmatprep.subr.mxu0 0.0
  %224 = vmatpush1.msra.mxu0 0.0
  %225 = vmatprep.subr.mxu0 0.0
  %226 = vmatpush1.msra.mxu0 0.0
  %227 = vmatprep.subr.mxu0 0.0
  %228 = vmatpush1.msra.mxu0 0.0
  %229 = vmatprep.subr.mxu0 0.0
  %230 = vmatpush1.msra.mxu0 0.0
  %231 = vmatprep.subr.mxu0 0.0
  %232 = vmatpush1.msra.mxu0 0.0
  %233 = vmatprep.subr.mxu0 0.0
  %234 = vmatpush1.msra.mxu0 0.0
  %235 = vmatprep.subr.mxu0 0.0
  %236 = vmatpush1.msra.mxu0 0.0
  %237 = vmatprep.subr.mxu0 0.0
  %238 = vmatpush1.msra.mxu0 0.0
  %239 = vmatprep.subr.mxu0 0.0
  %240 = vmatpush1.msra.mxu0 0.0
  %241 = vmatprep.subr.mxu0 0.0
  %242 = vmatpush1.msra.mxu0 0.0
  %243 = vmatprep.mubr.f32.mxu0 0.0
  %244 = vmatmul.mubr.f32.gmra.mrb[0].mxu0 %v177
  %v245 = vpop.f32.mrb[0].mxu0
  %v246 = vadd.f32 0.0, %v245
  %v247 = vpop.f32.mrb[0].mxu0
  %248 = vdwg.mxu0
  %v249 = vmax.f32 %v246, 0.0
  %v251 = vlaneseq
  %v252 = vshrl.u32 %v251, 7
  %v253 = vsub.s32 0, %v252
  %v254 = vrot.slane %v170, %v253
  %v257 = vsel %vm175, %v147, 0
  %v260 = vsel %vm175, %v148, 0
  %v263 = vsel %vm175, %v149, 0
  %v266 = vsel %vm175, %v150, 0
  %v269 = vsel %vm175, %v151, 0
  %v272 = vsel %vm175, %v152, 0
  %v275 = vsel %vm175, %v153, 0
  %277 = vmatprep.subr.mxu0 0.0
  %278 = vmatpush1.msra.mxu0 %v162
  %279 = vmatprep.subr.mxu0 0.0
  %280 = vmatpush1.msra.mxu0 %v163
  %281 = vmatprep.subr.mxu0 0.0
  %282 = vmatpush1.msra.mxu0 %v164
  %283 = vmatprep.subr.mxu0 0.0
  %284 = vmatpush1.msra.mxu0 %v165
  %285 = vmatprep.subr.mxu0 0.0
  %286 = vmatpush1.msra.mxu0 0.0
  %287 = vmatprep.subr.mxu0 0.0
  %288 = vmatpush1.msra.mxu0 0.0
  %289 = vmatprep.subr.mxu0 0.0
  %290 = vmatpush1.msra.mxu0 0.0
  %291 = vmatprep.subr.mxu0 0.0
  %292 = vmatpush1.msra.mxu0 0.0
  %293 = vmatprep.subr.mxu0 0.0
  %294 = vmatpush1.msra.mxu0 0.0
  %295 = vmatprep.subr.mxu0 0.0
  %296 = vmatpush1.msra.mxu0 0.0
  %297 = vmatprep.subr.mxu0 0.0
  %298 = vmatpush1.msra.mxu0 0.0
  %299 = vmatprep.subr.mxu0 0.0
  %300 = vmatpush1.msra.mxu0 0.0
  %301 = vmatprep.subr.mxu0 0.0
  %302 = vmatpush1.msra.mxu0 0.0
  %303 = vmatprep.subr.mxu0 0.0
  %304 = vmatpush1.msra.mxu0 0.0
  %305 = vmatprep.subr.mxu0 0.0
  %306 = vmatpush1.msra.mxu0 0.0
  %307 = vmatprep.subr.mxu0 0.0
  %308 = vmatpush1.msra.mxu0 0.0
  %309 = vmatprep.subr.mxu0 0.0
  %310 = vmatpush1.msra.mxu0 0.0
  %311 = vmatprep.subr.mxu0 0.0
  %312 = vmatpush1.msra.mxu0 0.0
  %313 = vmatprep.subr.mxu0 0.0
  %314 = vmatpush1.msra.mxu0 0.0
  %315 = vmatprep.subr.mxu0 0.0
  %316 = vmatpush1.msra.mxu0 0.0
  %317 = vmatprep.subr.mxu0 0.0
  %318 = vmatpush1.msra.mxu0 0.0
  %319 = vmatprep.subr.mxu0 0.0
  %320 = vmatpush1.msra.mxu0 0.0
  %321 = vmatprep.subr.mxu0 0.0
  %322 = vmatpush1.msra.mxu0 0.0
  %323 = vmatprep.subr.mxu0 0.0
  %324 = vmatpush1.msra.mxu0 0.0
  %325 = vmatprep.subr.mxu0 0.0
  %326 = vmatpush1.msra.mxu0 0.0
  %327 = vmatprep.subr.mxu0 0.0
  %328 = vmatpush1.msra.mxu0 0.0
  %329 = vmatprep.subr.mxu0 0.0
  %330 = vmatpush1.msra.mxu0 0.0
  %331 = vmatprep.subr.mxu0 0.0
  %332 = vmatpush1.msra.mxu0 0.0
  %333 = vmatprep.subr.mxu0 0.0
  %334 = vmatpush1.msra.mxu0 0.0
  %335 = vmatprep.subr.mxu0 0.0
  %336 = vmatpush1.msra.mxu0 0.0
  %337 = vmatprep.subr.mxu0 0.0
  %338 = vmatpush1.msra.mxu0 0.0
  %339 = vmatprep.subr.mxu0 0.0
  %340 = vmatpush1.msra.mxu0 0.0
  %341 = vmatprep.mubr.f32.mxu0 0.0
  %342 = vmatmul.mubr.f32.gmra.mrb[0].mxu0 %v177
  %v343 = vpop.f32.mrb[0].mxu0
  %v344 = vadd.f32 %v254, %v343
  %v345 = vpop.f32.mrb[0].mxu0
  %346 = vmatprep.mubr.f32.mxu0 0.0
  %347 = vmatmul.mubr.f32.gmra.mrb[0].mxu0 %v257
  %v348 = vpop.f32.mrb[0].mxu0
  %v349 = vadd.f32 %v254, %v348
  %v350 = vpop.f32.mrb[0].mxu0
  %351 = vmatprep.mubr.f32.mxu0 0.0
  %352 = vmatmul.mubr.f32.gmra.mrb[0].mxu0 %v260
  %v353 = vpop.f32.mrb[0].mxu0
  %v354 = vadd.f32 %v254, %v353
  %v355 = vpop.f32.mrb[0].mxu0
  %356 = vmatprep.mubr.f32.mxu0 0.0
  %357 = vmatmul.mubr.f32.gmra.mrb[0].mxu0 %v263
  %v358 = vpop.f32.mrb[0].mxu0
  %v359 = vadd.f32 %v254, %v358
  %v360 = vpop.f32.mrb[0].mxu0
  %361 = vmatprep.mubr.f32.mxu0 0.0
  %362 = vmatmul.mubr.f32.gmra.mrb[0].mxu0 %v266
  %v363 = vpop.f32.mrb[0].mxu0
  %v364 = vadd.f32 %v254, %v363
  %v365 = vpop.f32.mrb[0].mxu0
  %366 = vmatprep.mubr.f32.mxu0 0.0
  %367 = vmatmul.mubr.f32.gmra.mrb[0].mxu0 %v269
  %v368 = vpop.f32.mrb[0].mxu0
  %v369 = vadd.f32 %v254, %v368
  %v370 = vpop.f32.mrb[0].mxu0
  %371 = vmatprep.mubr.f32.mxu0 0.0
  %372 = vmatmul.mubr.f32.gmra.mrb[0].mxu0 %v272
  %v373 = vpop.f32.mrb[0].mxu0
  %v374 = vadd.f32 %v254, %v373
  %v375 = vpop.f32.mrb[0].mxu0
  %376 = vmatprep.mubr.f32.mxu0 0.0
  %377 = vmatmul.mubr.f32.gmra.mrb[0].mxu0 %v275
  %v378 = vpop.f32.mrb[0].mxu0
  %v379 = vadd.f32 %v254, %v378
  %v380 = vpop.f32.mrb[0].mxu0
  %381 = vdwg.mxu0
  %v382 = vld [vmem:[%s8] sm:$0xff]
  %v383 = vld [vmem:[%s9] sm:$0xff]
  %v384 = vld [vmem:[%s2] sm:$0xff]
  %v386 = vsel %vm175, %v382, 0
  %388 = vmatprep.subr.mxu0 0.0
  %389 = vmatpush1.msra.mxu0 %v166
  %390 = vmatprep.subr.mxu0 0.0
  %391 = vmatpush1.msra.mxu0 %v167
  %392 = vmatprep.subr.mxu0 0.0
  %393 = vmatpush1.msra.mxu0 %v168
  %394 = vmatprep.subr.mxu0 0.0
  %395 = vmatpush1.msra.mxu0 %v169
  %396 = vmatprep.subr.mxu0 0.0
  %397 = vmatpush1.msra.mxu0 0.0
  %398 = vmatprep.subr.mxu0 0.0
  %399 = vmatpush1.msra.mxu0 0.0
  %400 = vmatprep.subr.mxu0 0.0
  %401 = vmatpush1.msra.mxu0 0.0
  %402 = vmatprep.subr.mxu0 0.0
  %403 = vmatpush1.msra.mxu0 0.0
  %404 = vmatprep.subr.mxu0 0.0
  %405 = vmatpush1.msra.mxu0 0.0
  %406 = vmatprep.subr.mxu0 0.0
  %407 = vmatpush1.msra.mxu0 0.0
  %408 = vmatprep.subr.mxu0 0.0
  %409 = vmatpush1.msra.mxu0 0.0
  %410 = vmatprep.subr.mxu0 0.0
  %411 = vmatpush1.msra.mxu0 0.0
  %412 = vmatprep.subr.mxu0 0.0
  %413 = vmatpush1.msra.mxu0 0.0
  %414 = vmatprep.subr.mxu0 0.0
  %415 = vmatpush1.msra.mxu0 0.0
  %416 = vmatprep.subr.mxu0 0.0
  %417 = vmatpush1.msra.mxu0 0.0
  %418 = vmatprep.subr.mxu0 0.0
  %419 = vmatpush1.msra.mxu0 0.0
  %420 = vmatprep.subr.mxu0 0.0
  %421 = vmatpush1.msra.mxu0 0.0
  %422 = vmatprep.subr.mxu0 0.0
  %423 = vmatpush1.msra.mxu0 0.0
  %424 = vmatprep.subr.mxu0 0.0
  %425 = vmatpush1.msra.mxu0 0.0
  %426 = vmatprep.subr.mxu0 0.0
  %427 = vmatpush1.msra.mxu0 0.0
  %428 = vmatprep.subr.mxu0 0.0
  %429 = vmatpush1.msra.mxu0 0.0
  %430 = vmatprep.subr.mxu0 0.0
  %431 = vmatpush1.msra.mxu0 0.0
  %432 = vmatprep.subr.mxu0 0.0
  %433 = vmatpush1.msra.mxu0 0.0
  %434 = vmatprep.subr.mxu0 0.0
  %435 = vmatpush1.msra.mxu0 0.0
  %436 = vmatprep.subr.mxu0 0.0
  %437 = vmatpush1.msra.mxu0 0.0
  %438 = vmatprep.subr.mxu0 0.0
  %439 = vmatpush1.msra.mxu0 0.0
  %440 = vmatprep.subr.mxu0 0.0
  %441 = vmatpush1.msra.mxu0 0.0
  %442 = vmatprep.subr.mxu0 0.0
  %443 = vmatpush1.msra.mxu0 0.0
  %444 = vmatprep.subr.mxu0 0.0
  %445 = vmatpush1.msra.mxu0 0.0
  %446 = vmatprep.subr.mxu0 0.0
  %447 = vmatpush1.msra.mxu0 0.0
  %448 = vmatprep.subr.mxu0 0.0
  %449 = vmatpush1.msra.mxu0 0.0
  %450 = vmatprep.subr.mxu0 0.0
  %451 = vmatpush1.msra.mxu0 0.0
  %452 = vmatprep.mubr.f32.mxu0 0.0
  %453 = vmatmul.mubr.f32.gmra.mrb[0].mxu0 %v386
  %v454 = vpop.f32.mrb[0].mxu0
  %v455 = vadd.f32 0.0, %v454
  %v456 = vpop.f32.mrb[0].mxu0
  %457 = vdwg.mxu0
  %v458 = vadd.f32 %v344, %v455
  %v459 = vxor.u32 %v458, 2147483648
  %v460 = vmul.f32 %v459, 1.442695
  %v461 = vpow.pop %v460
  %v462 = vadd.f32 %v461, 1.0
  %v463 = vrcp.pop %v462
  %v464 = vmul.f32 1.0, %v463
  %v465 = vtanh.pop %v458
  %467 = vrot.lane.b32.xlu0 %v383, 32
  %v468 = vpop.permute.xlu0 %467
  %v470 = vmul.f32 %v464, %v468
  %472 = vrot.lane.b32.xlu0 %v465, 32
  %v473 = vpop.permute.xlu0 %472
  %v475 = vmul.f32 %v464, %v473
  %477 = vrot.lane.b32.xlu0 %v475, 32
  %v478 = vpop.permute.xlu0 %477
  %v480 = vadd.f32 %v470, %v478
  %v481 = vtanh.pop %v480
  %483 = vrot.lane.b32.xlu0 %v481, 32
  %v484 = vpop.permute.xlu0 %483
  %v486 = vmul.f32 %v464, %v484
  %488 = vrot.lane.b32.xlu0 %v154, 64
  %v489 = vpop.permute.xlu0 %488
  %v491 = vadd.f32 %v486, %v489
  %493 = vrot.lane.b32.xlu0 %v491, 64
  %v494 = vpop.permute.xlu0 %493
  %v496 = vmax.f32 %v384, %v494
  %498 = vrot.lane.b32.xlu0 %v486, 64
  %v499 = vpop.permute.xlu0 %498
  %v500 = vsel %vm175, %v499, 0
  %502 = vmatprep.subr.mxu0 0.0
  %503 = vmatpush1.msra.mxu0 %v166
  %504 = vmatprep.subr.mxu0 0.0
  %505 = vmatpush1.msra.mxu0 %v167
  %506 = vmatprep.subr.mxu0 0.0
  %507 = vmatpush1.msra.mxu0 %v168
  %508 = vmatprep.subr.mxu0 0.0
  %509 = vmatpush1.msra.mxu0 %v169
  %510 = vmatprep.subr.mxu0 0.0
  %511 = vmatpush1.msra.mxu0 0.0
  %512 = vmatprep.subr.mxu0 0.0
  %513 = vmatpush1.msra.mxu0 0.0
  %514 = vmatprep.subr.mxu0 0.0
  %515 = vmatpush1.msra.mxu0 0.0
  %516 = vmatprep.subr.mxu0 0.0
  %517 = vmatpush1.msra.mxu0 0.0
  %518 = vmatprep.subr.mxu0 0.0
  %519 = vmatpush1.msra.mxu0 0.0
  %520 = vmatprep.subr.mxu0 0.0
  %521 = vmatpush1.msra.mxu0 0.0
  %522 = vmatprep.subr.mxu0 0.0
  %523 = vmatpush1.msra.mxu0 0.0
  %524 = vmatprep.subr.mxu0 0.0
  %525 = vmatpush1.msra.mxu0 0.0
  %526 = vmatprep.subr.mxu0 0.0
  %527 = vmatpush1.msra.mxu0 0.0
  %528 = vmatprep.subr.mxu0 0.0
  %529 = vmatpush1.msra.mxu0 0.0
  %530 = vmatprep.subr.mxu0 0.0
  %531 = vmatpush1.msra.mxu0 0.0
  %532 = vmatprep.subr.mxu0 0.0
  %533 = vmatpush1.msra.mxu0 0.0
  %534 = vmatprep.subr.mxu0 0.0
  %535 = vmatpush1.msra.mxu0 0.0
  %536 = vmatprep.subr.mxu0 0.0
  %537 = vmatpush1.msra.mxu0 0.0
  %538 = vmatprep.subr.mxu0 0.0
  %539 = vmatpush1.msra.mxu0 0.0
  %540 = vmatprep.subr.mxu0 0.0
  %541 = vmatpush1.msra.mxu0 0.0
  %542 = vmatprep.subr.mxu0 0.0
  %543 = vmatpush1.msra.mxu0 0.0
  %544 = vmatprep.subr.mxu0 0.0
  %545 = vmatpush1.msra.mxu0 0.0
  %546 = vmatprep.subr.mxu0 0.0
  %547 = vmatpush1.msra.mxu0 0.0
  %548 = vmatprep.subr.mxu0 0.0
  %549 = vmatpush1.msra.mxu0 0.0
  %550 = vmatprep.subr.mxu0 0.0
  %551 = vmatpush1.msra.mxu0 0.0
  %552 = vmatprep.subr.mxu0 0.0
  %553 = vmatpush1.msra.mxu0 0.0
  %554 = vmatprep.subr.mxu0 0.0
  %555 = vmatpush1.msra.mxu0 0.0
  %556 = vmatprep.subr.mxu0 0.0
  %557 = vmatpush1.msra.mxu0 0.0
  %558 = vmatprep.subr.mxu0 0.0
  %559 = vmatpush1.msra.mxu0 0.0
  %560 = vmatprep.subr.mxu0 0.0
  %561 = vmatpush1.msra.mxu0 0.0
  %562 = vmatprep.subr.mxu0 0.0
  %563 = vmatpush1.msra.mxu0 0.0
  %564 = vmatprep.subr.mxu0 0.0
  %565 = vmatpush1.msra.mxu0 0.0
  %566 = vmatprep.mubr.f32.mxu0 0.0
  %567 = vmatmul.mubr.f32.gmra.mrb[0].mxu0 %v500
  %v568 = vpop.f32.mrb[0].mxu0
  %v569 = vadd.f32 0.0, %v568
  %v570 = vpop.f32.mrb[0].mxu0
  %571 = vdwg.mxu0
  %v572 = vadd.f32 %v349, %v569
  %v573 = vxor.u32 %v572, 2147483648
  %v574 = vmul.f32 %v573, 1.442695
  %v575 = vpow.pop %v574
  %v576 = vadd.f32 %v575, 1.0
  %v577 = vrcp.pop %v576
  %v578 = vmul.f32 1.0, %v577
  %v579 = vtanh.pop %v572
  %v580 = vmul.f32 %v578, %v480
  %582 = vrot.lane.b32.xlu0 %v579, 32
  %v583 = vpop.permute.xlu0 %582
  %v585 = vmul.f32 %v578, %v583
  %587 = vrot.lane.b32.xlu0 %v585, 32
  %v588 = vpop.permute.xlu0 %587
  %v590 = vadd.f32 %v580, %v588
  %v591 = vtanh.pop %v590
  %593 = vrot.lane.b32.xlu0 %v591, 32
  %v594 = vpop.permute.xlu0 %593
  %v596 = vmul.f32 %v578, %v594
  %598 = vrot.lane.b32.xlu0 %v155, 64
  %v599 = vpop.permute.xlu0 %598
  %v601 = vadd.f32 %v596, %v599
  %603 = vrot.lane.b32.xlu0 %v601, 64
  %v604 = vpop.permute.xlu0 %603
  %v606 = vmax.f32 %v496, %v604
  %608 = vrot.lane.b32.xlu0 %v596, 64
  %v609 = vpop.permute.xlu0 %608
  %v610 = vsel %vm175, %v609, 0
  %612 = vmatprep.subr.mxu0 0.0
  %613 = vmatpush1.msra.mxu0 %v166
  %614 = vmatprep.subr.mxu0 0.0
  %615 = vmatpush1.msra.mxu0 %v167
  %616 = vmatprep.subr.mxu0 0.0
  %617 = vmatpush1.msra.mxu0 %v168
  %618 = vmatprep.subr.mxu0 0.0
  %619 = vmatpush1.msra.mxu0 %v169
  %620 = vmatprep.subr.mxu0 0.0
  %621 = vmatpush1.msra.mxu0 0.0
  %622 = vmatprep.subr.mxu0 0.0
  %623 = vmatpush1.msra.mxu0 0.0
  %624 = vmatprep.subr.mxu0 0.0
  %625 = vmatpush1.msra.mxu0 0.0
  %626 = vmatprep.subr.mxu0 0.0
  %627 = vmatpush1.msra.mxu0 0.0
  %628 = vmatprep.subr.mxu0 0.0
  %629 = vmatpush1.msra.mxu0 0.0
  %630 = vmatprep.subr.mxu0 0.0
  %631 = vmatpush1.msra.mxu0 0.0
  %632 = vmatprep.subr.mxu0 0.0
  %633 = vmatpush1.msra.mxu0 0.0
  %634 = vmatprep.subr.mxu0 0.0
  %635 = vmatpush1.msra.mxu0 0.0
  %636 = vmatprep.subr.mxu0 0.0
  %637 = vmatpush1.msra.mxu0 0.0
  %638 = vmatprep.subr.mxu0 0.0
  %639 = vmatpush1.msra.mxu0 0.0
  %640 = vmatprep.subr.mxu0 0.0
  %641 = vmatpush1.msra.mxu0 0.0
  %642 = vmatprep.subr.mxu0 0.0
  %643 = vmatpush1.msra.mxu0 0.0
  %644 = vmatprep.subr.mxu0 0.0
  %645 = vmatpush1.msra.mxu0 0.0
  %646 = vmatprep.subr.mxu0 0.0
  %647 = vmatpush1.msra.mxu0 0.0
  %648 = vmatprep.subr.mxu0 0.0
  %649 = vmatpush1.msra.mxu0 0.0
  %650 = vmatprep.subr.mxu0 0.0
  %651 = vmatpush1.msra.mxu0 0.0
  %652 = vmatprep.subr.mxu0 0.0
  %653 = vmatpush1.msra.mxu0 0.0
  %654 = vmatprep.subr.mxu0 0.0
  %655 = vmatpush1.msra.mxu0 0.0
  %656 = vmatprep.subr.mxu0 0.0
  %657 = vmatpush1.msra.mxu0 0.0
  %658 = vmatprep.subr.mxu0 0.0
  %659 = vmatpush1.msra.mxu0 0.0
  %660 = vmatprep.subr.mxu0 0.0
  %661 = vmatpush1.msra.mxu0 0.0
  %662 = vmatprep.subr.mxu0 0.0
  %663 = vmatpush1.msra.mxu0 0.0
  %664 = vmatprep.subr.mxu0 0.0
  %665 = vmatpush1.msra.mxu0 0.0
  %666 = vmatprep.subr.mxu0 0.0
  %667 = vmatpush1.msra.mxu0 0.0
  %668 = vmatprep.subr.mxu0 0.0
  %669 = vmatpush1.msra.mxu0 0.0
  %670 = vmatprep.subr.mxu0 0.0
  %671 = vmatpush1.msra.mxu0 0.0
  %672 = vmatprep.subr.mxu0 0.0
  %673 = vmatpush1.msra.mxu0 0.0
  %674 = vmatprep.subr.mxu0 0.0
  %675 = vmatpush1.msra.mxu0 0.0
  %676 = vmatprep.mubr.f32.mxu0 0.0
  %677 = vmatmul.mubr.f32.gmra.mrb[0].mxu0 %v610
  %v678 = vpop.f32.mrb[0].mxu0
  %v679 = vadd.f32 0.0, %v678
  %v680 = vpop.f32.mrb[0].mxu0
  %681 = vdwg.mxu0
  %v682 = vadd.f32 %v354, %v679
  %v683 = vxor.u32 %v682, 2147483648
  %v684 = vmul.f32 %v683, 1.442695
  %v685 = vpow.pop %v684
  %v686 = vadd.f32 %v685, 1.0
  %v687 = vrcp.pop %v686
  %v688 = vmul.f32 1.0, %v687
  %v689 = vtanh.pop %v682
  %v690 = vmul.f32 %v688, %v590
  %692 = vrot.lane.b32.xlu0 %v689, 32
  %v693 = vpop.permute.xlu0 %692
  %v695 = vmul.f32 %v688, %v693
  %697 = vrot.lane.b32.xlu0 %v695, 32
  %v698 = vpop.permute.xlu0 %697
  %v700 = vadd.f32 %v690, %v698
  %v701 = vtanh.pop %v700
  %703 = vrot.lane.b32.xlu0 %v701, 32
  %v704 = vpop.permute.xlu0 %703
  %v706 = vmul.f32 %v688, %v704
  %708 = vrot.lane.b32.xlu0 %v156, 64
  %v709 = vpop.permute.xlu0 %708
  %v711 = vadd.f32 %v706, %v709
  %713 = vrot.lane.b32.xlu0 %v711, 64
  %v714 = vpop.permute.xlu0 %713
  %v716 = vmax.f32 %v606, %v714
  %718 = vrot.lane.b32.xlu0 %v706, 64
  %v719 = vpop.permute.xlu0 %718
  %v720 = vsel %vm175, %v719, 0
  %722 = vmatprep.subr.mxu0 0.0
  %723 = vmatpush1.msra.mxu0 %v166
  %724 = vmatprep.subr.mxu0 0.0
  %725 = vmatpush1.msra.mxu0 %v167
  %726 = vmatprep.subr.mxu0 0.0
  %727 = vmatpush1.msra.mxu0 %v168
  %728 = vmatprep.subr.mxu0 0.0
  %729 = vmatpush1.msra.mxu0 %v169
  %730 = vmatprep.subr.mxu0 0.0
  %731 = vmatpush1.msra.mxu0 0.0
  %732 = vmatprep.subr.mxu0 0.0
  %733 = vmatpush1.msra.mxu0 0.0
  %734 = vmatprep.subr.mxu0 0.0
  %735 = vmatpush1.msra.mxu0 0.0
  %736 = vmatprep.subr.mxu0 0.0
  %737 = vmatpush1.msra.mxu0 0.0
  %738 = vmatprep.subr.mxu0 0.0
  %739 = vmatpush1.msra.mxu0 0.0
  %740 = vmatprep.subr.mxu0 0.0
  %741 = vmatpush1.msra.mxu0 0.0
  %742 = vmatprep.subr.mxu0 0.0
  %743 = vmatpush1.msra.mxu0 0.0
  %744 = vmatprep.subr.mxu0 0.0
  %745 = vmatpush1.msra.mxu0 0.0
  %746 = vmatprep.subr.mxu0 0.0
  %747 = vmatpush1.msra.mxu0 0.0
  %748 = vmatprep.subr.mxu0 0.0
  %749 = vmatpush1.msra.mxu0 0.0
  %750 = vmatprep.subr.mxu0 0.0
  %751 = vmatpush1.msra.mxu0 0.0
  %752 = vmatprep.subr.mxu0 0.0
  %753 = vmatpush1.msra.mxu0 0.0
  %754 = vmatprep.subr.mxu0 0.0
  %755 = vmatpush1.msra.mxu0 0.0
  %756 = vmatprep.subr.mxu0 0.0
  %757 = vmatpush1.msra.mxu0 0.0
  %758 = vmatprep.subr.mxu0 0.0
  %759 = vmatpush1.msra.mxu0 0.0
  %760 = vmatprep.subr.mxu0 0.0
  %761 = vmatpush1.msra.mxu0 0.0
  %762 = vmatprep.subr.mxu0 0.0
  %763 = vmatpush1.msra.mxu0 0.0
  %764 = vmatprep.subr.mxu0 0.0
  %765 = vmatpush1.msra.mxu0 0.0
  %766 = vmatprep.subr.mxu0 0.0
  %767 = vmatpush1.msra.mxu0 0.0
  %768 = vmatprep.subr.mxu0 0.0
  %769 = vmatpush1.msra.mxu0 0.0
  %770 = vmatprep.subr.mxu0 0.0
  %771 = vmatpush1.msra.mxu0 0.0
  %772 = vmatprep.subr.mxu0 0.0
  %773 = vmatpush1.msra.mxu0 0.0
  %774 = vmatprep.subr.mxu0 0.0
  %775 = vmatpush1.msra.mxu0 0.0
  %776 = vmatprep.subr.mxu0 0.0
  %777 = vmatpush1.msra.mxu0 0.0
  %778 = vmatprep.subr.mxu0 0.0
  %779 = vmatpush1.msra.mxu0 0.0
  %780 = vmatprep.subr.mxu0 0.0
  %781 = vmatpush1.msra.mxu0 0.0
  %782 = vmatprep.subr.mxu0 0.0
  %783 = vmatpush1.msra.mxu0 0.0
  %784 = vmatprep.subr.mxu0 0.0
  %785 = vmatpush1.msra.mxu0 0.0
  %786 = vmatprep.mubr.f32.mxu0 0.0
  %787 = vmatmul.mubr.f32.gmra.mrb[0].mxu0 %v720
  %v788 = vpop.f32.mrb[0].mxu0
  %v789 = vadd.f32 0.0, %v788
  %v790 = vpop.f32.mrb[0].mxu0
  %791 = vdwg.mxu0
  %v792 = vadd.f32 %v359, %v789
  %v793 = vxor.u32 %v792, 2147483648
  %v794 = vmul.f32 %v793, 1.442695
  %v795 = vpow.pop %v794
  %v796 = vadd.f32 %v795, 1.0
  %v797 = vrcp.pop %v796
  %v798 = vmul.f32 1.0, %v797
  %v799 = vtanh.pop %v792
  %v800 = vmul.f32 %v798, %v700
  %802 = vrot.lane.b32.xlu0 %v799, 32
  %v803 = vpop.permute.xlu0 %802
  %v805 = vmul.f32 %v798, %v803
  %807 = vrot.lane.b32.xlu0 %v805, 32
  %v808 = vpop.permute.xlu0 %807
  %v810 = vadd.f32 %v800, %v808
  %v811 = vtanh.pop %v810
  %813 = vrot.lane.b32.xlu0 %v811, 32
  %v814 = vpop.permute.xlu0 %813
  %v816 = vmul.f32 %v798, %v814
  %818 = vrot.lane.b32.xlu0 %v157, 64
  %v819 = vpop.permute.xlu0 %818
  %v821 = vadd.f32 %v816, %v819
  %823 = vrot.lane.b32.xlu0 %v821, 64
  %v824 = vpop.permute.xlu0 %823
  %v826 = vmax.f32 %v716, %v824
  %828 = vrot.lane.b32.xlu0 %v816, 64
  %v829 = vpop.permute.xlu0 %828
  %v830 = vsel %vm175, %v829, 0
  %832 = vmatprep.subr.mxu0 0.0
  %833 = vmatpush1.msra.mxu0 %v166
  %834 = vmatprep.subr.mxu0 0.0
  %835 = vmatpush1.msra.mxu0 %v167
  %836 = vmatprep.subr.mxu0 0.0
  %837 = vmatpush1.msra.mxu0 %v168
  %838 = vmatprep.subr.mxu0 0.0
  %839 = vmatpush1.msra.mxu0 %v169
  %840 = vmatprep.subr.mxu0 0.0
  %841 = vmatpush1.msra.mxu0 0.0
  %842 = vmatprep.subr.mxu0 0.0
  %843 = vmatpush1.msra.mxu0 0.0
  %844 = vmatprep.subr.mxu0 0.0
  %845 = vmatpush1.msra.mxu0 0.0
  %846 = vmatprep.subr.mxu0 0.0
  %847 = vmatpush1.msra.mxu0 0.0
  %848 = vmatprep.subr.mxu0 0.0
  %849 = vmatpush1.msra.mxu0 0.0
  %850 = vmatprep.subr.mxu0 0.0
  %851 = vmatpush1.msra.mxu0 0.0
  %852 = vmatprep.subr.mxu0 0.0
  %853 = vmatpush1.msra.mxu0 0.0
  %854 = vmatprep.subr.mxu0 0.0
  %855 = vmatpush1.msra.mxu0 0.0
  %856 = vmatprep.subr.mxu0 0.0
  %857 = vmatpush1.msra.mxu0 0.0
  %858 = vmatprep.subr.mxu0 0.0
  %859 = vmatpush1.msra.mxu0 0.0
  %860 = vmatprep.subr.mxu0 0.0
  %861 = vmatpush1.msra.mxu0 0.0
  %862 = vmatprep.subr.mxu0 0.0
  %863 = vmatpush1.msra.mxu0 0.0
  %864 = vmatprep.subr.mxu0 0.0
  %865 = vmatpush1.msra.mxu0 0.0
  %866 = vmatprep.subr.mxu0 0.0
  %867 = vmatpush1.msra.mxu0 0.0
  %868 = vmatprep.subr.mxu0 0.0
  %869 = vmatpush1.msra.mxu0 0.0
  %870 = vmatprep.subr.mxu0 0.0
  %871 = vmatpush1.msra.mxu0 0.0
  %872 = vmatprep.subr.mxu0 0.0
  %873 = vmatpush1.msra.mxu0 0.0
  %874 = vmatprep.subr.mxu0 0.0
  %875 = vmatpush1.msra.mxu0 0.0
  %876 = vmatprep.subr.mxu0 0.0
  %877 = vmatpush1.msra.mxu0 0.0
  %878 = vmatprep.subr.mxu0 0.0
  %879 = vmatpush1.msra.mxu0 0.0
  %880 = vmatprep.subr.mxu0 0.0
  %881 = vmatpush1.msra.mxu0 0.0
  %882 = vmatprep.subr.mxu0 0.0
  %883 = vmatpush1.msra.mxu0 0.0
  %884 = vmatprep.subr.mxu0 0.0
  %885 = vmatpush1.msra.mxu0 0.0
  %886 = vmatprep.subr.mxu0 0.0
  %887 = vmatpush1.msra.mxu0 0.0
  %888 = vmatprep.subr.mxu0 0.0
  %889 = vmatpush1.msra.mxu0 0.0
  %890 = vmatprep.subr.mxu0 0.0
  %891 = vmatpush1.msra.mxu0 0.0
  %892 = vmatprep.subr.mxu0 0.0
  %893 = vmatpush1.msra.mxu0 0.0
  %894 = vmatprep.subr.mxu0 0.0
  %895 = vmatpush1.msra.mxu0 0.0
  %896 = vmatprep.mubr.f32.mxu0 0.0
  %897 = vmatmul.mubr.f32.gmra.mrb[0].mxu0 %v830
  %v898 = vpop.f32.mrb[0].mxu0
  %v899 = vadd.f32 0.0, %v898
  %v900 = vpop.f32.mrb[0].mxu0
  %901 = vdwg.mxu0
  %v902 = vadd.f32 %v364, %v899
  %v903 = vxor.u32 %v902, 2147483648
  %v904 = vmul.f32 %v903, 1.442695
  %v905 = vpow.pop %v904
  %v906 = vadd.f32 %v905, 1.0
  %v907 = vrcp.pop %v906
  %v908 = vmul.f32 1.0, %v907
  %v909 = vtanh.pop %v902
  %v910 = vmul.f32 %v908, %v810
  %912 = vrot.lane.b32.xlu0 %v909, 32
  %v913 = vpop.permute.xlu0 %912
  %v915 = vmul.f32 %v908, %v913
  %917 = vrot.lane.b32.xlu0 %v915, 32
  %v918 = vpop.permute.xlu0 %917
  %v920 = vadd.f32 %v910, %v918
  %v921 = vtanh.pop %v920
  %923 = vrot.lane.b32.xlu0 %v921, 32
  %v924 = vpop.permute.xlu0 %923
  %v926 = vmul.f32 %v908, %v924
  %928 = vrot.lane.b32.xlu0 %v158, 64
  %v929 = vpop.permute.xlu0 %928
  %v931 = vadd.f32 %v926, %v929
  %933 = vrot.lane.b32.xlu0 %v931, 64
  %v934 = vpop.permute.xlu0 %933
  %v936 = vmax.f32 %v826, %v934
  %938 = vrot.lane.b32.xlu0 %v926, 64
  %v939 = vpop.permute.xlu0 %938
  %v940 = vsel %vm175, %v939, 0
  %942 = vmatprep.subr.mxu0 0.0
  %943 = vmatpush1.msra.mxu0 %v166
  %944 = vmatprep.subr.mxu0 0.0
  %945 = vmatpush1.msra.mxu0 %v167
  %946 = vmatprep.subr.mxu0 0.0
  %947 = vmatpush1.msra.mxu0 %v168
  %948 = vmatprep.subr.mxu0 0.0
  %949 = vmatpush1.msra.mxu0 %v169
  %950 = vmatprep.subr.mxu0 0.0
  %951 = vmatpush1.msra.mxu0 0.0
  %952 = vmatprep.subr.mxu0 0.0
  %953 = vmatpush1.msra.mxu0 0.0
  %954 = vmatprep.subr.mxu0 0.0
  %955 = vmatpush1.msra.mxu0 0.0
  %956 = vmatprep.subr.mxu0 0.0
  %957 = vmatpush1.msra.mxu0 0.0
  %958 = vmatprep.subr.mxu0 0.0
  %959 = vmatpush1.msra.mxu0 0.0
  %960 = vmatprep.subr.mxu0 0.0
  %961 = vmatpush1.msra.mxu0 0.0
  %962 = vmatprep.subr.mxu0 0.0
  %963 = vmatpush1.msra.mxu0 0.0
  %964 = vmatprep.subr.mxu0 0.0
  %965 = vmatpush1.msra.mxu0 0.0
  %966 = vmatprep.subr.mxu0 0.0
  %967 = vmatpush1.msra.mxu0 0.0
  %968 = vmatprep.subr.mxu0 0.0
  %969 = vmatpush1.msra.mxu0 0.0
  %970 = vmatprep.subr.mxu0 0.0
  %971 = vmatpush1.msra.mxu0 0.0
  %972 = vmatprep.subr.mxu0 0.0
  %973 = vmatpush1.msra.mxu0 0.0
  %974 = vmatprep.subr.mxu0 0.0
  %975 = vmatpush1.msra.mxu0 0.0
  %976 = vmatprep.subr.mxu0 0.0
  %977 = vmatpush1.msra.mxu0 0.0
  %978 = vmatprep.subr.mxu0 0.0
  %979 = vmatpush1.msra.mxu0 0.0
  %980 = vmatprep.subr.mxu0 0.0
  %981 = vmatpush1.msra.mxu0 0.0
  %982 = vmatprep.subr.mxu0 0.0
  %983 = vmatpush1.msra.mxu0 0.0
  %984 = vmatprep.subr.mxu0 0.0
  %985 = vmatpush1.msra.mxu0 0.0
  %986 = vmatprep.subr.mxu0 0.0
  %987 = vmatpush1.msra.mxu0 0.0
  %988 = vmatprep.subr.mxu0 0.0
  %989 = vmatpush1.msra.mxu0 0.0
  %990 = vmatprep.subr.mxu0 0.0
  %991 = vmatpush1.msra.mxu0 0.0
  %992 = vmatprep.subr.mxu0 0.0
  %993 = vmatpush1.msra.mxu0 0.0
  %994 = vmatprep.subr.mxu0 0.0
  %995 = vmatpush1.msra.mxu0 0.0
  %996 = vmatprep.subr.mxu0 0.0
  %997 = vmatpush1.msra.mxu0 0.0
  %998 = vmatprep.subr.mxu0 0.0
  %999 = vmatpush1.msra.mxu0 0.0
  %1000 = vmatprep.subr.mxu0 0.0
  %1001 = vmatpush1.msra.mxu0 0.0
  %1002 = vmatprep.subr.mxu0 0.0
  %1003 = vmatpush1.msra.mxu0 0.0
  %1004 = vmatprep.subr.mxu0 0.0
  %1005 = vmatpush1.msra.mxu0 0.0
  %1006 = vmatprep.mubr.f32.mxu0 0.0
  %1007 = vmatmul.mubr.f32.gmra.mrb[0].mxu0 %v940
  %v1008 = vpop.f32.mrb[0].mxu0
  %v1009 = vadd.f32 0.0, %v1008
  %v1010 = vpop.f32.mrb[0].mxu0
  %1011 = vdwg.mxu0
  %v1012 = vadd.f32 %v369, %v1009
  %v1013 = vxor.u32 %v1012, 2147483648
  %v1014 = vmul.f32 %v1013, 1.442695
  %v1015 = vpow.pop %v1014
  %v1016 = vadd.f32 %v1015, 1.0
  %v1017 = vrcp.pop %v1016
  %v1018 = vmul.f32 1.0, %v1017
  %v1019 = vtanh.pop %v1012
  %v1020 = vmul.f32 %v1018, %v920
  %1022 = vrot.lane.b32.xlu0 %v1019, 32
  %v1023 = vpop.permute.xlu0 %1022
  %v1025 = vmul.f32 %v1018, %v1023
  %1027 = vrot.lane.b32.xlu0 %v1025, 32
  %v1028 = vpop.permute.xlu0 %1027
  %v1030 = vadd.f32 %v1020, %v1028
  %v1031 = vtanh.pop %v1030
  %1033 = vrot.lane.b32.xlu0 %v1031, 32
  %v1034 = vpop.permute.xlu0 %1033
  %v1036 = vmul.f32 %v1018, %v1034
  %1038 = vrot.lane.b32.xlu0 %v159, 64
  %v1039 = vpop.permute.xlu0 %1038
  %v1041 = vadd.f32 %v1036, %v1039
  %1043 = vrot.lane.b32.xlu0 %v1041, 64
  %v1044 = vpop.permute.xlu0 %1043
  %v1046 = vmax.f32 %v936, %v1044
  %1048 = vrot.lane.b32.xlu0 %v1036, 64
  %v1049 = vpop.permute.xlu0 %1048
  %v1050 = vsel %vm175, %v1049, 0
  %1052 = vmatprep.subr.mxu0 0.0
  %1053 = vmatpush1.msra.mxu0 %v166
  %1054 = vmatprep.subr.mxu0 0.0
  %1055 = vmatpush1.msra.mxu0 %v167
  %1056 = vmatprep.subr.mxu0 0.0
  %1057 = vmatpush1.msra.mxu0 %v168
  %1058 = vmatprep.subr.mxu0 0.0
  %1059 = vmatpush1.msra.mxu0 %v169
  %1060 = vmatprep.subr.mxu0 0.0
  %1061 = vmatpush1.msra.mxu0 0.0
  %1062 = vmatprep.subr.mxu0 0.0
  %1063 = vmatpush1.msra.mxu0 0.0
  %1064 = vmatprep.subr.mxu0 0.0
  %1065 = vmatpush1.msra.mxu0 0.0
  %1066 = vmatprep.subr.mxu0 0.0
  %1067 = vmatpush1.msra.mxu0 0.0
  %1068 = vmatprep.subr.mxu0 0.0
  %1069 = vmatpush1.msra.mxu0 0.0
  %1070 = vmatprep.subr.mxu0 0.0
  %1071 = vmatpush1.msra.mxu0 0.0
  %1072 = vmatprep.subr.mxu0 0.0
  %1073 = vmatpush1.msra.mxu0 0.0
  %1074 = vmatprep.subr.mxu0 0.0
  %1075 = vmatpush1.msra.mxu0 0.0
  %1076 = vmatprep.subr.mxu0 0.0
  %1077 = vmatpush1.msra.mxu0 0.0
  %1078 = vmatprep.subr.mxu0 0.0
  %1079 = vmatpush1.msra.mxu0 0.0
  %1080 = vmatprep.subr.mxu0 0.0
  %1081 = vmatpush1.msra.mxu0 0.0
  %1082 = vmatprep.subr.mxu0 0.0
  %1083 = vmatpush1.msra.mxu0 0.0
  %1084 = vmatprep.subr.mxu0 0.0
  %1085 = vmatpush1.msra.mxu0 0.0
  %1086 = vmatprep.subr.mxu0 0.0
  %1087 = vmatpush1.msra.mxu0 0.0
  %1088 = vmatprep.subr.mxu0 0.0
  %1089 = vmatpush1.msra.mxu0 0.0
  %1090 = vmatprep.subr.mxu0 0.0
  %1091 = vmatpush1.msra.mxu0 0.0
  %1092 = vmatprep.subr.mxu0 0.0
  %1093 = vmatpush1.msra.mxu0 0.0
  %1094 = vmatprep.subr.mxu0 0.0
  %1095 = vmatpush1.msra.mxu0 0.0
  %1096 = vmatprep.subr.mxu0 0.0
  %1097 = vmatpush1.msra.mxu0 0.0
  %1098 = vmatprep.subr.mxu0 0.0
  %1099 = vmatpush1.msra.mxu0 0.0
  %1100 = vmatprep.subr.mxu0 0.0
  %1101 = vmatpush1.msra.mxu0 0.0
  %1102 = vmatprep.subr.mxu0 0.0
  %1103 = vmatpush1.msra.mxu0 0.0
  %1104 = vmatprep.subr.mxu0 0.0
  %1105 = vmatpush1.msra.mxu0 0.0
  %1106 = vmatprep.subr.mxu0 0.0
  %1107 = vmatpush1.msra.mxu0 0.0
  %1108 = vmatprep.subr.mxu0 0.0
  %1109 = vmatpush1.msra.mxu0 0.0
  %1110 = vmatprep.subr.mxu0 0.0
  %1111 = vmatpush1.msra.mxu0 0.0
  %1112 = vmatprep.subr.mxu0 0.0
  %1113 = vmatpush1.msra.mxu0 0.0
  %1114 = vmatprep.subr.mxu0 0.0
  %1115 = vmatpush1.msra.mxu0 0.0
  %1116 = vmatprep.mubr.f32.mxu0 0.0
  %1117 = vmatmul.mubr.f32.gmra.mrb[0].mxu0 %v1050
  %v1118 = vpop.f32.mrb[0].mxu0
  %v1119 = vadd.f32 0.0, %v1118
  %v1120 = vpop.f32.mrb[0].mxu0
  %1121 = vdwg.mxu0
  %v1122 = vadd.f32 %v374, %v1119
  %v1123 = vxor.u32 %v1122, 2147483648
  %v1124 = vmul.f32 %v1123, 1.442695
  %v1125 = vpow.pop %v1124
  %v1126 = vadd.f32 %v1125, 1.0
  %v1127 = vrcp.pop %v1126
  %v1128 = vmul.f32 1.0, %v1127
  %v1129 = vtanh.pop %v1122
  %v1130 = vmul.f32 %v1128, %v1030
  %1132 = vrot.lane.b32.xlu0 %v1129, 32
  %v1133 = vpop.permute.xlu0 %1132
  %v1135 = vmul.f32 %v1128, %v1133
  %1137 = vrot.lane.b32.xlu0 %v1135, 32
  %v1138 = vpop.permute.xlu0 %1137
  %v1140 = vadd.f32 %v1130, %v1138
  %v1141 = vtanh.pop %v1140
  %1143 = vrot.lane.b32.xlu0 %v1141, 32
  %v1144 = vpop.permute.xlu0 %1143
  %v1146 = vmul.f32 %v1128, %v1144
  %1148 = vrot.lane.b32.xlu0 %v160, 64
  %v1149 = vpop.permute.xlu0 %1148
  %v1151 = vadd.f32 %v1146, %v1149
  %1153 = vrot.lane.b32.xlu0 %v1151, 64
  %v1154 = vpop.permute.xlu0 %1153
  %v1156 = vmax.f32 %v1046, %v1154
  %1158 = vrot.lane.b32.xlu0 %v1146, 64
  %v1159 = vpop.permute.xlu0 %1158
  %v1160 = vsel %vm175, %v1159, 0
  %1162 = vmatprep.subr.mxu0 0.0
  %1163 = vmatpush1.msra.mxu0 %v166
  %1164 = vmatprep.subr.mxu0 0.0
  %1165 = vmatpush1.msra.mxu0 %v167
  %1166 = vmatprep.subr.mxu0 0.0
  %1167 = vmatpush1.msra.mxu0 %v168
  %1168 = vmatprep.subr.mxu0 0.0
  %1169 = vmatpush1.msra.mxu0 %v169
  %1170 = vmatprep.subr.mxu0 0.0
  %1171 = vmatpush1.msra.mxu0 0.0
  %1172 = vmatprep.subr.mxu0 0.0
  %1173 = vmatpush1.msra.mxu0 0.0
  %1174 = vmatprep.subr.mxu0 0.0
  %1175 = vmatpush1.msra.mxu0 0.0
  %1176 = vmatprep.subr.mxu0 0.0
  %1177 = vmatpush1.msra.mxu0 0.0
  %1178 = vmatprep.subr.mxu0 0.0
  %1179 = vmatpush1.msra.mxu0 0.0
  %1180 = vmatprep.subr.mxu0 0.0
  %1181 = vmatpush1.msra.mxu0 0.0
  %1182 = vmatprep.subr.mxu0 0.0
  %1183 = vmatpush1.msra.mxu0 0.0
  %1184 = vmatprep.subr.mxu0 0.0
  %1185 = vmatpush1.msra.mxu0 0.0
  %1186 = vmatprep.subr.mxu0 0.0
  %1187 = vmatpush1.msra.mxu0 0.0
  %1188 = vmatprep.subr.mxu0 0.0
  %1189 = vmatpush1.msra.mxu0 0.0
  %1190 = vmatprep.subr.mxu0 0.0
  %1191 = vmatpush1.msra.mxu0 0.0
  %1192 = vmatprep.subr.mxu0 0.0
  %1193 = vmatpush1.msra.mxu0 0.0
  %1194 = vmatprep.subr.mxu0 0.0
  %1195 = vmatpush1.msra.mxu0 0.0
  %1196 = vmatprep.subr.mxu0 0.0
  %1197 = vmatpush1.msra.mxu0 0.0
  %1198 = vmatprep.subr.mxu0 0.0
  %1199 = vmatpush1.msra.mxu0 0.0
  %1200 = vmatprep.subr.mxu0 0.0
  %1201 = vmatpush1.msra.mxu0 0.0
  %1202 = vmatprep.subr.mxu0 0.0
  %1203 = vmatpush1.msra.mxu0 0.0
  %1204 = vmatprep.subr.mxu0 0.0
  %1205 = vmatpush1.msra.mxu0 0.0
  %1206 = vmatprep.subr.mxu0 0.0
  %1207 = vmatpush1.msra.mxu0 0.0
  %1208 = vmatprep.subr.mxu0 0.0
  %1209 = vmatpush1.msra.mxu0 0.0
  %1210 = vmatprep.subr.mxu0 0.0
  %1211 = vmatpush1.msra.mxu0 0.0
  %1212 = vmatprep.subr.mxu0 0.0
  %1213 = vmatpush1.msra.mxu0 0.0
  %1214 = vmatprep.subr.mxu0 0.0
  %1215 = vmatpush1.msra.mxu0 0.0
  %1216 = vmatprep.subr.mxu0 0.0
  %1217 = vmatpush1.msra.mxu0 0.0
  %1218 = vmatprep.subr.mxu0 0.0
  %1219 = vmatpush1.msra.mxu0 0.0
  %1220 = vmatprep.subr.mxu0 0.0
  %1221 = vmatpush1.msra.mxu0 0.0
  %1222 = vmatprep.subr.mxu0 0.0
  %1223 = vmatpush1.msra.mxu0 0.0
  %1224 = vmatprep.subr.mxu0 0.0
  %1225 = vmatpush1.msra.mxu0 0.0
  %1226 = vmatprep.mubr.f32.mxu0 0.0
  %1227 = vmatmul.mubr.f32.gmra.mrb[0].mxu0 %v1160
  %v1228 = vpop.f32.mrb[0].mxu0
  %v1229 = vadd.f32 0.0, %v1228
  %v1230 = vpop.f32.mrb[0].mxu0
  %1231 = vdwg.mxu0
  %v1232 = vadd.f32 %v379, %v1229
  %v1233 = vxor.u32 %v1232, 2147483648
  %v1234 = vmul.f32 %v1233, 1.442695
  %v1235 = vpow.pop %v1234
  %v1236 = vadd.f32 %v1235, 1.0
  %v1237 = vrcp.pop %v1236
  %v1238 = vmul.f32 1.0, %v1237
  %v1239 = vtanh.pop %v1232
  %v1240 = vmul.f32 %v1238, %v1140
  %1242 = vrot.lane.b32.xlu0 %v1239, 32
  %v1243 = vpop.permute.xlu0 %1242
  %v1245 = vmul.f32 %v1238, %v1243
  %1247 = vrot.lane.b32.xlu0 %v1245, 32
  %v1248 = vpop.permute.xlu0 %1247
  %v1250 = vadd.f32 %v1240, %v1248
  %v1251 = vtanh.pop %v1250
  %1253 = vrot.lane.b32.xlu0 %v1251, 32
  %v1254 = vpop.permute.xlu0 %1253
  %v1256 = vmul.f32 %v1238, %v1254
  %1258 = vrot.lane.b32.xlu0 %v161, 64
  %v1259 = vpop.permute.xlu0 %1258
  %v1261 = vadd.f32 %v1256, %v1259
  %1263 = vrot.lane.b32.xlu0 %v1261, 64
  %v1264 = vpop.permute.xlu0 %1263
  %v1266 = vmax.f32 %v1156, %v1264
  %v1267 = vmul.f32 %v249, %v1266
  %v1268 = vld [vmem:[%s11] sm:$0xff]
  %v1269 = vld [vmem:[%s11 + $0x8] sm:$0xff]
  %v1270 = vld [vmem:[%s11 + $0x10] sm:$0xff]
  %v1271 = vld [vmem:[%s11 + $0x18] sm:$0xff]
  %v1273 = vsel %vm175, %v1267, 0
  %1275 = vmatprep.subr.mxu0 0.0
  %1276 = vmatpush1.msra.mxu0 %v1268
  %1277 = vmatprep.subr.mxu0 0.0
  %1278 = vmatpush1.msra.mxu0 %v1269
  %1279 = vmatprep.subr.mxu0 0.0
  %1280 = vmatpush1.msra.mxu0 %v1270
  %1281 = vmatprep.subr.mxu0 0.0
  %1282 = vmatpush1.msra.mxu0 %v1271
  %1283 = vmatprep.subr.mxu0 0.0
  %1284 = vmatpush1.msra.mxu0 0.0
  %1285 = vmatprep.subr.mxu0 0.0
  %1286 = vmatpush1.msra.mxu0 0.0
  %1287 = vmatprep.subr.mxu0 0.0
  %1288 = vmatpush1.msra.mxu0 0.0
  %1289 = vmatprep.subr.mxu0 0.0
  %1290 = vmatpush1.msra.mxu0 0.0
  %1291 = vmatprep.subr.mxu0 0.0
  %1292 = vmatpush1.msra.mxu0 0.0
  %1293 = vmatprep.subr.mxu0 0.0
  %1294 = vmatpush1.msra.mxu0 0.0
  %1295 = vmatprep.subr.mxu0 0.0
  %1296 = vmatpush1.msra.mxu0 0.0
  %1297 = vmatprep.subr.mxu0 0.0
  %1298 = vmatpush1.msra.mxu0 0.0
  %1299 = vmatprep.subr.mxu0 0.0
  %1300 = vmatpush1.msra.mxu0 0.0
  %1301 = vmatprep.subr.mxu0 0.0
  %1302 = vmatpush1.msra.mxu0 0.0
  %1303 = vmatprep.subr.mxu0 0.0
  %1304 = vmatpush1.msra.mxu0 0.0
  %1305 = vmatprep.subr.mxu0 0.0
  %1306 = vmatpush1.msra.mxu0 0.0
  %1307 = vmatprep.subr.mxu0 0.0
  %1308 = vmatpush1.msra.mxu0 0.0
  %1309 = vmatprep.subr.mxu0 0.0
  %1310 = vmatpush1.msra.mxu0 0.0
  %1311 = vmatprep.subr.mxu0 0.0
  %1312 = vmatpush1.msra.mxu0 0.0
  %1313 = vmatprep.subr.mxu0 0.0
  %1314 = vmatpush1.msra.mxu0 0.0
  %1315 = vmatprep.subr.mxu0 0.0
  %1316 = vmatpush1.msra.mxu0 0.0
  %1317 = vmatprep.subr.mxu0 0.0
  %1318 = vmatpush1.msra.mxu0 0.0
  %1319 = vmatprep.subr.mxu0 0.0
  %1320 = vmatpush1.msra.mxu0 0.0
  %1321 = vmatprep.subr.mxu0 0.0
  %1322 = vmatpush1.msra.mxu0 0.0
  %1323 = vmatprep.subr.mxu0 0.0
  %1324 = vmatpush1.msra.mxu0 0.0
  %1325 = vmatprep.subr.mxu0 0.0
  %1326 = vmatpush1.msra.mxu0 0.0
  %1327 = vmatprep.subr.mxu0 0.0
  %1328 = vmatpush1.msra.mxu0 0.0
  %1329 = vmatprep.subr.mxu0 0.0
  %1330 = vmatpush1.msra.mxu0 0.0
  %1331 = vmatprep.subr.mxu0 0.0
  %1332 = vmatpush1.msra.mxu0 0.0
  %1333 = vmatprep.subr.mxu0 0.0
  %1334 = vmatpush1.msra.mxu0 0.0
  %1335 = vmatprep.subr.mxu0 0.0
  %1336 = vmatpush1.msra.mxu0 0.0
  %1337 = vmatprep.subr.mxu0 0.0
  %1338 = vmatpush1.msra.mxu0 0.0
  %1339 = vmatprep.mubr.f32.mxu0 0.0
  %1340 = vmatmul.mubr.f32.gmra.mrb[0].mxu0 %v1273
  %v1341 = vpop.f32.mrb[0].mxu0
  %v1342 = vadd.f32 0.0, %v1341
  %v1343 = vpop.f32.mrb[0].mxu0
  %1344 = vdwg.mxu0
  %v1345 = vadd.f32 %v143, %v1342
  %s1346 = scalar_lea.vmem %s0, 64
  %v1347 = vld [vmem:[%s1346] sm:$0xff]
  %v1348 = vld [vmem:[%s1346 + $0x8] sm:$0xff]
  %v1349 = vld [vmem:[%s1346 + $0x10] sm:$0xff]
  %v1350 = vld [vmem:[%s1346 + $0x18] sm:$0xff]
  %v1351 = vld [vmem:[%s1346 + $0x20] sm:$0xff]
  %v1352 = vld [vmem:[%s1346 + $0x28] sm:$0xff]
  %v1353 = vld [vmem:[%s1346 + $0x30] sm:$0xff]
  %v1354 = vld [vmem:[%s1346 + $0x38] sm:$0xff]
  %s1355 = scalar_lea.vmem %s1, 64
  %v1356 = vld [vmem:[%s1355] sm:$0xff]
  %v1357 = vld [vmem:[%s1355 + $0x8] sm:$0xff]
  %v1358 = vld [vmem:[%s1355 + $0x10] sm:$0xff]
  %v1359 = vld [vmem:[%s1355 + $0x18] sm:$0xff]
  %v1360 = vld [vmem:[%s1355 + $0x20] sm:$0xff]
  %v1361 = vld [vmem:[%s1355 + $0x28] sm:$0xff]
  %v1362 = vld [vmem:[%s1355 + $0x30] sm:$0xff]
  %v1363 = vld [vmem:[%s1355 + $0x38] sm:$0xff]
  %s1364 = scalar_lea.vmem %s5, 32
  %v1365 = vld [vmem:[%s1364] sm:$0xff]
  %v1366 = vld [vmem:[%s1364 + $0x8] sm:$0xff]
  %v1367 = vld [vmem:[%s1364 + $0x10] sm:$0xff]
  %v1368 = vld [vmem:[%s1364 + $0x18] sm:$0xff]
  %s1369 = scalar_lea.vmem %s6, 32
  %v1370 = vld [vmem:[%s1369] sm:$0xff]
  %v1371 = vld [vmem:[%s1369 + $0x8] sm:$0xff]
  %v1372 = vld [vmem:[%s1369 + $0x10] sm:$0xff]
  %v1373 = vld [vmem:[%s1369 + $0x18] sm:$0xff]
  %s1374 = scalar_lea.vmem %s7, 1
  %v1375 = vld [vmem:[%s1374] sm:$0x1]
  %s1376 = scalar_lea.vmem %s4, 32
  %v1377 = vld [vmem:[%s1376] sm:$0xff]
  %v1378 = vld [vmem:[%s1376 + $0x8] sm:$0xff]
  %v1379 = vld [vmem:[%s1376 + $0x10] sm:$0xff]
  %v1380 = vld [vmem:[%s1376 + $0x18] sm:$0xff]
  %v1382 = vsel %vm175, %v1347, 0
  %1384 = vmatprep.subr.mxu0 0.0
  %1385 = vmatpush1.msra.mxu0 %v1377
  %1386 = vmatprep.subr.mxu0 0.0
  %1387 = vmatpush1.msra.mxu0 %v1378
  %1388 = vmatprep.subr.mxu0 0.0
  %1389 = vmatpush1.msra.mxu0 %v1379
  %1390 = vmatprep.subr.mxu0 0.0
  %1391 = vmatpush1.msra.mxu0 %v1380
  %1392 = vmatprep.subr.mxu0 0.0
  %1393 = vmatpush1.msra.mxu0 0.0
  %1394 = vmatprep.subr.mxu0 0.0
  %1395 = vmatpush1.msra.mxu0 0.0
  %1396 = vmatprep.subr.mxu0 0.0
  %1397 = vmatpush1.msra.mxu0 0.0
  %1398 = vmatprep.subr.mxu0 0.0
  %1399 = vmatpush1.msra.mxu0 0.0
  %1400 = vmatprep.subr.mxu0 0.0
  %1401 = vmatpush1.msra.mxu0 0.0
  %1402 = vmatprep.subr.mxu0 0.0
  %1403 = vmatpush1.msra.mxu0 0.0
  %1404 = vmatprep.subr.mxu0 0.0
  %1405 = vmatpush1.msra.mxu0 0.0
  %1406 = vmatprep.subr.mxu0 0.0
  %1407 = vmatpush1.msra.mxu0 0.0
  %1408 = vmatprep.subr.mxu0 0.0
  %1409 = vmatpush1.msra.mxu0 0.0
  %1410 = vmatprep.subr.mxu0 0.0
  %1411 = vmatpush1.msra.mxu0 0.0
  %1412 = vmatprep.subr.mxu0 0.0
  %1413 = vmatpush1.msra.mxu0 0.0
  %1414 = vmatprep.subr.mxu0 0.0
  %1415 = vmatpush1.msra.mxu0 0.0
  %1416 = vmatprep.subr.mxu0 0.0
  %1417 = vmatpush1.msra.mxu0 0.0
  %1418 = vmatprep.subr.mxu0 0.0
  %1419 = vmatpush1.msra.mxu0 0.0
  %1420 = vmatprep.subr.mxu0 0.0
  %1421 = vmatpush1.msra.mxu0 0.0
  %1422 = vmatprep.subr.mxu0 0.0
  %1423 = vmatpush1.msra.mxu0 0.0
  %1424 = vmatprep.subr.mxu0 0.0
  %1425 = vmatpush1.msra.mxu0 0.0
  %1426 = vmatprep.subr.mxu0 0.0
  %1427 = vmatpush1.msra.mxu0 0.0
  %1428 = vmatprep.subr.mxu0 0.0
  %1429 = vmatpush1.msra.mxu0 0.0
  %1430 = vmatprep.subr.mxu0 0.0
  %1431 = vmatpush1.msra.mxu0 0.0
  %1432 = vmatprep.subr.mxu0 0.0
  %1433 = vmatpush1.msra.mxu0 0.0
  %1434 = vmatprep.subr.mxu0 0.0
  %1435 = vmatpush1.msra.mxu0 0.0
  %1436 = vmatprep.subr.mxu0 0.0
  %1437 = vmatpush1.msra.mxu0 0.0
  %1438 = vmatprep.subr.mxu0 0.0
  %1439 = vmatpush1.msra.mxu0 0.0
  %1440 = vmatprep.subr.mxu0 0.0
  %1441 = vmatpush1.msra.mxu0 0.0
  %1442 = vmatprep.subr.mxu0 0.0
  %1443 = vmatpush1.msra.mxu0 0.0
  %1444 = vmatprep.subr.mxu0 0.0
  %1445 = vmatpush1.msra.mxu0 0.0
  %1446 = vmatprep.subr.mxu0 0.0
  %1447 = vmatpush1.msra.mxu0 0.0
  %1448 = vmatprep.mubr.f32.mxu0 0.0
  %1449 = vmatmul.mubr.f32.gmra.mrb[0].mxu0 %v1382
  %v1450 = vpop.f32.mrb[0].mxu0
  %v1451 = vadd.f32 0.0, %v1450
  %v1452 = vpop.f32.mrb[0].mxu0
  %1453 = vdwg.mxu0
  %v1454 = vmax.f32 %v1451, 0.0
  %v1456 = vlaneseq
  %v1457 = vshrl.u32 %v1456, 7
  %v1458 = vsub.s32 0, %v1457
  %v1459 = vrot.slane %v1375, %v1458
  %v1462 = vsel %vm175, %v1348, 0
  %v1465 = vsel %vm175, %v1349, 0
  %v1468 = vsel %vm175, %v1350, 0
  %v1471 = vsel %vm175, %v1351, 0
  %v1474 = vsel %vm175, %v1352, 0
  %v1477 = vsel %vm175, %v1353, 0
  %v1480 = vsel %vm175, %v1354, 0
  %1482 = vmatprep.subr.mxu0 0.0
  %1483 = vmatpush1.msra.mxu0 %v1365
  %1484 = vmatprep.subr.mxu0 0.0
  %1485 = vmatpush1.msra.mxu0 %v1366
  %1486 = vmatprep.subr.mxu0 0.0
  %1487 = vmatpush1.msra.mxu0 %v1367
  %1488 = vmatprep.subr.mxu0 0.0
  %1489 = vmatpush1.msra.mxu0 %v1368
  %1490 = vmatprep.subr.mxu0 0.0
  %1491 = vmatpush1.msra.mxu0 0.0
  %1492 = vmatprep.subr.mxu0 0.0
  %1493 = vmatpush1.msra.mxu0 0.0
  %1494 = vmatprep.subr.mxu0 0.0
  %1495 = vmatpush1.msra.mxu0 0.0
  %1496 = vmatprep.subr.mxu0 0.0
  %1497 = vmatpush1.msra.mxu0 0.0
  %1498 = vmatprep.subr.mxu0 0.0
  %1499 = vmatpush1.msra.mxu0 0.0
  %1500 = vmatprep.subr.mxu0 0.0
  %1501 = vmatpush1.msra.mxu0 0.0
  %1502 = vmatprep.subr.mxu0 0.0
  %1503 = vmatpush1.msra.mxu0 0.0
  %1504 = vmatprep.subr.mxu0 0.0
  %1505 = vmatpush1.msra.mxu0 0.0
  %1506 = vmatprep.subr.mxu0 0.0
  %1507 = vmatpush1.msra.mxu0 0.0
  %1508 = vmatprep.subr.mxu0 0.0
  %1509 = vmatpush1.msra.mxu0 0.0
  %1510 = vmatprep.subr.mxu0 0.0
  %1511 = vmatpush1.msra.mxu0 0.0
  %1512 = vmatprep.subr.mxu0 0.0
  %1513 = vmatpush1.msra.mxu0 0.0
  %1514 = vmatprep.subr.mxu0 0.0
  %1515 = vmatpush1.msra.mxu0 0.0
  %1516 = vmatprep.subr.mxu0 0.0
  %1517 = vmatpush1.msra.mxu0 0.0
  %1518 = vmatprep.subr.mxu0 0.0
  %1519 = vmatpush1.msra.mxu0 0.0
  %1520 = vmatprep.subr.mxu0 0.0
  %1521 = vmatpush1.msra.mxu0 0.0
  %1522 = vmatprep.subr.mxu0 0.0
  %1523 = vmatpush1.msra.mxu0 0.0
  %1524 = vmatprep.subr.mxu0 0.0
  %1525 = vmatpush1.msra.mxu0 0.0
  %1526 = vmatprep.subr.mxu0 0.0
  %1527 = vmatpush1.msra.mxu0 0.0
  %1528 = vmatprep.subr.mxu0 0.0
  %1529 = vmatpush1.msra.mxu0 0.0
  %1530 = vmatprep.subr.mxu0 0.0
  %1531 = vmatpush1.msra.mxu0 0.0
  %1532 = vmatprep.subr.mxu0 0.0
  %1533 = vmatpush1.msra.mxu0 0.0
  %1534 = vmatprep.subr.mxu0 0.0
  %1535 = vmatpush1.msra.mxu0 0.0
  %1536 = vmatprep.subr.mxu0 0.0
  %1537 = vmatpush1.msra.mxu0 0.0
  %1538 = vmatprep.subr.mxu0 0.0
  %1539 = vmatpush1.msra.mxu0 0.0
  %1540 = vmatprep.subr.mxu0 0.0
  %1541 = vmatpush1.msra.mxu0 0.0
  %1542 = vmatprep.subr.mxu0 0.0
  %1543 = vmatpush1.msra.mxu0 0.0
  %1544 = vmatprep.subr.mxu0 0.0
  %1545 = vmatpush1.msra.mxu0 0.0
  %1546 = vmatprep.mubr.f32.mxu0 0.0
  %1547 = vmatmul.mubr.f32.gmra.mrb[0].mxu0 %v1382
  %v1548 = vpop.f32.mrb[0].mxu0
  %v1549 = vadd.f32 %v1459, %v1548
  %v1550 = vpop.f32.mrb[0].mxu0
  %1551 = vmatprep.mubr.f32.mxu0 0.0
  %1552 = vmatmul.mubr.f32.gmra.mrb[0].mxu0 %v1462
  %v1553 = vpop.f32.mrb[0].mxu0
  %v1554 = vadd.f32 %v1459, %v1553
  %v1555 = vpop.f32.mrb[0].mxu0
  %1556 = vmatprep.mubr.f32.mxu0 0.0
  %1557 = vmatmul.mubr.f32.gmra.mrb[0].mxu0 %v1465
  %v1558 = vpop.f32.mrb[0].mxu0
  %v1559 = vadd.f32 %v1459, %v1558
  %v1560 = vpop.f32.mrb[0].mxu0
  %1561 = vmatprep.mubr.f32.mxu0 0.0
  %1562 = vmatmul.mubr.f32.gmra.mrb[0].mxu0 %v1468
  %v1563 = vpop.f32.mrb[0].mxu0
  %v1564 = vadd.f32 %v1459, %v1563
  %v1565 = vpop.f32.mrb[0].mxu0
  %1566 = vmatprep.mubr.f32.mxu0 0.0
  %1567 = vmatmul.mubr.f32.gmra.mrb[0].mxu0 %v1471
  %v1568 = vpop.f32.mrb[0].mxu0
  %v1569 = vadd.f32 %v1459, %v1568
  %v1570 = vpop.f32.mrb[0].mxu0
  %1571 = vmatprep.mubr.f32.mxu0 0.0
  %1572 = vmatmul.mubr.f32.gmra.mrb[0].mxu0 %v1474
  %v1573 = vpop.f32.mrb[0].mxu0
  %v1574 = vadd.f32 %v1459, %v1573
  %v1575 = vpop.f32.mrb[0].mxu0
  %1576 = vmatprep.mubr.f32.mxu0 0.0
  %1577 = vmatmul.mubr.f32.gmra.mrb[0].mxu0 %v1477
  %v1578 = vpop.f32.mrb[0].mxu0
  %v1579 = vadd.f32 %v1459, %v1578
  %v1580 = vpop.f32.mrb[0].mxu0
  %1581 = vmatprep.mubr.f32.mxu0 0.0
  %1582 = vmatmul.mubr.f32.gmra.mrb[0].mxu0 %v1480
  %v1583 = vpop.f32.mrb[0].mxu0
  %v1584 = vadd.f32 %v1459, %v1583
  %v1585 = vpop.f32.mrb[0].mxu0
  %1586 = vdwg.mxu0
  %s1587 = scalar_lea.vmem %s8, 8
  %v1588 = vld [vmem:[%s1587] sm:$0xff]
  %s1589 = scalar_lea.vmem %s9, 8
  %v1590 = vld [vmem:[%s1589] sm:$0xff]
  %s1591 = scalar_lea.vmem %s2, 8
  %v1592 = vld [vmem:[%s1591] sm:$0xff]
  %v1594 = vsel %vm175, %v1588, 0
  %1596 = vmatprep.subr.mxu0 0.0
  %1597 = vmatpush1.msra.mxu0 %v1370
  %1598 = vmatprep.subr.mxu0 0.0
  %1599 = vmatpush1.msra.mxu0 %v1371
  %1600 = vmatprep.subr.mxu0 0.0
  %1601 = vmatpush1.msra.mxu0 %v1372
  %1602 = vmatprep.subr.mxu0 0.0
  %1603 = vmatpush1.msra.mxu0 %v1373
  %1604 = vmatprep.subr.mxu0 0.0
  %1605 = vmatpush1.msra.mxu0 0.0
  %1606 = vmatprep.subr.mxu0 0.0
  %1607 = vmatpush1.msra.mxu0 0.0
  %1608 = vmatprep.subr.mxu0 0.0
  %1609 = vmatpush1.msra.mxu0 0.0
  %1610 = vmatprep.subr.mxu0 0.0
  %1611 = vmatpush1.msra.mxu0 0.0
  %1612 = vmatprep.subr.mxu0 0.0
  %1613 = vmatpush1.msra.mxu0 0.0
  %1614 = vmatprep.subr.mxu0 0.0
  %1615 = vmatpush1.msra.mxu0 0.0
  %1616 = vmatprep.subr.mxu0 0.0
  %1617 = vmatpush1.msra.mxu0 0.0
  %1618 = vmatprep.subr.mxu0 0.0
  %1619 = vmatpush1.msra.mxu0 0.0
  %1620 = vmatprep.subr.mxu0 0.0
  %1621 = vmatpush1.msra.mxu0 0.0
  %1622 = vmatprep.subr.mxu0 0.0
  %1623 = vmatpush1.msra.mxu0 0.0
  %1624 = vmatprep.subr.mxu0 0.0
  %1625 = vmatpush1.msra.mxu0 0.0
  %1626 = vmatprep.subr.mxu0 0.0
  %1627 = vmatpush1.msra.mxu0 0.0
  %1628 = vmatprep.subr.mxu0 0.0
  %1629 = vmatpush1.msra.mxu0 0.0
  %1630 = vmatprep.subr.mxu0 0.0
  %1631 = vmatpush1.msra.mxu0 0.0
  %1632 = vmatprep.subr.mxu0 0.0
  %1633 = vmatpush1.msra.mxu0 0.0
  %1634 = vmatprep.subr.mxu0 0.0
  %1635 = vmatpush1.msra.mxu0 0.0
  %1636 = vmatprep.subr.mxu0 0.0
  %1637 = vmatpush1.msra.mxu0 0.0
  %1638 = vmatprep.subr.mxu0 0.0
  %1639 = vmatpush1.msra.mxu0 0.0
  %1640 = vmatprep.subr.mxu0 0.0
  %1641 = vmatpush1.msra.mxu0 0.0
  %1642 = vmatprep.subr.mxu0 0.0
  %1643 = vmatpush1.msra.mxu0 0.0
  %1644 = vmatprep.subr.mxu0 0.0
  %1645 = vmatpush1.msra.mxu0 0.0
  %1646 = vmatprep.subr.mxu0 0.0
  %1647 = vmatpush1.msra.mxu0 0.0
  %1648 = vmatprep.subr.mxu0 0.0
  %1649 = vmatpush1.msra.mxu0 0.0
  %1650 = vmatprep.subr.mxu0 0.0
  %1651 = vmatpush1.msra.mxu0 0.0
  %1652 = vmatprep.subr.mxu0 0.0
  %1653 = vmatpush1.msra.mxu0 0.0
  %1654 = vmatprep.subr.mxu0 0.0
  %1655 = vmatpush1.msra.mxu0 0.0
  %1656 = vmatprep.subr.mxu0 0.0
  %1657 = vmatpush1.msra.mxu0 0.0
  %1658 = vmatprep.subr.mxu0 0.0
  %1659 = vmatpush1.msra.mxu0 0.0
  %1660 = vmatprep.mubr.f32.mxu0 0.0
  %1661 = vmatmul.mubr.f32.gmra.mrb[0].mxu0 %v1594
  %v1662 = vpop.f32.mrb[0].mxu0
  %v1663 = vadd.f32 0.0, %v1662
  %v1664 = vpop.f32.mrb[0].mxu0
  %1665 = vdwg.mxu0
  %v1666 = vadd.f32 %v1549, %v1663
  %v1667 = vxor.u32 %v1666, 2147483648
  %v1668 = vmul.f32 %v1667, 1.442695
  %v1669 = vpow.pop %v1668
  %v1670 = vadd.f32 %v1669, 1.0
  %v1671 = vrcp.pop %v1670
  %v1672 = vmul.f32 1.0, %v1671
  %v1673 = vtanh.pop %v1666
  %1675 = vrot.lane.b32.xlu0 %v1590, 32
  %v1676 = vpop.permute.xlu0 %1675
  %v1678 = vmul.f32 %v1672, %v1676
  %1680 = vrot.lane.b32.xlu0 %v1673, 32
  %v1681 = vpop.permute.xlu0 %1680
  %v1683 = vmul.f32 %v1672, %v1681
  %1685 = vrot.lane.b32.xlu0 %v1683, 32
  %v1686 = vpop.permute.xlu0 %1685
  %v1688 = vadd.f32 %v1678, %v1686
  %v1689 = vtanh.pop %v1688
  %1691 = vrot.lane.b32.xlu0 %v1689, 32
  %v1692 = vpop.permute.xlu0 %1691
  %v1694 = vmul.f32 %v1672, %v1692
  %1696 = vrot.lane.b32.xlu0 %v1356, 64
  %v1697 = vpop.permute.xlu0 %1696
  %v1699 = vadd.f32 %v1694, %v1697
  %1701 = vrot.lane.b32.xlu0 %v1699, 64
  %v1702 = vpop.permute.xlu0 %1701
  %v1704 = vmax.f32 %v1592, %v1702
  %1706 = vrot.lane.b32.xlu0 %v1694, 64
  %v1707 = vpop.permute.xlu0 %1706
  %v1708 = vsel %vm175, %v1707, 0
  %1710 = vmatprep.subr.mxu0 0.0
  %1711 = vmatpush1.msra.mxu0 %v1370
  %1712 = vmatprep.subr.mxu0 0.0
  %1713 = vmatpush1.msra.mxu0 %v1371
  %1714 = vmatprep.subr.mxu0 0.0
  %1715 = vmatpush1.msra.mxu0 %v1372
  %1716 = vmatprep.subr.mxu0 0.0
  %1717 = vmatpush1.msra.mxu0 %v1373
  %1718 = vmatprep.subr.mxu0 0.0
  %1719 = vmatpush1.msra.mxu0 0.0
  %1720 = vmatprep.subr.mxu0 0.0
  %1721 = vmatpush1.msra.mxu0 0.0
  %1722 = vmatprep.subr.mxu0 0.0
  %1723 = vmatpush1.msra.mxu0 0.0
  %1724 = vmatprep.subr.mxu0 0.0
  %1725 = vmatpush1.msra.mxu0 0.0
  %1726 = vmatprep.subr.mxu0 0.0
  %1727 = vmatpush1.msra.mxu0 0.0
  %1728 = vmatprep.subr.mxu0 0.0
  %1729 = vmatpush1.msra.mxu0 0.0
  %1730 = vmatprep.subr.mxu0 0.0
  %1731 = vmatpush1.msra.mxu0 0.0
  %1732 = vmatprep.subr.mxu0 0.0
  %1733 = vmatpush1.msra.mxu0 0.0
  %1734 = vmatprep.subr.mxu0 0.0
  %1735 = vmatpush1.msra.mxu0 0.0
  %1736 = vmatprep.subr.mxu0 0.0
  %1737 = vmatpush1.msra.mxu0 0.0
  %1738 = vmatprep.subr.mxu0 0.0
  %1739 = vmatpush1.msra.mxu0 0.0
  %1740 = vmatprep.subr.mxu0 0.0
  %1741 = vmatpush1.msra.mxu0 0.0
  %1742 = vmatprep.subr.mxu0 0.0
  %1743 = vmatpush1.msra.mxu0 0.0
  %1744 = vmatprep.subr.mxu0 0.0
  %1745 = vmatpush1.msra.mxu0 0.0
  %1746 = vmatprep.subr.mxu0 0.0
  %1747 = vmatpush1.msra.mxu0 0.0
  %1748 = vmatprep.subr.mxu0 0.0
  %1749 = vmatpush1.msra.mxu0 0.0
  %1750 = vmatprep.subr.mxu0 0.0
  %1751 = vmatpush1.msra.mxu0 0.0
  %1752 = vmatprep.subr.mxu0 0.0
  %1753 = vmatpush1.msra.mxu0 0.0
  %1754 = vmatprep.subr.mxu0 0.0
  %1755 = vmatpush1.msra.mxu0 0.0
  %1756 = vmatprep.subr.mxu0 0.0
  %1757 = vmatpush1.msra.mxu0 0.0
  %1758 = vmatprep.subr.mxu0 0.0
  %1759 = vmatpush1.msra.mxu0 0.0
  %1760 = vmatprep.subr.mxu0 0.0
  %1761 = vmatpush1.msra.mxu0 0.0
  %1762 = vmatprep.subr.mxu0 0.0
  %1763 = vmatpush1.msra.mxu0 0.0
  %1764 = vmatprep.subr.mxu0 0.0
  %1765 = vmatpush1.msra.mxu0 0.0
  %1766 = vmatprep.subr.mxu0 0.0
  %1767 = vmatpush1.msra.mxu0 0.0
  %1768 = vmatprep.subr.mxu0 0.0
  %1769 = vmatpush1.msra.mxu0 0.0
  %1770 = vmatprep.subr.mxu0 0.0
  %1771 = vmatpush1.msra.mxu0 0.0
  %1772 = vmatprep.subr.mxu0 0.0
  %1773 = vmatpush1.msra.mxu0 0.0
  %1774 = vmatprep.mubr.f32.mxu0 0.0
  %1775 = vmatmul.mubr.f32.gmra.mrb[0].mxu0 %v1708
  %v1776 = vpop.f32.mrb[0].mxu0
  %v1777 = vadd.f32 0.0, %v1776
  %v1778 = vpop.f32.mrb[0].mxu0
  %1779 = vdwg.mxu0
  %v1780 = vadd.f32 %v1554, %v1777
  %v1781 = vxor.u32 %v1780, 2147483648
  %v1782 = vmul.f32 %v1781, 1.442695
  %v1783 = vpow.pop %v1782
  %v1784 = vadd.f32 %v1783, 1.0
  %v1785 = vrcp.pop %v1784
  %v1786 = vmul.f32 1.0, %v1785
  %v1787 = vtanh.pop %v1780
  %v1788 = vmul.f32 %v1786, %v1688
  %1790 = vrot.lane.b32.xlu0 %v1787, 32
  %v1791 = vpop.permute.xlu0 %1790
  %v1793 = vmul.f32 %v1786, %v1791
  %1795 = vrot.lane.b32.xlu0 %v1793, 32
  %v1796 = vpop.permute.xlu0 %1795
  %v1798 = vadd.f32 %v1788, %v1796
  %v1799 = vtanh.pop %v1798
  %1801 = vrot.lane.b32.xlu0 %v1799, 32
  %v1802 = vpop.permute.xlu0 %1801
  %v1804 = vmul.f32 %v1786, %v1802
  %1806 = vrot.lane.b32.xlu0 %v1357, 64
  %v1807 = vpop.permute.xlu0 %1806
  %v1809 = vadd.f32 %v1804, %v1807
  %1811 = vrot.lane.b32.xlu0 %v1809, 64
  %v1812 = vpop.permute.xlu0 %1811
  %v1814 = vmax.f32 %v1704, %v1812
  %1816 = vrot.lane.b32.xlu0 %v1804, 64
  %v1817 = vpop.permute.xlu0 %1816
  %v1818 = vsel %vm175, %v1817, 0
  %1820 = vmatprep.subr.mxu0 0.0
  %1821 = vmatpush1.msra.mxu0 %v1370
  %1822 = vmatprep.subr.mxu0 0.0
  %1823 = vmatpush1.msra.mxu0 %v1371
  %1824 = vmatprep.subr.mxu0 0.0
  %1825 = vmatpush1.msra.mxu0 %v1372
  %1826 = vmatprep.subr.mxu0 0.0
  %1827 = vmatpush1.msra.mxu0 %v1373
  %1828 = vmatprep.subr.mxu0 0.0
  %1829 = vmatpush1.msra.mxu0 0.0
  %1830 = vmatprep.subr.mxu0 0.0
  %1831 = vmatpush1.msra.mxu0 0.0
  %1832 = vmatprep.subr.mxu0 0.0
  %1833 = vmatpush1.msra.mxu0 0.0
  %1834 = vmatprep.subr.mxu0 0.0
  %1835 = vmatpush1.msra.mxu0 0.0
  %1836 = vmatprep.subr.mxu0 0.0
  %1837 = vmatpush1.msra.mxu0 0.0
  %1838 = vmatprep.subr.mxu0 0.0
  %1839 = vmatpush1.msra.mxu0 0.0
  %1840 = vmatprep.subr.mxu0 0.0
  %1841 = vmatpush1.msra.mxu0 0.0
  %1842 = vmatprep.subr.mxu0 0.0
  %1843 = vmatpush1.msra.mxu0 0.0
  %1844 = vmatprep.subr.mxu0 0.0
  %1845 = vmatpush1.msra.mxu0 0.0
  %1846 = vmatprep.subr.mxu0 0.0
  %1847 = vmatpush1.msra.mxu0 0.0
  %1848 = vmatprep.subr.mxu0 0.0
  %1849 = vmatpush1.msra.mxu0 0.0
  %1850 = vmatprep.subr.mxu0 0.0
  %1851 = vmatpush1.msra.mxu0 0.0
  %1852 = vmatprep.subr.mxu0 0.0
  %1853 = vmatpush1.msra.mxu0 0.0
  %1854 = vmatprep.subr.mxu0 0.0
  %1855 = vmatpush1.msra.mxu0 0.0
  %1856 = vmatprep.subr.mxu0 0.0
  %1857 = vmatpush1.msra.mxu0 0.0
  %1858 = vmatprep.subr.mxu0 0.0
  %1859 = vmatpush1.msra.mxu0 0.0
  %1860 = vmatprep.subr.mxu0 0.0
  %1861 = vmatpush1.msra.mxu0 0.0
  %1862 = vmatprep.subr.mxu0 0.0
  %1863 = vmatpush1.msra.mxu0 0.0
  %1864 = vmatprep.subr.mxu0 0.0
  %1865 = vmatpush1.msra.mxu0 0.0
  %1866 = vmatprep.subr.mxu0 0.0
  %1867 = vmatpush1.msra.mxu0 0.0
  %1868 = vmatprep.subr.mxu0 0.0
  %1869 = vmatpush1.msra.mxu0 0.0
  %1870 = vmatprep.subr.mxu0 0.0
  %1871 = vmatpush1.msra.mxu0 0.0
  %1872 = vmatprep.subr.mxu0 0.0
  %1873 = vmatpush1.msra.mxu0 0.0
  %1874 = vmatprep.subr.mxu0 0.0
  %1875 = vmatpush1.msra.mxu0 0.0
  %1876 = vmatprep.subr.mxu0 0.0
  %1877 = vmatpush1.msra.mxu0 0.0
  %1878 = vmatprep.subr.mxu0 0.0
  %1879 = vmatpush1.msra.mxu0 0.0
  %1880 = vmatprep.subr.mxu0 0.0
  %1881 = vmatpush1.msra.mxu0 0.0
  %1882 = vmatprep.subr.mxu0 0.0
  %1883 = vmatpush1.msra.mxu0 0.0
  %1884 = vmatprep.mubr.f32.mxu0 0.0
  %1885 = vmatmul.mubr.f32.gmra.mrb[0].mxu0 %v1818
  %v1886 = vpop.f32.mrb[0].mxu0
  %v1887 = vadd.f32 0.0, %v1886
  %v1888 = vpop.f32.mrb[0].mxu0
  %1889 = vdwg.mxu0
  %v1890 = vadd.f32 %v1559, %v1887
  %v1891 = vxor.u32 %v1890, 2147483648
  %v1892 = vmul.f32 %v1891, 1.442695
  %v1893 = vpow.pop %v1892
  %v1894 = vadd.f32 %v1893, 1.0
  %v1895 = vrcp.pop %v1894
  %v1896 = vmul.f32 1.0, %v1895
  %v1897 = vtanh.pop %v1890
  %v1898 = vmul.f32 %v1896, %v1798
  %1900 = vrot.lane.b32.xlu0 %v1897, 32
  %v1901 = vpop.permute.xlu0 %1900
  %v1903 = vmul.f32 %v1896, %v1901
  %1905 = vrot.lane.b32.xlu0 %v1903, 32
  %v1906 = vpop.permute.xlu0 %1905
  %v1908 = vadd.f32 %v1898, %v1906
  %v1909 = vtanh.pop %v1908
  %1911 = vrot.lane.b32.xlu0 %v1909, 32
  %v1912 = vpop.permute.xlu0 %1911
  %v1914 = vmul.f32 %v1896, %v1912
  %1916 = vrot.lane.b32.xlu0 %v1358, 64
  %v1917 = vpop.permute.xlu0 %1916
  %v1919 = vadd.f32 %v1914, %v1917
  %1921 = vrot.lane.b32.xlu0 %v1919, 64
  %v1922 = vpop.permute.xlu0 %1921
  %v1924 = vmax.f32 %v1814, %v1922
  %1926 = vrot.lane.b32.xlu0 %v1914, 64
  %v1927 = vpop.permute.xlu0 %1926
  %v1928 = vsel %vm175, %v1927, 0
  %1930 = vmatprep.subr.mxu0 0.0
  %1931 = vmatpush1.msra.mxu0 %v1370
  %1932 = vmatprep.subr.mxu0 0.0
  %1933 = vmatpush1.msra.mxu0 %v1371
  %1934 = vmatprep.subr.mxu0 0.0
  %1935 = vmatpush1.msra.mxu0 %v1372
  %1936 = vmatprep.subr.mxu0 0.0
  %1937 = vmatpush1.msra.mxu0 %v1373
  %1938 = vmatprep.subr.mxu0 0.0
  %1939 = vmatpush1.msra.mxu0 0.0
  %1940 = vmatprep.subr.mxu0 0.0
  %1941 = vmatpush1.msra.mxu0 0.0
  %1942 = vmatprep.subr.mxu0 0.0
  %1943 = vmatpush1.msra.mxu0 0.0
  %1944 = vmatprep.subr.mxu0 0.0
  %1945 = vmatpush1.msra.mxu0 0.0
  %1946 = vmatprep.subr.mxu0 0.0
  %1947 = vmatpush1.msra.mxu0 0.0
  %1948 = vmatprep.subr.mxu0 0.0
  %1949 = vmatpush1.msra.mxu0 0.0
  %1950 = vmatprep.subr.mxu0 0.0
  %1951 = vmatpush1.msra.mxu0 0.0
  %1952 = vmatprep.subr.mxu0 0.0
  %1953 = vmatpush1.msra.mxu0 0.0
  %1954 = vmatprep.subr.mxu0 0.0
  %1955 = vmatpush1.msra.mxu0 0.0
  %1956 = vmatprep.subr.mxu0 0.0
  %1957 = vmatpush1.msra.mxu0 0.0
  %1958 = vmatprep.subr.mxu0 0.0
  %1959 = vmatpush1.msra.mxu0 0.0
  %1960 = vmatprep.subr.mxu0 0.0
  %1961 = vmatpush1.msra.mxu0 0.0
  %1962 = vmatprep.subr.mxu0 0.0
  %1963 = vmatpush1.msra.mxu0 0.0
  %1964 = vmatprep.subr.mxu0 0.0
  %1965 = vmatpush1.msra.mxu0 0.0
  %1966 = vmatprep.subr.mxu0 0.0
  %1967 = vmatpush1.msra.mxu0 0.0
  %1968 = vmatprep.subr.mxu0 0.0
  %1969 = vmatpush1.msra.mxu0 0.0
  %1970 = vmatprep.subr.mxu0 0.0
  %1971 = vmatpush1.msra.mxu0 0.0
  %1972 = vmatprep.subr.mxu0 0.0
  %1973 = vmatpush1.msra.mxu0 0.0
  %1974 = vmatprep.subr.mxu0 0.0
  %1975 = vmatpush1.msra.mxu0 0.0
  %1976 = vmatprep.subr.mxu0 0.0
  %1977 = vmatpush1.msra.mxu0 0.0
  %1978 = vmatprep.subr.mxu0 0.0
  %1979 = vmatpush1.msra.mxu0 0.0
  %1980 = vmatprep.subr.mxu0 0.0
  %1981 = vmatpush1.msra.mxu0 0.0
  %1982 = vmatprep.subr.mxu0 0.0
  %1983 = vmatpush1.msra.mxu0 0.0
  %1984 = vmatprep.subr.mxu0 0.0
  %1985 = vmatpush1.msra.mxu0 0.0
  %1986 = vmatprep.subr.mxu0 0.0
  %1987 = vmatpush1.msra.mxu0 0.0
  %1988 = vmatprep.subr.mxu0 0.0
  %1989 = vmatpush1.msra.mxu0 0.0
  %1990 = vmatprep.subr.mxu0 0.0
  %1991 = vmatpush1.msra.mxu0 0.0
  %1992 = vmatprep.subr.mxu0 0.0
  %1993 = vmatpush1.msra.mxu0 0.0
  %1994 = vmatprep.mubr.f32.mxu0 0.0
  %1995 = vmatmul.mubr.f32.gmra.mrb[0].mxu0 %v1928
  %v1996 = vpop.f32.mrb[0].mxu0
  %v1997 = vadd.f32 0.0, %v1996
  %v1998 = vpop.f32.mrb[0].mxu0
  %1999 = vdwg.mxu0
  %v2000 = vadd.f32 %v1564, %v1997
  %v2001 = vxor.u32 %v2000, 2147483648
  %v2002 = vmul.f32 %v2001, 1.442695
  %v2003 = vpow.pop %v2002
  %v2004 = vadd.f32 %v2003, 1.0
  %v2005 = vrcp.pop %v2004
  %v2006 = vmul.f32 1.0, %v2005
  %v2007 = vtanh.pop %v2000
  %v2008 = vmul.f32 %v2006, %v1908
  %2010 = vrot.lane.b32.xlu0 %v2007, 32
  %v2011 = vpop.permute.xlu0 %2010
  %v2013 = vmul.f32 %v2006, %v2011
  %2015 = vrot.lane.b32.xlu0 %v2013, 32
  %v2016 = vpop.permute.xlu0 %2015
  %v2018 = vadd.f32 %v2008, %v2016
  %v2019 = vtanh.pop %v2018
  %2021 = vrot.lane.b32.xlu0 %v2019, 32
  %v2022 = vpop.permute.xlu0 %2021
  %v2024 = vmul.f32 %v2006, %v2022
  %2026 = vrot.lane.b32.xlu0 %v1359, 64
  %v2027 = vpop.permute.xlu0 %2026
  %v2029 = vadd.f32 %v2024, %v2027
  %2031 = vrot.lane.b32.xlu0 %v2029, 64
  %v2032 = vpop.permute.xlu0 %2031
  %v2034 = vmax.f32 %v1924, %v2032
  %2036 = vrot.lane.b32.xlu0 %v2024, 64
  %v2037 = vpop.permute.xlu0 %2036
  %v2038 = vsel %vm175, %v2037, 0
  %2040 = vmatprep.subr.mxu0 0.0
  %2041 = vmatpush1.msra.mxu0 %v1370
  %2042 = vmatprep.subr.mxu0 0.0
  %2043 = vmatpush1.msra.mxu0 %v1371
  %2044 = vmatprep.subr.mxu0 0.0
  %2045 = vmatpush1.msra.mxu0 %v1372
  %2046 = vmatprep.subr.mxu0 0.0
  %2047 = vmatpush1.msra.mxu0 %v1373
  %2048 = vmatprep.subr.mxu0 0.0
  %2049 = vmatpush1.msra.mxu0 0.0
  %2050 = vmatprep.subr.mxu0 0.0
  %2051 = vmatpush1.msra.mxu0 0.0
  %2052 = vmatprep.subr.mxu0 0.0
  %2053 = vmatpush1.msra.mxu0 0.0
  %2054 = vmatprep.subr.mxu0 0.0
  %2055 = vmatpush1.msra.mxu0 0.0
  %2056 = vmatprep.subr.mxu0 0.0
  %2057 = vmatpush1.msra.mxu0 0.0
  %2058 = vmatprep.subr.mxu0 0.0
  %2059 = vmatpush1.msra.mxu0 0.0
  %2060 = vmatprep.subr.mxu0 0.0
  %2061 = vmatpush1.msra.mxu0 0.0
  %2062 = vmatprep.subr.mxu0 0.0
  %2063 = vmatpush1.msra.mxu0 0.0
  %2064 = vmatprep.subr.mxu0 0.0
  %2065 = vmatpush1.msra.mxu0 0.0
  %2066 = vmatprep.subr.mxu0 0.0
  %2067 = vmatpush1.msra.mxu0 0.0
  %2068 = vmatprep.subr.mxu0 0.0
  %2069 = vmatpush1.msra.mxu0 0.0
  %2070 = vmatprep.subr.mxu0 0.0
  %2071 = vmatpush1.msra.mxu0 0.0
  %2072 = vmatprep.subr.mxu0 0.0
  %2073 = vmatpush1.msra.mxu0 0.0
  %2074 = vmatprep.subr.mxu0 0.0
  %2075 = vmatpush1.msra.mxu0 0.0
  %2076 = vmatprep.subr.mxu0 0.0
  %2077 = vmatpush1.msra.mxu0 0.0
  %2078 = vmatprep.subr.mxu0 0.0
  %2079 = vmatpush1.msra.mxu0 0.0
  %2080 = vmatprep.subr.mxu0 0.0
  %2081 = vmatpush1.msra.mxu0 0.0
  %2082 = vmatprep.subr.mxu0 0.0
  %2083 = vmatpush1.msra.mxu0 0.0
  %2084 = vmatprep.subr.mxu0 0.0
  %2085 = vmatpush1.msra.mxu0 0.0
  %2086 = vmatprep.subr.mxu0 0.0
  %2087 = vmatpush1.msra.mxu0 0.0
  %2088 = vmatprep.subr.mxu0 0.0
  %2089 = vmatpush1.msra.mxu0 0.0
  %2090 = vmatprep.subr.mxu0 0.0
  %2091 = vmatpush1.msra.mxu0 0.0
  %2092 = vmatprep.subr.mxu0 0.0
  %2093 = vmatpush1.msra.mxu0 0.0
  %2094 = vmatprep.subr.mxu0 0.0
  %2095 = vmatpush1.msra.mxu0 0.0
  %2096 = vmatprep.subr.mxu0 0.0
  %2097 = vmatpush1.msra.mxu0 0.0
  %2098 = vmatprep.subr.mxu0 0.0
  %2099 = vmatpush1.msra.mxu0 0.0
  %2100 = vmatprep.subr.mxu0 0.0
  %2101 = vmatpush1.msra.mxu0 0.0
  %2102 = vmatprep.subr.mxu0 0.0
  %2103 = vmatpush1.msra.mxu0 0.0
  %2104 = vmatprep.mubr.f32.mxu0 0.0
  %2105 = vmatmul.mubr.f32.gmra.mrb[0].mxu0 %v2038
  %v2106 = vpop.f32.mrb[0].mxu0
  %v2107 = vadd.f32 0.0, %v2106
  %v2108 = vpop.f32.mrb[0].mxu0
  %2109 = vdwg.mxu0
  %v2110 = vadd.f32 %v1569, %v2107
  %v2111 = vxor.u32 %v2110, 2147483648
  %v2112 = vmul.f32 %v2111, 1.442695
  %v2113 = vpow.pop %v2112
  %v2114 = vadd.f32 %v2113, 1.0
  %v2115 = vrcp.pop %v2114
  %v2116 = vmul.f32 1.0, %v2115
  %v2117 = vtanh.pop %v2110
  %v2118 = vmul.f32 %v2116, %v2018
  %2120 = vrot.lane.b32.xlu0 %v2117, 32
  %v2121 = vpop.permute.xlu0 %2120
  %v2123 = vmul.f32 %v2116, %v2121
  %2125 = vrot.lane.b32.xlu0 %v2123, 32
  %v2126 = vpop.permute.xlu0 %2125
  %v2128 = vadd.f32 %v2118, %v2126
  %v2129 = vtanh.pop %v2128
  %2131 = vrot.lane.b32.xlu0 %v2129, 32
  %v2132 = vpop.permute.xlu0 %2131
  %v2134 = vmul.f32 %v2116, %v2132
  %2136 = vrot.lane.b32.xlu0 %v1360, 64
  %v2137 = vpop.permute.xlu0 %2136
  %v2139 = vadd.f32 %v2134, %v2137
  %2141 = vrot.lane.b32.xlu0 %v2139, 64
  %v2142 = vpop.permute.xlu0 %2141
  %v2144 = vmax.f32 %v2034, %v2142
  %2146 = vrot.lane.b32.xlu0 %v2134, 64
  %v2147 = vpop.permute.xlu0 %2146
  %v2148 = vsel %vm175, %v2147, 0
  %2150 = vmatprep.subr.mxu0 0.0
  %2151 = vmatpush1.msra.mxu0 %v1370
  %2152 = vmatprep.subr.mxu0 0.0
  %2153 = vmatpush1.msra.mxu0 %v1371
  %2154 = vmatprep.subr.mxu0 0.0
  %2155 = vmatpush1.msra.mxu0 %v1372
  %2156 = vmatprep.subr.mxu0 0.0
  %2157 = vmatpush1.msra.mxu0 %v1373
  %2158 = vmatprep.subr.mxu0 0.0
  %2159 = vmatpush1.msra.mxu0 0.0
  %2160 = vmatprep.subr.mxu0 0.0
  %2161 = vmatpush1.msra.mxu0 0.0
  %2162 = vmatprep.subr.mxu0 0.0
  %2163 = vmatpush1.msra.mxu0 0.0
  %2164 = vmatprep.subr.mxu0 0.0
  %2165 = vmatpush1.msra.mxu0 0.0
  %2166 = vmatprep.subr.mxu0 0.0
  %2167 = vmatpush1.msra.mxu0 0.0
  %2168 = vmatprep.subr.mxu0 0.0
  %2169 = vmatpush1.msra.mxu0 0.0
  %2170 = vmatprep.subr.mxu0 0.0
  %2171 = vmatpush1.msra.mxu0 0.0
  %2172 = vmatprep.subr.mxu0 0.0
  %2173 = vmatpush1.msra.mxu0 0.0
  %2174 = vmatprep.subr.mxu0 0.0
  %2175 = vmatpush1.msra.mxu0 0.0
  %2176 = vmatprep.subr.mxu0 0.0
  %2177 = vmatpush1.msra.mxu0 0.0
  %2178 = vmatprep.subr.mxu0 0.0
  %2179 = vmatpush1.msra.mxu0 0.0
  %2180 = vmatprep.subr.mxu0 0.0
  %2181 = vmatpush1.msra.mxu0 0.0
  %2182 = vmatprep.subr.mxu0 0.0
  %2183 = vmatpush1.msra.mxu0 0.0
  %2184 = vmatprep.subr.mxu0 0.0
  %2185 = vmatpush1.msra.mxu0 0.0
  %2186 = vmatprep.subr.mxu0 0.0
  %2187 = vmatpush1.msra.mxu0 0.0
  %2188 = vmatprep.subr.mxu0 0.0
  %2189 = vmatpush1.msra.mxu0 0.0
  %2190 = vmatprep.subr.mxu0 0.0
  %2191 = vmatpush1.msra.mxu0 0.0
  %2192 = vmatprep.subr.mxu0 0.0
  %2193 = vmatpush1.msra.mxu0 0.0
  %2194 = vmatprep.subr.mxu0 0.0
  %2195 = vmatpush1.msra.mxu0 0.0
  %2196 = vmatprep.subr.mxu0 0.0
  %2197 = vmatpush1.msra.mxu0 0.0
  %2198 = vmatprep.subr.mxu0 0.0
  %2199 = vmatpush1.msra.mxu0 0.0
  %2200 = vmatprep.subr.mxu0 0.0
  %2201 = vmatpush1.msra.mxu0 0.0
  %2202 = vmatprep.subr.mxu0 0.0
  %2203 = vmatpush1.msra.mxu0 0.0
  %2204 = vmatprep.subr.mxu0 0.0
  %2205 = vmatpush1.msra.mxu0 0.0
  %2206 = vmatprep.subr.mxu0 0.0
  %2207 = vmatpush1.msra.mxu0 0.0
  %2208 = vmatprep.subr.mxu0 0.0
  %2209 = vmatpush1.msra.mxu0 0.0
  %2210 = vmatprep.subr.mxu0 0.0
  %2211 = vmatpush1.msra.mxu0 0.0
  %2212 = vmatprep.subr.mxu0 0.0
  %2213 = vmatpush1.msra.mxu0 0.0
  %2214 = vmatprep.mubr.f32.mxu0 0.0
  %2215 = vmatmul.mubr.f32.gmra.mrb[0].mxu0 %v2148
  %v2216 = vpop.f32.mrb[0].mxu0
  %v2217 = vadd.f32 0.0, %v2216
  %v2218 = vpop.f32.mrb[0].mxu0
  %2219 = vdwg.mxu0
  %v2220 = vadd.f32 %v1574, %v2217
  %v2221 = vxor.u32 %v2220, 2147483648
  %v2222 = vmul.f32 %v2221, 1.442695
  %v2223 = vpow.pop %v2222
  %v2224 = vadd.f32 %v2223, 1.0
  %v2225 = vrcp.pop %v2224
  %v2226 = vmul.f32 1.0, %v2225
  %v2227 = vtanh.pop %v2220
  %v2228 = vmul.f32 %v2226, %v2128
  %2230 = vrot.lane.b32.xlu0 %v2227, 32
  %v2231 = vpop.permute.xlu0 %2230
  %v2233 = vmul.f32 %v2226, %v2231
  %2235 = vrot.lane.b32.xlu0 %v2233, 32
  %v2236 = vpop.permute.xlu0 %2235
  %v2238 = vadd.f32 %v2228, %v2236
  %v2239 = vtanh.pop %v2238
  %2241 = vrot.lane.b32.xlu0 %v2239, 32
  %v2242 = vpop.permute.xlu0 %2241
  %v2244 = vmul.f32 %v2226, %v2242
  %2246 = vrot.lane.b32.xlu0 %v1361, 64
  %v2247 = vpop.permute.xlu0 %2246
  %v2249 = vadd.f32 %v2244, %v2247
  %2251 = vrot.lane.b32.xlu0 %v2249, 64
  %v2252 = vpop.permute.xlu0 %2251
  %v2254 = vmax.f32 %v2144, %v2252
  %2256 = vrot.lane.b32.xlu0 %v2244, 64
  %v2257 = vpop.permute.xlu0 %2256
  %v2258 = vsel %vm175, %v2257, 0
  %2260 = vmatprep.subr.mxu0 0.0
  %2261 = vmatpush1.msra.mxu0 %v1370
  %2262 = vmatprep.subr.mxu0 0.0
  %2263 = vmatpush1.msra.mxu0 %v1371
  %2264 = vmatprep.subr.mxu0 0.0
  %2265 = vmatpush1.msra.mxu0 %v1372
  %2266 = vmatprep.subr.mxu0 0.0
  %2267 = vmatpush1.msra.mxu0 %v1373
  %2268 = vmatprep.subr.mxu0 0.0
  %2269 = vmatpush1.msra.mxu0 0.0
  %2270 = vmatprep.subr.mxu0 0.0
  %2271 = vmatpush1.msra.mxu0 0.0
  %2272 = vmatprep.subr.mxu0 0.0
  %2273 = vmatpush1.msra.mxu0 0.0
  %2274 = vmatprep.subr.mxu0 0.0
  %2275 = vmatpush1.msra.mxu0 0.0
  %2276 = vmatprep.subr.mxu0 0.0
  %2277 = vmatpush1.msra.mxu0 0.0
  %2278 = vmatprep.subr.mxu0 0.0
  %2279 = vmatpush1.msra.mxu0 0.0
  %2280 = vmatprep.subr.mxu0 0.0
  %2281 = vmatpush1.msra.mxu0 0.0
  %2282 = vmatprep.subr.mxu0 0.0
  %2283 = vmatpush1.msra.mxu0 0.0
  %2284 = vmatprep.subr.mxu0 0.0
  %2285 = vmatpush1.msra.mxu0 0.0
  %2286 = vmatprep.subr.mxu0 0.0
  %2287 = vmatpush1.msra.mxu0 0.0
  %2288 = vmatprep.subr.mxu0 0.0
  %2289 = vmatpush1.msra.mxu0 0.0
  %2290 = vmatprep.subr.mxu0 0.0
  %2291 = vmatpush1.msra.mxu0 0.0
  %2292 = vmatprep.subr.mxu0 0.0
  %2293 = vmatpush1.msra.mxu0 0.0
  %2294 = vmatprep.subr.mxu0 0.0
  %2295 = vmatpush1.msra.mxu0 0.0
  %2296 = vmatprep.subr.mxu0 0.0
  %2297 = vmatpush1.msra.mxu0 0.0
  %2298 = vmatprep.subr.mxu0 0.0
  %2299 = vmatpush1.msra.mxu0 0.0
  %2300 = vmatprep.subr.mxu0 0.0
  %2301 = vmatpush1.msra.mxu0 0.0
  %2302 = vmatprep.subr.mxu0 0.0
  %2303 = vmatpush1.msra.mxu0 0.0
  %2304 = vmatprep.subr.mxu0 0.0
  %2305 = vmatpush1.msra.mxu0 0.0
  %2306 = vmatprep.subr.mxu0 0.0
  %2307 = vmatpush1.msra.mxu0 0.0
  %2308 = vmatprep.subr.mxu0 0.0
  %2309 = vmatpush1.msra.mxu0 0.0
  %2310 = vmatprep.subr.mxu0 0.0
  %2311 = vmatpush1.msra.mxu0 0.0
  %2312 = vmatprep.subr.mxu0 0.0
  %2313 = vmatpush1.msra.mxu0 0.0
  %2314 = vmatprep.subr.mxu0 0.0
  %2315 = vmatpush1.msra.mxu0 0.0
  %2316 = vmatprep.subr.mxu0 0.0
  %2317 = vmatpush1.msra.mxu0 0.0
  %2318 = vmatprep.subr.mxu0 0.0
  %2319 = vmatpush1.msra.mxu0 0.0
  %2320 = vmatprep.subr.mxu0 0.0
  %2321 = vmatpush1.msra.mxu0 0.0
  %2322 = vmatprep.subr.mxu0 0.0
  %2323 = vmatpush1.msra.mxu0 0.0
  %2324 = vmatprep.mubr.f32.mxu0 0.0
  %2325 = vmatmul.mubr.f32.gmra.mrb[0].mxu0 %v2258
  %v2326 = vpop.f32.mrb[0].mxu0
  %v2327 = vadd.f32 0.0, %v2326
  %v2328 = vpop.f32.mrb[0].mxu0
  %2329 = vdwg.mxu0
  %v2330 = vadd.f32 %v1579, %v2327
  %v2331 = vxor.u32 %v2330, 2147483648
  %v2332 = vmul.f32 %v2331, 1.442695
  %v2333 = vpow.pop %v2332
  %v2334 = vadd.f32 %v2333, 1.0
  %v2335 = vrcp.pop %v2334
  %v2336 = vmul.f32 1.0, %v2335
  %v2337 = vtanh.pop %v2330
  %v2338 = vmul.f32 %v2336, %v2238
  %2340 = vrot.lane.b32.xlu0 %v2337, 32
  %v2341 = vpop.permute.xlu0 %2340
  %v2343 = vmul.f32 %v2336, %v2341
  %2345 = vrot.lane.b32.xlu0 %v2343, 32
  %v2346 = vpop.permute.xlu0 %2345
  %v2348 = vadd.f32 %v2338, %v2346
  %v2349 = vtanh.pop %v2348
  %2351 = vrot.lane.b32.xlu0 %v2349, 32
  %v2352 = vpop.permute.xlu0 %2351
  %v2354 = vmul.f32 %v2336, %v2352
  %2356 = vrot.lane.b32.xlu0 %v1362, 64
  %v2357 = vpop.permute.xlu0 %2356
  %v2359 = vadd.f32 %v2354, %v2357
  %2361 = vrot.lane.b32.xlu0 %v2359, 64
  %v2362 = vpop.permute.xlu0 %2361
  %v2364 = vmax.f32 %v2254, %v2362
  %2366 = vrot.lane.b32.xlu0 %v2354, 64
  %v2367 = vpop.permute.xlu0 %2366
  %v2368 = vsel %vm175, %v2367, 0
  %2370 = vmatprep.subr.mxu0 0.0
  %2371 = vmatpush1.msra.mxu0 %v1370
  %2372 = vmatprep.subr.mxu0 0.0
  %2373 = vmatpush1.msra.mxu0 %v1371
  %2374 = vmatprep.subr.mxu0 0.0
  %2375 = vmatpush1.msra.mxu0 %v1372
  %2376 = vmatprep.subr.mxu0 0.0
  %2377 = vmatpush1.msra.mxu0 %v1373
  %2378 = vmatprep.subr.mxu0 0.0
  %2379 = vmatpush1.msra.mxu0 0.0
  %2380 = vmatprep.subr.mxu0 0.0
  %2381 = vmatpush1.msra.mxu0 0.0
  %2382 = vmatprep.subr.mxu0 0.0
  %2383 = vmatpush1.msra.mxu0 0.0
  %2384 = vmatprep.subr.mxu0 0.0
  %2385 = vmatpush1.msra.mxu0 0.0
  %2386 = vmatprep.subr.mxu0 0.0
  %2387 = vmatpush1.msra.mxu0 0.0
  %2388 = vmatprep.subr.mxu0 0.0
  %2389 = vmatpush1.msra.mxu0 0.0
  %2390 = vmatprep.subr.mxu0 0.0
  %2391 = vmatpush1.msra.mxu0 0.0
  %2392 = vmatprep.subr.mxu0 0.0
  %2393 = vmatpush1.msra.mxu0 0.0
  %2394 = vmatprep.subr.mxu0 0.0
  %2395 = vmatpush1.msra.mxu0 0.0
  %2396 = vmatprep.subr.mxu0 0.0
  %2397 = vmatpush1.msra.mxu0 0.0
  %2398 = vmatprep.subr.mxu0 0.0
  %2399 = vmatpush1.msra.mxu0 0.0
  %2400 = vmatprep.subr.mxu0 0.0
  %2401 = vmatpush1.msra.mxu0 0.0
  %2402 = vmatprep.subr.mxu0 0.0
  %2403 = vmatpush1.msra.mxu0 0.0
  %2404 = vmatprep.subr.mxu0 0.0
  %2405 = vmatpush1.msra.mxu0 0.0
  %2406 = vmatprep.subr.mxu0 0.0
  %2407 = vmatpush1.msra.mxu0 0.0
  %2408 = vmatprep.subr.mxu0 0.0
  %2409 = vmatpush1.msra.mxu0 0.0
  %2410 = vmatprep.subr.mxu0 0.0
  %2411 = vmatpush1.msra.mxu0 0.0
  %2412 = vmatprep.subr.mxu0 0.0
  %2413 = vmatpush1.msra.mxu0 0.0
  %2414 = vmatprep.subr.mxu0 0.0
  %2415 = vmatpush1.msra.mxu0 0.0
  %2416 = vmatprep.subr.mxu0 0.0
  %2417 = vmatpush1.msra.mxu0 0.0
  %2418 = vmatprep.subr.mxu0 0.0
  %2419 = vmatpush1.msra.mxu0 0.0
  %2420 = vmatprep.subr.mxu0 0.0
  %2421 = vmatpush1.msra.mxu0 0.0
  %2422 = vmatprep.subr.mxu0 0.0
  %2423 = vmatpush1.msra.mxu0 0.0
  %2424 = vmatprep.subr.mxu0 0.0
  %2425 = vmatpush1.msra.mxu0 0.0
  %2426 = vmatprep.subr.mxu0 0.0
  %2427 = vmatpush1.msra.mxu0 0.0
  %2428 = vmatprep.subr.mxu0 0.0
  %2429 = vmatpush1.msra.mxu0 0.0
  %2430 = vmatprep.subr.mxu0 0.0
  %2431 = vmatpush1.msra.mxu0 0.0
  %2432 = vmatprep.subr.mxu0 0.0
  %2433 = vmatpush1.msra.mxu0 0.0
  %2434 = vmatprep.mubr.f32.mxu0 0.0
  %2435 = vmatmul.mubr.f32.gmra.mrb[0].mxu0 %v2368
  %v2436 = vpop.f32.mrb[0].mxu0
  %v2437 = vadd.f32 0.0, %v2436
  %v2438 = vpop.f32.mrb[0].mxu0
  %2439 = vdwg.mxu0
  %v2440 = vadd.f32 %v1584, %v2437
  %v2441 = vxor.u32 %v2440, 2147483648
  %v2442 = vmul.f32 %v2441, 1.442695
  %v2443 = vpow.pop %v2442
  %v2444 = vadd.f32 %v2443, 1.0
  %v2445 = vrcp.pop %v2444
  %v2446 = vmul.f32 1.0, %v2445
  %v2447 = vtanh.pop %v2440
  %v2448 = vmul.f32 %v2446, %v2348
  %2450 = vrot.lane.b32.xlu0 %v2447, 32
  %v2451 = vpop.permute.xlu0 %2450
  %v2453 = vmul.f32 %v2446, %v2451
  %2455 = vrot.lane.b32.xlu0 %v2453, 32
  %v2456 = vpop.permute.xlu0 %2455
  %v2458 = vadd.f32 %v2448, %v2456
  %v2459 = vtanh.pop %v2458
  %2461 = vrot.lane.b32.xlu0 %v2459, 32
  %v2462 = vpop.permute.xlu0 %2461
  %v2464 = vmul.f32 %v2446, %v2462
  %2466 = vrot.lane.b32.xlu0 %v1363, 64
  %v2467 = vpop.permute.xlu0 %2466
  %v2469 = vadd.f32 %v2464, %v2467
  %2471 = vrot.lane.b32.xlu0 %v2469, 64
  %v2472 = vpop.permute.xlu0 %2471
  %v2474 = vmax.f32 %v2364, %v2472
  %v2475 = vmul.f32 %v1454, %v2474
  %s2476 = scalar_lea.vmem %s11, 32
  %v2477 = vld [vmem:[%s2476] sm:$0xff]
  %v2478 = vld [vmem:[%s2476 + $0x8] sm:$0xff]
  %v2479 = vld [vmem:[%s2476 + $0x10] sm:$0xff]
  %v2480 = vld [vmem:[%s2476 + $0x18] sm:$0xff]
  %v2482 = vsel %vm175, %v2475, 0
  %2484 = vmatprep.subr.mxu0 0.0
  %2485 = vmatpush1.msra.mxu0 %v2477
  %2486 = vmatprep.subr.mxu0 0.0
  %2487 = vmatpush1.msra.mxu0 %v2478
  %2488 = vmatprep.subr.mxu0 0.0
  %2489 = vmatpush1.msra.mxu0 %v2479
  %2490 = vmatprep.subr.mxu0 0.0
  %2491 = vmatpush1.msra.mxu0 %v2480
  %2492 = vmatprep.subr.mxu0 0.0
  %2493 = vmatpush1.msra.mxu0 0.0
  %2494 = vmatprep.subr.mxu0 0.0
  %2495 = vmatpush1.msra.mxu0 0.0
  %2496 = vmatprep.subr.mxu0 0.0
  %2497 = vmatpush1.msra.mxu0 0.0
  %2498 = vmatprep.subr.mxu0 0.0
  %2499 = vmatpush1.msra.mxu0 0.0
  %2500 = vmatprep.subr.mxu0 0.0
  %2501 = vmatpush1.msra.mxu0 0.0
  %2502 = vmatprep.subr.mxu0 0.0
  %2503 = vmatpush1.msra.mxu0 0.0
  %2504 = vmatprep.subr.mxu0 0.0
  %2505 = vmatpush1.msra.mxu0 0.0
  %2506 = vmatprep.subr.mxu0 0.0
  %2507 = vmatpush1.msra.mxu0 0.0
  %2508 = vmatprep.subr.mxu0 0.0
  %2509 = vmatpush1.msra.mxu0 0.0
  %2510 = vmatprep.subr.mxu0 0.0
  %2511 = vmatpush1.msra.mxu0 0.0
  %2512 = vmatprep.subr.mxu0 0.0
  %2513 = vmatpush1.msra.mxu0 0.0
  %2514 = vmatprep.subr.mxu0 0.0
  %2515 = vmatpush1.msra.mxu0 0.0
  %2516 = vmatprep.subr.mxu0 0.0
  %2517 = vmatpush1.msra.mxu0 0.0
  %2518 = vmatprep.subr.mxu0 0.0
  %2519 = vmatpush1.msra.mxu0 0.0
  %2520 = vmatprep.subr.mxu0 0.0
  %2521 = vmatpush1.msra.mxu0 0.0
  %2522 = vmatprep.subr.mxu0 0.0
  %2523 = vmatpush1.msra.mxu0 0.0
  %2524 = vmatprep.subr.mxu0 0.0
  %2525 = vmatpush1.msra.mxu0 0.0
  %2526 = vmatprep.subr.mxu0 0.0
  %2527 = vmatpush1.msra.mxu0 0.0
  %2528 = vmatprep.subr.mxu0 0.0
  %2529 = vmatpush1.msra.mxu0 0.0
  %2530 = vmatprep.subr.mxu0 0.0
  %2531 = vmatpush1.msra.mxu0 0.0
  %2532 = vmatprep.subr.mxu0 0.0
  %2533 = vmatpush1.msra.mxu0 0.0
  %2534 = vmatprep.subr.mxu0 0.0
  %2535 = vmatpush1.msra.mxu0 0.0
  %2536 = vmatprep.subr.mxu0 0.0
  %2537 = vmatpush1.msra.mxu0 0.0
  %2538 = vmatprep.subr.mxu0 0.0
  %2539 = vmatpush1.msra.mxu0 0.0
  %2540 = vmatprep.subr.mxu0 0.0
  %2541 = vmatpush1.msra.mxu0 0.0
  %2542 = vmatprep.subr.mxu0 0.0
  %2543 = vmatpush1.msra.mxu0 0.0
  %2544 = vmatprep.subr.mxu0 0.0
  %2545 = vmatpush1.msra.mxu0 0.0
  %2546 = vmatprep.subr.mxu0 0.0
  %2547 = vmatpush1.msra.mxu0 0.0
  %2548 = vmatprep.mubr.f32.mxu0 0.0
  %2549 = vmatmul.mubr.f32.gmra.mrb[0].mxu0 %v2482
  %v2550 = vpop.f32.mrb[0].mxu0
  %v2551 = vadd.f32 0.0, %v2550
  %v2552 = vpop.f32.mrb[0].mxu0
  %2553 = vdwg.mxu0
  %v2554 = vadd.f32 %v1345, %v2551
  %v2555 = vmax.f32 %v2554, 0.0
  %v2556 = vld [vmem:[%s13] sm:$0xff]
  %v2557 = vld [vmem:[%s13 + $0x8] sm:$0xff]
  %v2558 = vld [vmem:[%s13 + $0x10] sm:$0xff]
  %v2559 = vld [vmem:[%s13 + $0x18] sm:$0xff]
  %v2560 = vld [vmem:[%s13 + $0x20] sm:$0xff]
  %v2561 = vld [vmem:[%s13 + $0x28] sm:$0xff]
  %v2562 = vld [vmem:[%s13 + $0x30] sm:$0xff]
  %v2563 = vld [vmem:[%s13 + $0x38] sm:$0xff]
  %v2564 = vld [vmem:[%s13 + $0x40] sm:$0xff]
  %v2565 = vld [vmem:[%s13 + $0x48] sm:$0xff]
  %v2566 = vld [vmem:[%s13 + $0x50] sm:$0xff]
  %v2567 = vld [vmem:[%s13 + $0x58] sm:$0xff]
  %v2568 = vld [vmem:[%s13 + $0x60] sm:$0xff]
  %v2569 = vld [vmem:[%s13 + $0x68] sm:$0xff]
  %v2570 = vld [vmem:[%s13 + $0x70] sm:$0xff]
  %v2571 = vld [vmem:[%s13 + $0x78] sm:$0xff]
  %v2572 = vld [vmem:[#allocation2] sm:$0x1]
  %v2574 = vlaneseq
  %v2575 = vshrl.u32 %v2574, 7
  %v2576 = vsub.s32 0, %v2575
  %v2577 = vrot.slane %v2572, %v2576
  %2579 = vmatprep.subr.mxu0 0.0
  %2580 = vmatpush1.msra.mxu0 %v2556
  %2581 = vmatprep.subr.mxu0 0.0
  %2582 = vmatpush1.msra.mxu0 %v2557
  %2583 = vmatprep.subr.mxu0 0.0
  %2584 = vmatpush1.msra.mxu0 %v2558
  %2585 = vmatprep.subr.mxu0 0.0
  %2586 = vmatpush1.msra.mxu0 %v2559
  %2587 = vmatprep.subr.mxu0 0.0
  %2588 = vmatpush1.msra.mxu0 %v2560
  %2589 = vmatprep.subr.mxu0 0.0
  %2590 = vmatpush1.msra.mxu0 %v2561
  %2591 = vmatprep.subr.mxu0 0.0
  %2592 = vmatpush1.msra.mxu0 %v2562
  %2593 = vmatprep.subr.mxu0 0.0
  %2594 = vmatpush1.msra.mxu0 %v2563
  %2595 = vmatprep.subr.mxu0 0.0
  %2596 = vmatpush1.msra.mxu0 %v2564
  %2597 = vmatprep.subr.mxu0 0.0
  %2598 = vmatpush1.msra.mxu0 %v2565
  %2599 = vmatprep.subr.mxu0 0.0
  %2600 = vmatpush1.msra.mxu0 %v2566
  %2601 = vmatprep.subr.mxu0 0.0
  %2602 = vmatpush1.msra.mxu0 %v2567
  %2603 = vmatprep.subr.mxu0 0.0
  %2604 = vmatpush1.msra.mxu0 %v2568
  %2605 = vmatprep.subr.mxu0 0.0
  %2606 = vmatpush1.msra.mxu0 %v2569
  %2607 = vmatprep.subr.mxu0 0.0
  %2608 = vmatpush1.msra.mxu0 %v2570
  %2609 = vmatprep.subr.mxu0 0.0
  %2610 = vmatpush1.msra.mxu0 %v2571
  %2611 = vmatprep.subr.mxu0 0.0
  %2612 = vmatpush1.msra.mxu0 0.0
  %2613 = vmatprep.subr.mxu0 0.0
  %2614 = vmatpush1.msra.mxu0 0.0
  %2615 = vmatprep.subr.mxu0 0.0
  %2616 = vmatpush1.msra.mxu0 0.0
  %2617 = vmatprep.subr.mxu0 0.0
  %2618 = vmatpush1.msra.mxu0 0.0
  %2619 = vmatprep.subr.mxu0 0.0
  %2620 = vmatpush1.msra.mxu0 0.0
  %2621 = vmatprep.subr.mxu0 0.0
  %2622 = vmatpush1.msra.mxu0 0.0
  %2623 = vmatprep.subr.mxu0 0.0
  %2624 = vmatpush1.msra.mxu0 0.0
  %2625 = vmatprep.subr.mxu0 0.0
  %2626 = vmatpush1.msra.mxu0 0.0
  %2627 = vmatprep.subr.mxu0 0.0
  %2628 = vmatpush1.msra.mxu0 0.0
  %2629 = vmatprep.subr.mxu0 0.0
  %2630 = vmatpush1.msra.mxu0 0.0
  %2631 = vmatprep.subr.mxu0 0.0
  %2632 = vmatpush1.msra.mxu0 0.0
  %2633 = vmatprep.subr.mxu0 0.0
  %2634 = vmatpush1.msra.mxu0 0.0
  %2635 = vmatprep.subr.mxu0 0.0
  %2636 = vmatpush1.msra.mxu0 0.0
  %2637 = vmatprep.subr.mxu0 0.0
  %2638 = vmatpush1.msra.mxu0 0.0
  %2639 = vmatprep.subr.mxu0 0.0
  %2640 = vmatpush1.msra.mxu0 0.0
  %2641 = vmatprep.subr.mxu0 0.0
  %2642 = vmatpush1.msra.mxu0 0.0
  %2643 = vmatprep.mubr.f32.mxu0 0.0
  %2644 = vmatmul.mubr.f32.gmra.mrb[0].mxu0 %v2555
  %v2645 = vpop.f32.mrb[0].mxu0
  %v2646 = vadd.f32 %v2577, %v2645
  %v2647 = vpop.f32.mrb[0].mxu0
  %2648 = vdwg.mxu0
  %vm2649 = vcmask 7168
  %2650 = vst.msk [vmem:[%s15] sm:$0xff] %vm2649, %v2646
  // Predicated region
  $region62: #{match_model_forward.1} parent=0 // pred_check
    _
  $region63: #{match_model_forward.1} parent=0 // pred_check_branch
    %2652 = sbr.rel (0) target = $region65
  $region64: #{match_model_forward.1} parent=0 // pred_region
    _
  $region65: #{match_model_forward.1} parent=0 // pred_fallthru
    _
  // Predicated region
  $region66: #{match_model_forward.1} parent=0 // pred_check
    _
  $region67: #{match_model_forward.1} parent=0 // pred_check_branch
    %2654 = sbr.rel (0) target = $region69
  $region68: #{match_model_forward.1} parent=0 // pred_region
    _
  $region69: #{match_model_forward.1} parent=0 // pred_fallthru
    _

</llo_original>
